<compile_context>
chip_gen: v7x
topology: tpu7x:2x2x1
jax: 0.10.0
libtpu: 0.0.40
codegen_flags: <defaults>
</compile_context>

<pallas_src>
import jax
import jax.numpy as jnp
from jax.experimental import pallas as pl
from jax.experimental.pallas import tpu as pltpu


def _voxel_mean_kernel(feat_ref, inv_ref, sel_ref, out_ref):
    # feat_ref: (tv, F*P*Cin)    F voxels folded into the lane axis
    # inv_ref : (tv, F*C)  f32   1/num_voxels, each voxel's value repeated C times
    # sel_ref : (F*P*Cin, F*C) f32 block-diagonal selector (sums points, picks channels)
    # out_ref : (tv, F*C)
    feat = feat_ref[...].astype(jnp.float32)
    summed = jnp.dot(
        feat, sel_ref[...],
        preferred_element_type=jnp.float32,
        precision=jax.lax.Precision.HIGHEST,
    )
    out_ref[...] = (summed * inv_ref[...]).astype(out_ref.dtype)


def voxel_feature_extractor_v3(features, num_voxels, num_input_features=4,
                               max_tile_rows=4096):
    """features: (V, P, Cin) float, num_voxels: (V,) int -> (V, C) float."""
    V, P, Cin = features.shape
    C = int(num_input_features)
    assert Cin >= C, "features must carry at least num_input_features channels"
    dtype = features.dtype
    itemsize = jnp.dtype(dtype).itemsize

    # f32 reciprocal end-to-end (num_voxels == 0 -> inf, matching torch divide).
    inv_f32 = 1.0 / num_voxels.astype(jnp.float32)  # (V,)

    # Fold F voxels into the lane axis so the output row width is ~128 lanes.
    F = max(1, 128 // C)
    G, R = divmod(V, F)

    def _tail_mean(feats_tail, inv_tail):
        s = feats_tail[..., :C].astype(jnp.float32).sum(axis=1)
        return (s * inv_tail[:, None]).astype(dtype)

    if G == 0:
        # Fewer voxels than one folded row: pure-JAX fallback.
        return _tail_mean(features, inv_f32)

    W = F * P * Cin   # folded input row width (1024 for P=8, Cin=C=4)
    Wo = F * C        # folded output row width (128 for C=4)

    # Contiguous reshape (bitcast, no HBM pass). Only when V % F != 0 do we take a
    # prefix slice and handle the small remainder with the pure-JAX epilogue.
    feats_main = features if R == 0 else jax.lax.slice_in_dim(features, 0, G * F, axis=0)
    flat = feats_main.reshape(G, W)

    # Pre-expand reciprocal to the folded layout: inv_main[g, f*C + c] = 1/n[g*F + f].
    inv_main = jnp.repeat(inv_f32[: G * F].reshape(G, F), C, axis=1)  # (G, Wo) f32

    # Block-diagonal selector: sel[g*P*Cin + p*Cin + c, g*C + c] = 1 for c < C.
    # Zero rows for channels c >= C fold the "[:, :, :C]" slice into the matmul.
    chan_sel = jnp.eye(Cin, C, dtype=jnp.float32)          # (Cin, C)
    pc_sel = jnp.tile(chan_sel, (P, 1))                    # (P*Cin, C)
    sel = jnp.kron(jnp.eye(F, dtype=jnp.float32), pc_sel)  # (W, Wo)

    # Tile sizing from the real double-buffered footprint (feat + inv + out, 2x),
    # excluding the small resident selector. ~20 MiB total is safe on v5e/v6e/v7x
    # once vmem_limit_bytes is raised to 32 MiB below.
    row_bytes = W * itemsize + Wo * 4 + Wo * itemsize
    vmem_budget = 20 * 1024 * 1024
    tv = max(8, min(int(max_tile_rows), vmem_budget // (2 * row_bytes)) // 8 * 8)
    if tv >= G:
        # Whole problem fits in one block: split into two blocks when possible so
        # both v7x TensorCores get work (perf-neutral on v5e/v6e).
        half = (((G + 1) // 2) + 7) // 8 * 8
        tv = half if half < G else G
    n_blocks = pl.cdiv(G, tv)

    cost = pl.CostEstimate(
        flops=2 * G * W * Wo,
        transcendentals=0,
        bytes_accessed=G * W * itemsize + G * Wo * 4 + G * Wo * itemsize + W * Wo * 4,
    )

    out_main = pl.pallas_call(
        _voxel_mean_kernel,
        out_shape=jax.ShapeDtypeStruct((G, Wo), dtype),
        grid_spec=pltpu.PrefetchScalarGridSpec(
            num_scalar_prefetch=0,
            grid=(n_blocks,),
            in_specs=[
                pl.BlockSpec((tv, W), lambda i: (i, 0)),    # folded features
                pl.BlockSpec((tv, Wo), lambda i: (i, 0)),   # f32 reciprocals
                pl.BlockSpec((W, Wo), lambda i: (0, 0)),    # selector (resident)
            ],
            out_specs=pl.BlockSpec((tv, Wo), lambda i: (i, 0)),
        ),
        compiler_params=pltpu.CompilerParams(
            dimension_semantics=("parallel",),
            vmem_limit_bytes=32 * 1024 * 1024,
        ),
        cost_estimate=cost,
    )(flat, inv_main, sel)

    out_main = out_main.reshape(G * F, C)  # free contiguous reshape back to (voxels, C)
    if R == 0:
        return out_main
    tail = _tail_mean(features[G * F:], inv_f32[G * F:])
    return jnp.concatenate([out_main, tail], axis=0)


if __name__ == "__main__":
    key = jax.random.PRNGKey(0)
    V, P, C = 64, 8, 4  # small shapes: 64 voxels, 8 max points/voxel, 4 input features

    kf, kn = jax.random.split(key)
    features = jax.random.normal(kf, (V, P, C), dtype=jnp.float32)
    num_voxels = jax.random.randint(kn, (V,), minval=1, maxval=P + 1, dtype=jnp.int32)

    out = voxel_feature_extractor_v3(features, num_voxels, num_input_features=C)
    out = jax.block_until_ready(out)

    # reference check (pure JAX, matches the PyTorch module)
    ref = features.sum(axis=1) / num_voxels.astype(features.dtype)[:, None]
    assert out.shape == (V, C)
    assert jnp.allclose(out, ref, atol=1e-5, rtol=1e-5)

    print("KERNEL_OK")
</pallas_src>

<mosaic_0001>
module attributes {stable_mosaic.version = 11 : i64} {
  func.func @_voxel_mean_kernel(%arg0: i32, %arg1: memref<2x1024xf32, #tpu.memory_space<vmem>>, %arg2: memref<2x128xf32, #tpu.memory_space<vmem>>, %arg3: memref<1024x128xf32, #tpu.memory_space<vmem>>, %arg4: memref<2x128xf32, #tpu.memory_space<vmem>>) attributes {dimension_semantics = [#tpu.dimension_semantics<parallel>], iteration_bounds = array<i64: 1>, scalar_prefetch = 0 : i64, scratch_operands = 0 : i64, tpu.core_type = #tpu.core_type<tc>, window_params = [{transform_indices = @transform_0, window_bounds = array<i64: 2, 1024>}, {transform_indices = @transform_1, window_bounds = array<i64: 2, 128>}, {pipeline_mode = #tpu.pipeline_mode<synchronous>, transform_indices = @transform_2, window_bounds = array<i64: 1024, 128>}, {transform_indices = @transform_3, window_bounds = array<i64: 2, 128>}]} {
    %c0 = arith.constant 0 : index
    %c0_0 = arith.constant 0 : index
    %0 = vector.load %arg1[%c0, %c0_0] : memref<2x1024xf32, #tpu.memory_space<vmem>>, vector<2x1024xf32>
    %c0_1 = arith.constant 0 : index
    %c0_2 = arith.constant 0 : index
    %1 = vector.load %arg3[%c0_1, %c0_2] : memref<1024x128xf32, #tpu.memory_space<vmem>>, vector<1024x128xf32>
    %cst = arith.constant dense<0.000000e+00> : vector<2x128xf32>
    %2 = tpu.matmul %0, %1, %cst {dimension_numbers = #tpu.dot_dimension_numbers<[1], [0], [0], [1], [0, 0, 1, 1], [], []>, precision = #tpu.contract_precision<fp32>} : vector<2x1024xf32>, vector<1024x128xf32>, vector<2x128xf32> -> vector<2x128xf32>
    %c0_3 = arith.constant 0 : index
    %c0_4 = arith.constant 0 : index
    %3 = vector.load %arg2[%c0_3, %c0_4] : memref<2x128xf32, #tpu.memory_space<vmem>>, vector<2x128xf32>
    %4 = arith.mulf %2, %3 : vector<2x128xf32>
    %c0_5 = arith.constant 0 : index
    %c0_6 = arith.constant 0 : index
    %5 = vector.load %arg4[%c0_5, %c0_6] : memref<2x128xf32, #tpu.memory_space<vmem>>, vector<2x128xf32>
    tpu.vector_store %arg4[%c0_5, %c0_6], %4 {strides = array<i32>} : memref<2x128xf32, #tpu.memory_space<vmem>>, vector<2x128xf32>,
    return
  }
  func.func @transform_0(%arg0: i32) -> (i32, i32) {
    %c0_i32 = arith.constant 0 : i32
    %c0_i32_0 = arith.constant 0 : i32
    return %arg0, %c0_i32 : i32, i32
  }
  func.func @transform_1(%arg0: i32) -> (i32, i32) {
    %c0_i32 = arith.constant 0 : i32
    %c0_i32_0 = arith.constant 0 : i32
    return %arg0, %c0_i32 : i32, i32
  }
  func.func @transform_2(%arg0: i32) -> (i32, i32) {
    %c0_i32 = arith.constant 0 : i32
    %c0_i32_0 = arith.constant 0 : i32
    %c0_i32_1 = arith.constant 0 : i32
    return %c0_i32, %c0_i32_0 : i32, i32
  }
  func.func @transform_3(%arg0: i32) -> (i32, i32) {
    %c0_i32 = arith.constant 0 : i32
    %c0_i32_0 = arith.constant 0 : i32
    return %arg0, %c0_i32 : i32, i32
  }
}

</mosaic_0001>

<llo_original>
// kernel: tpu_custom_call.1
$region0: #{tpu_custom_call.1}
  #allocation0 [shape = 'u32[]', space=smem, size = 0x4, offset = 0x4, fixed_abs, tag = 'smem constant byte address 0x4 - core index']
  #allocation1 [shape = 'u32[144,128]{1,0:T(1,128)}', space=vmem, size = 0x12000, scoped, tag = 'internal scratch']
  %s0 = inlined_call_operand.hbm [shape: f32[2,1024], index: 0, kind: input, shape index: {}]
  %s1 = inlined_call_operand.vmem [shape: f32[2,128], index: 1, kind: input, shape index: {}]
  %s2 = inlined_call_operand.hbm [shape: f32[1024,128], index: 2, kind: input, shape index: {}]
  %s3 = inlined_call_operand.hbm [shape: f32[2,128], index: 3, kind: output, shape index: {}]
  %s4 = sld [smem:[#allocation0]]
  $region30: #{tpu_custom_call.1} parent=0
    _
  %s6 = ssub.s32 1, %s4
  %s7 = scalar_select 0, %s6, %s4
  $region1: #{tpu_custom_call.1} parent=0
    #allocation2 [shape = 'u8[8192]{0}', space=vmem, size = 0x2000, scoped, tag = 'input window, operand 0, single buffered']
    #allocation3 [shape = 's32[1]{0}', space=sflag, size = 0x4, scoped, tag = 'scoped memory for tpu_custom_call.1']
    #allocation4 [shape = 's32[1]{0}', space=sflag, size = 0x4, scoped, tag = 'scoped memory for tpu_custom_call.1']
    #allocation5 [shape = 'u8[524288]{0}', space=vmem, size = 0x80000, scoped, tag = 'input window, operand 2, single buffered']
    #allocation6 [shape = 's32[1]{0}', space=sflag, size = 0x4, scoped, tag = 'scoped memory for tpu_custom_call.1']
    #allocation7 [shape = 'u8[1024]{0}', space=vmem, size = 0x400, scoped, tag = 'output window, operand 0, single buffered']
    %8 = vsyncpa [#allocation3], 0
    %9 = vsyncpa [#allocation6], 0
    %10 = vsyncpa [#allocation4], 0
    // Predicated region
    $region2: #{tpu_custom_call.1} parent=1 // pred_check
      _
    $region3: #{tpu_custom_call.1} parent=1 // pred_check_branch
      %12 = sbr.rel (0) target = $region5
    $region4: #{tpu_custom_call.1} parent=1 // pred_region
      %s14 = ssub.s32 256, 256
      %15 = vsyncadd [#allocation3], %s14
      %s17 = sshll.u32 [#allocation2], 4
      %s18 = int_to_ptr.vmem [resolvable:$true] %s17
      %20 = dma.hbm_to_vmem [thread:$0]  %s0, 256, %s18, [#allocation3]
    $region5: #{tpu_custom_call.1} parent=1 // pred_fallthru
      _
    // Predicated region
    $region6: #{tpu_custom_call.1} parent=1 // pred_check
      _
    $region7: #{tpu_custom_call.1} parent=1 // pred_check_branch
      %22 = sbr.rel (0) target = $region9
    $region8: #{tpu_custom_call.1} parent=1 // pred_region
      _
    $region9: #{tpu_custom_call.1} parent=1 // pred_fallthru
      _
    // Predicated region
    $region10: #{tpu_custom_call.1} parent=1 // pred_check
      _
    $region11: #{tpu_custom_call.1} parent=1 // pred_check_branch
      %24 = sbr.rel (0) target = $region13
    $region12: #{tpu_custom_call.1} parent=1 // pred_region
      %s26 = ssub.s32 16384, 16384
      %27 = vsyncadd [#allocation6], %s26
      %s28 = sshll.u32 [#allocation5], 4
      %s29 = int_to_ptr.vmem [resolvable:$true] %s28
      %34 = dma.hbm_to_vmem [thread:$0]  %s2, 16384, %s29, [#allocation6], 128, 128, 8
    $region13: #{tpu_custom_call.1} parent=1 // pred_fallthru
      _
    // Predicated region
    $region14: #{tpu_custom_call.1} parent=1 // pred_check
      _
    $region15: #{tpu_custom_call.1} parent=1 // pred_check_branch
      %36 = sbr.rel (0) target = $region17
    $region16: #{tpu_custom_call.1} parent=1 // pred_region
      %37 = dma.done [#allocation3], 256
    $region17: #{tpu_custom_call.1} parent=1 // pred_fallthru
      _
    // Predicated region
    $region18: #{tpu_custom_call.1} parent=1 // pred_check
      _
    $region19: #{tpu_custom_call.1} parent=1 // pred_check_branch
      %39 = sbr.rel (0) target = $region21
    $region20: #{tpu_custom_call.1} parent=1 // pred_region
      %40 = dma.done [#allocation6], 16384
    $region21: #{tpu_custom_call.1} parent=1 // pred_fallthru
      _
    %v41 = vld [vmem:[#allocation2] sm:$0xff]
    %v42 = vld [vmem:[#allocation2 + $0x8] sm:$0xff]
    %v43 = vld [vmem:[#allocation5] sm:$0xff]
    %v44 = vld [vmem:[#allocation5 + $0x8] sm:$0xff]
    %v45 = vld [vmem:[#allocation5 + $0x10] sm:$0xff]
    %v46 = vld [vmem:[#allocation5 + $0x18] sm:$0xff]
    %v47 = vld [vmem:[#allocation5 + $0x20] sm:$0xff]
    %v48 = vld [vmem:[#allocation5 + $0x28] sm:$0xff]
    %v49 = vld [vmem:[#allocation5 + $0x30] sm:$0xff]
    %v50 = vld [vmem:[#allocation5 + $0x38] sm:$0xff]
    %v51 = vld [vmem:[#allocation5 + $0x40] sm:$0xff]
    %v52 = vld [vmem:[#allocation5 + $0x48] sm:$0xff]
    %v53 = vld [vmem:[#allocation5 + $0x50] sm:$0xff]
    %v54 = vld [vmem:[#allocation5 + $0x58] sm:$0xff]
    %v55 = vld [vmem:[#allocation5 + $0x60] sm:$0xff]
    %v56 = vld [vmem:[#allocation5 + $0x68] sm:$0xff]
    %v57 = vld [vmem:[#allocation5 + $0x70] sm:$0xff]
    %v58 = vld [vmem:[#allocation5 + $0x78] sm:$0xff]
    %v59 = vld [vmem:[#allocation5 + $0x80] sm:$0xff]
    %v60 = vld [vmem:[#allocation5 + $0x88] sm:$0xff]
    %v61 = vld [vmem:[#allocation5 + $0x90] sm:$0xff]
    %v62 = vld [vmem:[#allocation5 + $0x98] sm:$0xff]
    %v63 = vld [vmem:[#allocation5 + $0xa0] sm:$0xff]
    %v64 = vld [vmem:[#allocation5 + $0xa8] sm:$0xff]
    %v65 = vld [vmem:[#allocation5 + $0xb0] sm:$0xff]
    %v66 = vld [vmem:[#allocation5 + $0xb8] sm:$0xff]
    %v67 = vld [vmem:[#allocation5 + $0xc0] sm:$0xff]
    %v68 = vld [vmem:[#allocation5 + $0xc8] sm:$0xff]
    %v69 = vld [vmem:[#allocation5 + $0xd0] sm:$0xff]
    %v70 = vld [vmem:[#allocation5 + $0xd8] sm:$0xff]
    %v71 = vld [vmem:[#allocation5 + $0xe0] sm:$0xff]
    %v72 = vld [vmem:[#allocation5 + $0xe8] sm:$0xff]
    %v73 = vld [vmem:[#allocation5 + $0xf0] sm:$0xff]
    %v74 = vld [vmem:[#allocation5 + $0xf8] sm:$0xff]
    %v75 = vld [vmem:[#allocation5 + $0x100] sm:$0xff]
    %v76 = vld [vmem:[#allocation5 + $0x108] sm:$0xff]
    %v77 = vld [vmem:[#allocation5 + $0x110] sm:$0xff]
    %v78 = vld [vmem:[#allocation5 + $0x118] sm:$0xff]
    %v79 = vld [vmem:[#allocation5 + $0x120] sm:$0xff]
    %v80 = vld [vmem:[#allocation5 + $0x128] sm:$0xff]
    %v81 = vld [vmem:[#allocation5 + $0x130] sm:$0xff]
    %v82 = vld [vmem:[#allocation5 + $0x138] sm:$0xff]
    %v83 = vld [vmem:[#allocation5 + $0x140] sm:$0xff]
    %v84 = vld [vmem:[#allocation5 + $0x148] sm:$0xff]
    %v85 = vld [vmem:[#allocation5 + $0x150] sm:$0xff]
    %v86 = vld [vmem:[#allocation5 + $0x158] sm:$0xff]
    %v87 = vld [vmem:[#allocation5 + $0x160] sm:$0xff]
    %v88 = vld [vmem:[#allocation5 + $0x168] sm:$0xff]
    %v89 = vld [vmem:[#allocation5 + $0x170] sm:$0xff]
    %v90 = vld [vmem:[#allocation5 + $0x178] sm:$0xff]
    %v91 = vld [vmem:[#allocation5 + $0x180] sm:$0xff]
    %v92 = vld [vmem:[#allocation5 + $0x188] sm:$0xff]
    %v93 = vld [vmem:[#allocation5 + $0x190] sm:$0xff]
    %v94 = vld [vmem:[#allocation5 + $0x198] sm:$0xff]
    %v95 = vld [vmem:[#allocation5 + $0x1a0] sm:$0xff]
    %v96 = vld [vmem:[#allocation5 + $0x1a8] sm:$0xff]
    %v97 = vld [vmem:[#allocation5 + $0x1b0] sm:$0xff]
    %v98 = vld [vmem:[#allocation5 + $0x1b8] sm:$0xff]
    %v99 = vld [vmem:[#allocation5 + $0x1c0] sm:$0xff]
    %v100 = vld [vmem:[#allocation5 + $0x1c8] sm:$0xff]
    %v101 = vld [vmem:[#allocation5 + $0x1d0] sm:$0xff]
    %v102 = vld [vmem:[#allocation5 + $0x1d8] sm:$0xff]
    %v103 = vld [vmem:[#allocation5 + $0x1e0] sm:$0xff]
    %v104 = vld [vmem:[#allocation5 + $0x1e8] sm:$0xff]
    %v105 = vld [vmem:[#allocation5 + $0x1f0] sm:$0xff]
    %v106 = vld [vmem:[#allocation5 + $0x1f8] sm:$0xff]
    %v107 = vld [vmem:[#allocation5 + $0x200] sm:$0xff]
    %v108 = vld [vmem:[#allocation5 + $0x208] sm:$0xff]
    %v109 = vld [vmem:[#allocation5 + $0x210] sm:$0xff]
    %v110 = vld [vmem:[#allocation5 + $0x218] sm:$0xff]
    %v111 = vld [vmem:[#allocation5 + $0x220] sm:$0xff]
    %v112 = vld [vmem:[#allocation5 + $0x228] sm:$0xff]
    %v113 = vld [vmem:[#allocation5 + $0x230] sm:$0xff]
    %v114 = vld [vmem:[#allocation5 + $0x238] sm:$0xff]
    %v115 = vld [vmem:[#allocation5 + $0x240] sm:$0xff]
    %v116 = vld [vmem:[#allocation5 + $0x248] sm:$0xff]
    %v117 = vld [vmem:[#allocation5 + $0x250] sm:$0xff]
    %v118 = vld [vmem:[#allocation5 + $0x258] sm:$0xff]
    %v119 = vld [vmem:[#allocation5 + $0x260] sm:$0xff]
    %v120 = vld [vmem:[#allocation5 + $0x268] sm:$0xff]
    %v121 = vld [vmem:[#allocation5 + $0x270] sm:$0xff]
    %v122 = vld [vmem:[#allocation5 + $0x278] sm:$0xff]
    %v123 = vld [vmem:[#allocation5 + $0x280] sm:$0xff]
    %v124 = vld [vmem:[#allocation5 + $0x288] sm:$0xff]
    %v125 = vld [vmem:[#allocation5 + $0x290] sm:$0xff]
    %v126 = vld [vmem:[#allocation5 + $0x298] sm:$0xff]
    %v127 = vld [vmem:[#allocation5 + $0x2a0] sm:$0xff]
    %v128 = vld [vmem:[#allocation5 + $0x2a8] sm:$0xff]
    %v129 = vld [vmem:[#allocation5 + $0x2b0] sm:$0xff]
    %v130 = vld [vmem:[#allocation5 + $0x2b8] sm:$0xff]
    %v131 = vld [vmem:[#allocation5 + $0x2c0] sm:$0xff]
    %v132 = vld [vmem:[#allocation5 + $0x2c8] sm:$0xff]
    %v133 = vld [vmem:[#allocation5 + $0x2d0] sm:$0xff]
    %v134 = vld [vmem:[#allocation5 + $0x2d8] sm:$0xff]
    %v135 = vld [vmem:[#allocation5 + $0x2e0] sm:$0xff]
    %v136 = vld [vmem:[#allocation5 + $0x2e8] sm:$0xff]
    %v137 = vld [vmem:[#allocation5 + $0x2f0] sm:$0xff]
    %v138 = vld [vmem:[#allocation5 + $0x2f8] sm:$0xff]
    %v139 = vld [vmem:[#allocation5 + $0x300] sm:$0xff]
    %v140 = vld [vmem:[#allocation5 + $0x308] sm:$0xff]
    %v141 = vld [vmem:[#allocation5 + $0x310] sm:$0xff]
    %v142 = vld [vmem:[#allocation5 + $0x318] sm:$0xff]
    %v143 = vld [vmem:[#allocation5 + $0x320] sm:$0xff]
    %v144 = vld [vmem:[#allocation5 + $0x328] sm:$0xff]
    %v145 = vld [vmem:[#allocation5 + $0x330] sm:$0xff]
    %v146 = vld [vmem:[#allocation5 + $0x338] sm:$0xff]
    %v147 = vld [vmem:[#allocation5 + $0x340] sm:$0xff]
    %v148 = vld [vmem:[#allocation5 + $0x348] sm:$0xff]
    %v149 = vld [vmem:[#allocation5 + $0x350] sm:$0xff]
    %v150 = vld [vmem:[#allocation5 + $0x358] sm:$0xff]
    %v151 = vld [vmem:[#allocation5 + $0x360] sm:$0xff]
    %v152 = vld [vmem:[#allocation5 + $0x368] sm:$0xff]
    %v153 = vld [vmem:[#allocation5 + $0x370] sm:$0xff]
    %v154 = vld [vmem:[#allocation5 + $0x378] sm:$0xff]
    %v155 = vld [vmem:[#allocation5 + $0x380] sm:$0xff]
    %v156 = vld [vmem:[#allocation5 + $0x388] sm:$0xff]
    %v157 = vld [vmem:[#allocation5 + $0x390] sm:$0xff]
    %v158 = vld [vmem:[#allocation5 + $0x398] sm:$0xff]
    %v159 = vld [vmem:[#allocation5 + $0x3a0] sm:$0xff]
    %v160 = vld [vmem:[#allocation5 + $0x3a8] sm:$0xff]
    %v161 = vld [vmem:[#allocation5 + $0x3b0] sm:$0xff]
    %v162 = vld [vmem:[#allocation5 + $0x3b8] sm:$0xff]
    %v163 = vld [vmem:[#allocation5 + $0x3c0] sm:$0xff]
    %v164 = vld [vmem:[#allocation5 + $0x3c8] sm:$0xff]
    %v165 = vld [vmem:[#allocation5 + $0x3d0] sm:$0xff]
    %v166 = vld [vmem:[#allocation5 + $0x3d8] sm:$0xff]
    %v167 = vld [vmem:[#allocation5 + $0x3e0] sm:$0xff]
    %v168 = vld [vmem:[#allocation5 + $0x3e8] sm:$0xff]
    %v169 = vld [vmem:[#allocation5 + $0x3f0] sm:$0xff]
    %v170 = vld [vmem:[#allocation5 + $0x3f8] sm:$0xff]
    %v173 = vcombine.high %v41, %v41
    %v175 = vunpack.c.l.s4 1983009808
    %v176 = vunpack.c.0.s8 %v175
    %v177 = vlaneseq
    %v178 = vshrl.u32 %v177, 7
    %v179 = vsub.s32 %v176, %v178
    %v180 = vrot.slane %v41, %v179
    %v182 = vunpack.c.l.s4 1983009808
    %v183 = vunpack.c.0.s8 %v182
    %v184 = vlaneseq
    %v185 = vshrl.u32 %v184, 7
    %v186 = vsub.s32 %v183, %v185
    %v187 = vrot.slane %v173, %v186
    %v188 = vcombine.high %v180, %v180
    %v189 = vcombine.high %v187, %v187
    %v190 = vcombine.high %v42, %v42
    %v192 = vunpack.c.l.s4 1983009808
    %v193 = vunpack.c.0.s8 %v192
    %v194 = vlaneseq
    %v195 = vshrl.u32 %v194, 7
    %v196 = vsub.s32 %v193, %v195
    %v197 = vrot.slane %v42, %v196
    %v199 = vunpack.c.l.s4 1983009808
    %v200 = vunpack.c.0.s8 %v199
    %v201 = vlaneseq
    %v202 = vshrl.u32 %v201, 7
    %v203 = vsub.s32 %v200, %v202
    %v204 = vrot.slane %v190, %v203
    %v205 = vcombine.high %v197, %v197
    %v206 = vcombine.high %v204, %v204
    %215 = vmatprep.subr.mxu0 0.0
    %v216 = vand.u32 %v43, 4294901760
    %217 = vmatpush1.msra.mxu0 %v216
    %218 = vmatprep.subr.mxu0 0.0
    %v219 = vand.u32 %v44, 4294901760
    %220 = vmatpush1.msra.mxu0 %v219
    %221 = vmatprep.subr.mxu0 0.0
    %v222 = vand.u32 %v45, 4294901760
    %223 = vmatpush1.msra.mxu0 %v222
    %224 = vmatprep.subr.mxu0 0.0
    %v225 = vand.u32 %v46, 4294901760
    %226 = vmatpush1.msra.mxu0 %v225
    %227 = vmatprep.subr.mxu0 0.0
    %v228 = vand.u32 %v47, 4294901760
    %229 = vmatpush1.msra.mxu0 %v228
    %230 = vmatprep.subr.mxu0 0.0
    %v231 = vand.u32 %v48, 4294901760
    %232 = vmatpush1.msra.mxu0 %v231
    %233 = vmatprep.subr.mxu0 0.0
    %v234 = vand.u32 %v49, 4294901760
    %235 = vmatpush1.msra.mxu0 %v234
    %236 = vmatprep.subr.mxu0 0.0
    %v237 = vand.u32 %v50, 4294901760
    %238 = vmatpush1.msra.mxu0 %v237
    %239 = vmatprep.subr.mxu0 0.0
    %v240 = vand.u32 %v51, 4294901760
    %241 = vmatpush1.msra.mxu0 %v240
    %242 = vmatprep.subr.mxu0 0.0
    %v243 = vand.u32 %v52, 4294901760
    %244 = vmatpush1.msra.mxu0 %v243
    %245 = vmatprep.subr.mxu0 0.0
    %v246 = vand.u32 %v53, 4294901760
    %247 = vmatpush1.msra.mxu0 %v246
    %248 = vmatprep.subr.mxu0 0.0
    %v249 = vand.u32 %v54, 4294901760
    %250 = vmatpush1.msra.mxu0 %v249
    %251 = vmatprep.subr.mxu0 0.0
    %v252 = vand.u32 %v55, 4294901760
    %253 = vmatpush1.msra.mxu0 %v252
    %254 = vmatprep.subr.mxu0 0.0
    %v255 = vand.u32 %v56, 4294901760
    %256 = vmatpush1.msra.mxu0 %v255
    %257 = vmatprep.subr.mxu0 0.0
    %v258 = vand.u32 %v57, 4294901760
    %259 = vmatpush1.msra.mxu0 %v258
    %260 = vmatprep.subr.mxu0 0.0
    %v261 = vand.u32 %v58, 4294901760
    %262 = vmatpush1.msra.mxu0 %v261
    %263 = vmatprep.subr.mxu0 0.0
    %v264 = vand.u32 %v59, 4294901760
    %265 = vmatpush1.msra.mxu0 %v264
    %266 = vmatprep.subr.mxu0 0.0
    %v267 = vand.u32 %v60, 4294901760
    %268 = vmatpush1.msra.mxu0 %v267
    %269 = vmatprep.subr.mxu0 0.0
    %v270 = vand.u32 %v61, 4294901760
    %271 = vmatpush1.msra.mxu0 %v270
    %272 = vmatprep.subr.mxu0 0.0
    %v273 = vand.u32 %v62, 4294901760
    %274 = vmatpush1.msra.mxu0 %v273
    %275 = vmatprep.subr.mxu0 0.0
    %v276 = vand.u32 %v63, 4294901760
    %277 = vmatpush1.msra.mxu0 %v276
    %278 = vmatprep.subr.mxu0 0.0
    %v279 = vand.u32 %v64, 4294901760
    %280 = vmatpush1.msra.mxu0 %v279
    %281 = vmatprep.subr.mxu0 0.0
    %v282 = vand.u32 %v65, 4294901760
    %283 = vmatpush1.msra.mxu0 %v282
    %284 = vmatprep.subr.mxu0 0.0
    %v285 = vand.u32 %v66, 4294901760
    %286 = vmatpush1.msra.mxu0 %v285
    %287 = vmatprep.subr.mxu0 0.0
    %v288 = vand.u32 %v67, 4294901760
    %289 = vmatpush1.msra.mxu0 %v288
    %290 = vmatprep.subr.mxu0 0.0
    %v291 = vand.u32 %v68, 4294901760
    %292 = vmatpush1.msra.mxu0 %v291
    %293 = vmatprep.subr.mxu0 0.0
    %v294 = vand.u32 %v69, 4294901760
    %295 = vmatpush1.msra.mxu0 %v294
    %296 = vmatprep.subr.mxu0 0.0
    %v297 = vand.u32 %v70, 4294901760
    %298 = vmatpush1.msra.mxu0 %v297
    %299 = vmatprep.subr.mxu0 0.0
    %v300 = vand.u32 %v71, 4294901760
    %301 = vmatpush1.msra.mxu0 %v300
    %302 = vmatprep.subr.mxu0 0.0
    %v303 = vand.u32 %v72, 4294901760
    %304 = vmatpush1.msra.mxu0 %v303
    %305 = vmatprep.subr.mxu0 0.0
    %v306 = vand.u32 %v73, 4294901760
    %307 = vmatpush1.msra.mxu0 %v306
    %308 = vmatprep.subr.mxu0 0.0
    %v309 = vand.u32 %v74, 4294901760
    %310 = vmatpush1.msra.mxu0 %v309
    %v311 = vand.u32 %v188, 4294901760
    %v312 = vsub.f32 %v188, %v311
    %v313 = vand.u32 %v312, 4294901760
    %v314 = vsub.f32 %v312, %v313
    %v315 = vand.u32 %v314, 4294901760
    %316 = vmatprep.mubr.f32.mxu0 %v315
    %v317 = vand.u32 %v180, 4294901760
    %v318 = vsub.f32 %v180, %v317
    %v319 = vand.u32 %v318, 4294901760
    %v320 = vsub.f32 %v318, %v319
    %v321 = vand.u32 %v320, 4294901760
    %322 = vmatmul.mubr.f32.gmra.mrb[0].mxu0 %v321
    %v323 = vpop.f32.mrb[0].mxu0
    %v324 = vadd.f32 0.0, %v323
    %v325 = vpop.f32.mrb[0].mxu0
    %326 = vdwg.mxu0
    %327 = vmatprep.subr.mxu0 0.0
    %v328 = vand.u32 %v43, 4294901760
    %v329 = vsub.f32 %v43, %v328
    %v330 = vand.u32 %v329, 4294901760
    %v331 = vsub.f32 %v329, %v330
    %v332 = vand.u32 %v331, 4294901760
    %333 = vmatpush1.msra.mxu0 %v332
    %334 = vmatprep.subr.mxu0 0.0
    %v335 = vand.u32 %v44, 4294901760
    %v336 = vsub.f32 %v44, %v335
    %v337 = vand.u32 %v336, 4294901760
    %v338 = vsub.f32 %v336, %v337
    %v339 = vand.u32 %v338, 4294901760
    %340 = vmatpush1.msra.mxu0 %v339
    %341 = vmatprep.subr.mxu0 0.0
    %v342 = vand.u32 %v45, 4294901760
    %v343 = vsub.f32 %v45, %v342
    %v344 = vand.u32 %v343, 4294901760
    %v345 = vsub.f32 %v343, %v344
    %v346 = vand.u32 %v345, 4294901760
    %347 = vmatpush1.msra.mxu0 %v346
    %348 = vmatprep.subr.mxu0 0.0
    %v349 = vand.u32 %v46, 4294901760
    %v350 = vsub.f32 %v46, %v349
    %v351 = vand.u32 %v350, 4294901760
    %v352 = vsub.f32 %v350, %v351
    %v353 = vand.u32 %v352, 4294901760
    %354 = vmatpush1.msra.mxu0 %v353
    %355 = vmatprep.subr.mxu0 0.0
    %v356 = vand.u32 %v47, 4294901760
    %v357 = vsub.f32 %v47, %v356
    %v358 = vand.u32 %v357, 4294901760
    %v359 = vsub.f32 %v357, %v358
    %v360 = vand.u32 %v359, 4294901760
    %361 = vmatpush1.msra.mxu0 %v360
    %362 = vmatprep.subr.mxu0 0.0
    %v363 = vand.u32 %v48, 4294901760
    %v364 = vsub.f32 %v48, %v363
    %v365 = vand.u32 %v364, 4294901760
    %v366 = vsub.f32 %v364, %v365
    %v367 = vand.u32 %v366, 4294901760
    %368 = vmatpush1.msra.mxu0 %v367
    %369 = vmatprep.subr.mxu0 0.0
    %v370 = vand.u32 %v49, 4294901760
    %v371 = vsub.f32 %v49, %v370
    %v372 = vand.u32 %v371, 4294901760
    %v373 = vsub.f32 %v371, %v372
    %v374 = vand.u32 %v373, 4294901760
    %375 = vmatpush1.msra.mxu0 %v374
    %376 = vmatprep.subr.mxu0 0.0
    %v377 = vand.u32 %v50, 4294901760
    %v378 = vsub.f32 %v50, %v377
    %v379 = vand.u32 %v378, 4294901760
    %v380 = vsub.f32 %v378, %v379
    %v381 = vand.u32 %v380, 4294901760
    %382 = vmatpush1.msra.mxu0 %v381
    %383 = vmatprep.subr.mxu0 0.0
    %v384 = vand.u32 %v51, 4294901760
    %v385 = vsub.f32 %v51, %v384
    %v386 = vand.u32 %v385, 4294901760
    %v387 = vsub.f32 %v385, %v386
    %v388 = vand.u32 %v387, 4294901760
    %389 = vmatpush1.msra.mxu0 %v388
    %390 = vmatprep.subr.mxu0 0.0
    %v391 = vand.u32 %v52, 4294901760
    %v392 = vsub.f32 %v52, %v391
    %v393 = vand.u32 %v392, 4294901760
    %v394 = vsub.f32 %v392, %v393
    %v395 = vand.u32 %v394, 4294901760
    %396 = vmatpush1.msra.mxu0 %v395
    %397 = vmatprep.subr.mxu0 0.0
    %v398 = vand.u32 %v53, 4294901760
    %v399 = vsub.f32 %v53, %v398
    %v400 = vand.u32 %v399, 4294901760
    %v401 = vsub.f32 %v399, %v400
    %v402 = vand.u32 %v401, 4294901760
    %403 = vmatpush1.msra.mxu0 %v402
    %404 = vmatprep.subr.mxu0 0.0
    %v405 = vand.u32 %v54, 4294901760
    %v406 = vsub.f32 %v54, %v405
    %v407 = vand.u32 %v406, 4294901760
    %v408 = vsub.f32 %v406, %v407
    %v409 = vand.u32 %v408, 4294901760
    %410 = vmatpush1.msra.mxu0 %v409
    %411 = vmatprep.subr.mxu0 0.0
    %v412 = vand.u32 %v55, 4294901760
    %v413 = vsub.f32 %v55, %v412
    %v414 = vand.u32 %v413, 4294901760
    %v415 = vsub.f32 %v413, %v414
    %v416 = vand.u32 %v415, 4294901760
    %417 = vmatpush1.msra.mxu0 %v416
    %418 = vmatprep.subr.mxu0 0.0
    %v419 = vand.u32 %v56, 4294901760
    %v420 = vsub.f32 %v56, %v419
    %v421 = vand.u32 %v420, 4294901760
    %v422 = vsub.f32 %v420, %v421
    %v423 = vand.u32 %v422, 4294901760
    %424 = vmatpush1.msra.mxu0 %v423
    %425 = vmatprep.subr.mxu0 0.0
    %v426 = vand.u32 %v57, 4294901760
    %v427 = vsub.f32 %v57, %v426
    %v428 = vand.u32 %v427, 4294901760
    %v429 = vsub.f32 %v427, %v428
    %v430 = vand.u32 %v429, 4294901760
    %431 = vmatpush1.msra.mxu0 %v430
    %432 = vmatprep.subr.mxu0 0.0
    %v433 = vand.u32 %v58, 4294901760
    %v434 = vsub.f32 %v58, %v433
    %v435 = vand.u32 %v434, 4294901760
    %v436 = vsub.f32 %v434, %v435
    %v437 = vand.u32 %v436, 4294901760
    %438 = vmatpush1.msra.mxu0 %v437
    %439 = vmatprep.subr.mxu0 0.0
    %v440 = vand.u32 %v59, 4294901760
    %v441 = vsub.f32 %v59, %v440
    %v442 = vand.u32 %v441, 4294901760
    %v443 = vsub.f32 %v441, %v442
    %v444 = vand.u32 %v443, 4294901760
    %445 = vmatpush1.msra.mxu0 %v444
    %446 = vmatprep.subr.mxu0 0.0
    %v447 = vand.u32 %v60, 4294901760
    %v448 = vsub.f32 %v60, %v447
    %v449 = vand.u32 %v448, 4294901760
    %v450 = vsub.f32 %v448, %v449
    %v451 = vand.u32 %v450, 4294901760
    %452 = vmatpush1.msra.mxu0 %v451
    %453 = vmatprep.subr.mxu0 0.0
    %v454 = vand.u32 %v61, 4294901760
    %v455 = vsub.f32 %v61, %v454
    %v456 = vand.u32 %v455, 4294901760
    %v457 = vsub.f32 %v455, %v456
    %v458 = vand.u32 %v457, 4294901760
    %459 = vmatpush1.msra.mxu0 %v458
    %460 = vmatprep.subr.mxu0 0.0
    %v461 = vand.u32 %v62, 4294901760
    %v462 = vsub.f32 %v62, %v461
    %v463 = vand.u32 %v462, 4294901760
    %v464 = vsub.f32 %v462, %v463
    %v465 = vand.u32 %v464, 4294901760
    %466 = vmatpush1.msra.mxu0 %v465
    %467 = vmatprep.subr.mxu0 0.0
    %v468 = vand.u32 %v63, 4294901760
    %v469 = vsub.f32 %v63, %v468
    %v470 = vand.u32 %v469, 4294901760
    %v471 = vsub.f32 %v469, %v470
    %v472 = vand.u32 %v471, 4294901760
    %473 = vmatpush1.msra.mxu0 %v472
    %474 = vmatprep.subr.mxu0 0.0
    %v475 = vand.u32 %v64, 4294901760
    %v476 = vsub.f32 %v64, %v475
    %v477 = vand.u32 %v476, 4294901760
    %v478 = vsub.f32 %v476, %v477
    %v479 = vand.u32 %v478, 4294901760
    %480 = vmatpush1.msra.mxu0 %v479
    %481 = vmatprep.subr.mxu0 0.0
    %v482 = vand.u32 %v65, 4294901760
    %v483 = vsub.f32 %v65, %v482
    %v484 = vand.u32 %v483, 4294901760
    %v485 = vsub.f32 %v483, %v484
    %v486 = vand.u32 %v485, 4294901760
    %487 = vmatpush1.msra.mxu0 %v486
    %488 = vmatprep.subr.mxu0 0.0
    %v489 = vand.u32 %v66, 4294901760
    %v490 = vsub.f32 %v66, %v489
    %v491 = vand.u32 %v490, 4294901760
    %v492 = vsub.f32 %v490, %v491
    %v493 = vand.u32 %v492, 4294901760
    %494 = vmatpush1.msra.mxu0 %v493
    %495 = vmatprep.subr.mxu0 0.0
    %v496 = vand.u32 %v67, 4294901760
    %v497 = vsub.f32 %v67, %v496
    %v498 = vand.u32 %v497, 4294901760
    %v499 = vsub.f32 %v497, %v498
    %v500 = vand.u32 %v499, 4294901760
    %501 = vmatpush1.msra.mxu0 %v500
    %502 = vmatprep.subr.mxu0 0.0
    %v503 = vand.u32 %v68, 4294901760
    %v504 = vsub.f32 %v68, %v503
    %v505 = vand.u32 %v504, 4294901760
    %v506 = vsub.f32 %v504, %v505
    %v507 = vand.u32 %v506, 4294901760
    %508 = vmatpush1.msra.mxu0 %v507
    %509 = vmatprep.subr.mxu0 0.0
    %v510 = vand.u32 %v69, 4294901760
    %v511 = vsub.f32 %v69, %v510
    %v512 = vand.u32 %v511, 4294901760
    %v513 = vsub.f32 %v511, %v512
    %v514 = vand.u32 %v513, 4294901760
    %515 = vmatpush1.msra.mxu0 %v514
    %516 = vmatprep.subr.mxu0 0.0
    %v517 = vand.u32 %v70, 4294901760
    %v518 = vsub.f32 %v70, %v517
    %v519 = vand.u32 %v518, 4294901760
    %v520 = vsub.f32 %v518, %v519
    %v521 = vand.u32 %v520, 4294901760
    %522 = vmatpush1.msra.mxu0 %v521
    %523 = vmatprep.subr.mxu0 0.0
    %v524 = vand.u32 %v71, 4294901760
    %v525 = vsub.f32 %v71, %v524
    %v526 = vand.u32 %v525, 4294901760
    %v527 = vsub.f32 %v525, %v526
    %v528 = vand.u32 %v527, 4294901760
    %529 = vmatpush1.msra.mxu0 %v528
    %530 = vmatprep.subr.mxu0 0.0
    %v531 = vand.u32 %v72, 4294901760
    %v532 = vsub.f32 %v72, %v531
    %v533 = vand.u32 %v532, 4294901760
    %v534 = vsub.f32 %v532, %v533
    %v535 = vand.u32 %v534, 4294901760
    %536 = vmatpush1.msra.mxu0 %v535
    %537 = vmatprep.subr.mxu0 0.0
    %v538 = vand.u32 %v73, 4294901760
    %v539 = vsub.f32 %v73, %v538
    %v540 = vand.u32 %v539, 4294901760
    %v541 = vsub.f32 %v539, %v540
    %v542 = vand.u32 %v541, 4294901760
    %543 = vmatpush1.msra.mxu0 %v542
    %544 = vmatprep.subr.mxu0 0.0
    %v545 = vand.u32 %v74, 4294901760
    %v546 = vsub.f32 %v74, %v545
    %v547 = vand.u32 %v546, 4294901760
    %v548 = vsub.f32 %v546, %v547
    %v549 = vand.u32 %v548, 4294901760
    %550 = vmatpush1.msra.mxu0 %v549
    %v551 = vand.u32 %v188, 4294901760
    %552 = vmatprep.mubr.f32.mxu0 %v551
    %v553 = vand.u32 %v180, 4294901760
    %554 = vmatmul.mubr.f32.gmra.mrb[0].mxu0 %v553
    %v555 = vpop.f32.mrb[0].mxu0
    %v556 = vadd.f32 %v324, %v555
    %v557 = vpop.f32.mrb[0].mxu0
    %558 = vdwg.mxu0
    %559 = vmatprep.subr.mxu0 0.0
    %v560 = vand.u32 %v43, 4294901760
    %v561 = vsub.f32 %v43, %v560
    %562 = vmatpush1.msra.mxu0 %v561
    %563 = vmatprep.subr.mxu0 0.0
    %v564 = vand.u32 %v44, 4294901760
    %v565 = vsub.f32 %v44, %v564
    %566 = vmatpush1.msra.mxu0 %v565
    %567 = vmatprep.subr.mxu0 0.0
    %v568 = vand.u32 %v45, 4294901760
    %v569 = vsub.f32 %v45, %v568
    %570 = vmatpush1.msra.mxu0 %v569
    %571 = vmatprep.subr.mxu0 0.0
    %v572 = vand.u32 %v46, 4294901760
    %v573 = vsub.f32 %v46, %v572
    %574 = vmatpush1.msra.mxu0 %v573
    %575 = vmatprep.subr.mxu0 0.0
    %v576 = vand.u32 %v47, 4294901760
    %v577 = vsub.f32 %v47, %v576
    %578 = vmatpush1.msra.mxu0 %v577
    %579 = vmatprep.subr.mxu0 0.0
    %v580 = vand.u32 %v48, 4294901760
    %v581 = vsub.f32 %v48, %v580
    %582 = vmatpush1.msra.mxu0 %v581
    %583 = vmatprep.subr.mxu0 0.0
    %v584 = vand.u32 %v49, 4294901760
    %v585 = vsub.f32 %v49, %v584
    %586 = vmatpush1.msra.mxu0 %v585
    %587 = vmatprep.subr.mxu0 0.0
    %v588 = vand.u32 %v50, 4294901760
    %v589 = vsub.f32 %v50, %v588
    %590 = vmatpush1.msra.mxu0 %v589
    %591 = vmatprep.subr.mxu0 0.0
    %v592 = vand.u32 %v51, 4294901760
    %v593 = vsub.f32 %v51, %v592
    %594 = vmatpush1.msra.mxu0 %v593
    %595 = vmatprep.subr.mxu0 0.0
    %v596 = vand.u32 %v52, 4294901760
    %v597 = vsub.f32 %v52, %v596
    %598 = vmatpush1.msra.mxu0 %v597
    %599 = vmatprep.subr.mxu0 0.0
    %v600 = vand.u32 %v53, 4294901760
    %v601 = vsub.f32 %v53, %v600
    %602 = vmatpush1.msra.mxu0 %v601
    %603 = vmatprep.subr.mxu0 0.0
    %v604 = vand.u32 %v54, 4294901760
    %v605 = vsub.f32 %v54, %v604
    %606 = vmatpush1.msra.mxu0 %v605
    %607 = vmatprep.subr.mxu0 0.0
    %v608 = vand.u32 %v55, 4294901760
    %v609 = vsub.f32 %v55, %v608
    %610 = vmatpush1.msra.mxu0 %v609
    %611 = vmatprep.subr.mxu0 0.0
    %v612 = vand.u32 %v56, 4294901760
    %v613 = vsub.f32 %v56, %v612
    %614 = vmatpush1.msra.mxu0 %v613
    %615 = vmatprep.subr.mxu0 0.0
    %v616 = vand.u32 %v57, 4294901760
    %v617 = vsub.f32 %v57, %v616
    %618 = vmatpush1.msra.mxu0 %v617
    %619 = vmatprep.subr.mxu0 0.0
    %v620 = vand.u32 %v58, 4294901760
    %v621 = vsub.f32 %v58, %v620
    %622 = vmatpush1.msra.mxu0 %v621
    %623 = vmatprep.subr.mxu0 0.0
    %v624 = vand.u32 %v59, 4294901760
    %v625 = vsub.f32 %v59, %v624
    %626 = vmatpush1.msra.mxu0 %v625
    %627 = vmatprep.subr.mxu0 0.0
    %v628 = vand.u32 %v60, 4294901760
    %v629 = vsub.f32 %v60, %v628
    %630 = vmatpush1.msra.mxu0 %v629
    %631 = vmatprep.subr.mxu0 0.0
    %v632 = vand.u32 %v61, 4294901760
    %v633 = vsub.f32 %v61, %v632
    %634 = vmatpush1.msra.mxu0 %v633
    %635 = vmatprep.subr.mxu0 0.0
    %v636 = vand.u32 %v62, 4294901760
    %v637 = vsub.f32 %v62, %v636
    %638 = vmatpush1.msra.mxu0 %v637
    %639 = vmatprep.subr.mxu0 0.0
    %v640 = vand.u32 %v63, 4294901760
    %v641 = vsub.f32 %v63, %v640
    %642 = vmatpush1.msra.mxu0 %v641
    %643 = vmatprep.subr.mxu0 0.0
    %v644 = vand.u32 %v64, 4294901760
    %v645 = vsub.f32 %v64, %v644
    %646 = vmatpush1.msra.mxu0 %v645
    %647 = vmatprep.subr.mxu0 0.0
    %v648 = vand.u32 %v65, 4294901760
    %v649 = vsub.f32 %v65, %v648
    %650 = vmatpush1.msra.mxu0 %v649
    %651 = vmatprep.subr.mxu0 0.0
    %v652 = vand.u32 %v66, 4294901760
    %v653 = vsub.f32 %v66, %v652
    %654 = vmatpush1.msra.mxu0 %v653
    %655 = vmatprep.subr.mxu0 0.0
    %v656 = vand.u32 %v67, 4294901760
    %v657 = vsub.f32 %v67, %v656
    %658 = vmatpush1.msra.mxu0 %v657
    %659 = vmatprep.subr.mxu0 0.0
    %v660 = vand.u32 %v68, 4294901760
    %v661 = vsub.f32 %v68, %v660
    %662 = vmatpush1.msra.mxu0 %v661
    %663 = vmatprep.subr.mxu0 0.0
    %v664 = vand.u32 %v69, 4294901760
    %v665 = vsub.f32 %v69, %v664
    %666 = vmatpush1.msra.mxu0 %v665
    %667 = vmatprep.subr.mxu0 0.0
    %v668 = vand.u32 %v70, 4294901760
    %v669 = vsub.f32 %v70, %v668
    %670 = vmatpush1.msra.mxu0 %v669
    %671 = vmatprep.subr.mxu0 0.0
    %v672 = vand.u32 %v71, 4294901760
    %v673 = vsub.f32 %v71, %v672
    %674 = vmatpush1.msra.mxu0 %v673
    %675 = vmatprep.subr.mxu0 0.0
    %v676 = vand.u32 %v72, 4294901760
    %v677 = vsub.f32 %v72, %v676
    %678 = vmatpush1.msra.mxu0 %v677
    %679 = vmatprep.subr.mxu0 0.0
    %v680 = vand.u32 %v73, 4294901760
    %v681 = vsub.f32 %v73, %v680
    %682 = vmatpush1.msra.mxu0 %v681
    %683 = vmatprep.subr.mxu0 0.0
    %v684 = vand.u32 %v74, 4294901760
    %v685 = vsub.f32 %v74, %v684
    %686 = vmatpush1.msra.mxu0 %v685
    %v687 = vand.u32 %v188, 4294901760
    %v688 = vsub.f32 %v188, %v687
    %689 = vmatprep.mubr.f32.mxu0 %v688
    %v690 = vand.u32 %v180, 4294901760
    %v691 = vsub.f32 %v180, %v690
    %692 = vmatmul.mubr.f32.gmra.mrb[0].mxu0 %v691
    %v693 = vpop.f32.mrb[0].mxu0
    %v694 = vadd.f32 %v556, %v693
    %v695 = vpop.f32.mrb[0].mxu0
    %696 = vdwg.mxu0
    %697 = vmatprep.subr.mxu0 0.0
    %v698 = vand.u32 %v43, 4294901760
    %699 = vmatpush1.msra.mxu0 %v698
    %700 = vmatprep.subr.mxu0 0.0
    %v701 = vand.u32 %v44, 4294901760
    %702 = vmatpush1.msra.mxu0 %v701
    %703 = vmatprep.subr.mxu0 0.0
    %v704 = vand.u32 %v45, 4294901760
    %705 = vmatpush1.msra.mxu0 %v704
    %706 = vmatprep.subr.mxu0 0.0
    %v707 = vand.u32 %v46, 4294901760
    %708 = vmatpush1.msra.mxu0 %v707
    %709 = vmatprep.subr.mxu0 0.0
    %v710 = vand.u32 %v47, 4294901760
    %711 = vmatpush1.msra.mxu0 %v710
    %712 = vmatprep.subr.mxu0 0.0
    %v713 = vand.u32 %v48, 4294901760
    %714 = vmatpush1.msra.mxu0 %v713
    %715 = vmatprep.subr.mxu0 0.0
    %v716 = vand.u32 %v49, 4294901760
    %717 = vmatpush1.msra.mxu0 %v716
    %718 = vmatprep.subr.mxu0 0.0
    %v719 = vand.u32 %v50, 4294901760
    %720 = vmatpush1.msra.mxu0 %v719
    %721 = vmatprep.subr.mxu0 0.0
    %v722 = vand.u32 %v51, 4294901760
    %723 = vmatpush1.msra.mxu0 %v722
    %724 = vmatprep.subr.mxu0 0.0
    %v725 = vand.u32 %v52, 4294901760
    %726 = vmatpush1.msra.mxu0 %v725
    %727 = vmatprep.subr.mxu0 0.0
    %v728 = vand.u32 %v53, 4294901760
    %729 = vmatpush1.msra.mxu0 %v728
    %730 = vmatprep.subr.mxu0 0.0
    %v731 = vand.u32 %v54, 4294901760
    %732 = vmatpush1.msra.mxu0 %v731
    %733 = vmatprep.subr.mxu0 0.0
    %v734 = vand.u32 %v55, 4294901760
    %735 = vmatpush1.msra.mxu0 %v734
    %736 = vmatprep.subr.mxu0 0.0
    %v737 = vand.u32 %v56, 4294901760
    %738 = vmatpush1.msra.mxu0 %v737
    %739 = vmatprep.subr.mxu0 0.0
    %v740 = vand.u32 %v57, 4294901760
    %741 = vmatpush1.msra.mxu0 %v740
    %742 = vmatprep.subr.mxu0 0.0
    %v743 = vand.u32 %v58, 4294901760
    %744 = vmatpush1.msra.mxu0 %v743
    %745 = vmatprep.subr.mxu0 0.0
    %v746 = vand.u32 %v59, 4294901760
    %747 = vmatpush1.msra.mxu0 %v746
    %748 = vmatprep.subr.mxu0 0.0
    %v749 = vand.u32 %v60, 4294901760
    %750 = vmatpush1.msra.mxu0 %v749
    %751 = vmatprep.subr.mxu0 0.0
    %v752 = vand.u32 %v61, 4294901760
    %753 = vmatpush1.msra.mxu0 %v752
    %754 = vmatprep.subr.mxu0 0.0
    %v755 = vand.u32 %v62, 4294901760
    %756 = vmatpush1.msra.mxu0 %v755
    %757 = vmatprep.subr.mxu0 0.0
    %v758 = vand.u32 %v63, 4294901760
    %759 = vmatpush1.msra.mxu0 %v758
    %760 = vmatprep.subr.mxu0 0.0
    %v761 = vand.u32 %v64, 4294901760
    %762 = vmatpush1.msra.mxu0 %v761
    %763 = vmatprep.subr.mxu0 0.0
    %v764 = vand.u32 %v65, 4294901760
    %765 = vmatpush1.msra.mxu0 %v764
    %766 = vmatprep.subr.mxu0 0.0
    %v767 = vand.u32 %v66, 4294901760
    %768 = vmatpush1.msra.mxu0 %v767
    %769 = vmatprep.subr.mxu0 0.0
    %v770 = vand.u32 %v67, 4294901760
    %771 = vmatpush1.msra.mxu0 %v770
    %772 = vmatprep.subr.mxu0 0.0
    %v773 = vand.u32 %v68, 4294901760
    %774 = vmatpush1.msra.mxu0 %v773
    %775 = vmatprep.subr.mxu0 0.0
    %v776 = vand.u32 %v69, 4294901760
    %777 = vmatpush1.msra.mxu0 %v776
    %778 = vmatprep.subr.mxu0 0.0
    %v779 = vand.u32 %v70, 4294901760
    %780 = vmatpush1.msra.mxu0 %v779
    %781 = vmatprep.subr.mxu0 0.0
    %v782 = vand.u32 %v71, 4294901760
    %783 = vmatpush1.msra.mxu0 %v782
    %784 = vmatprep.subr.mxu0 0.0
    %v785 = vand.u32 %v72, 4294901760
    %786 = vmatpush1.msra.mxu0 %v785
    %787 = vmatprep.subr.mxu0 0.0
    %v788 = vand.u32 %v73, 4294901760
    %789 = vmatpush1.msra.mxu0 %v788
    %790 = vmatprep.subr.mxu0 0.0
    %v791 = vand.u32 %v74, 4294901760
    %792 = vmatpush1.msra.mxu0 %v791
    %v793 = vand.u32 %v188, 4294901760
    %v794 = vsub.f32 %v188, %v793
    %v795 = vand.u32 %v794, 4294901760
    %796 = vmatprep.mubr.f32.mxu0 %v795
    %v797 = vand.u32 %v180, 4294901760
    %v798 = vsub.f32 %v180, %v797
    %v799 = vand.u32 %v798, 4294901760
    %800 = vmatmul.mubr.f32.gmra.mrb[0].mxu0 %v799
    %v801 = vpop.f32.mrb[0].mxu0
    %v802 = vadd.f32 %v694, %v801
    %v803 = vpop.f32.mrb[0].mxu0
    %804 = vdwg.mxu0
    %805 = vmatprep.subr.mxu0 0.0
    %v806 = vand.u32 %v43, 4294901760
    %v807 = vsub.f32 %v43, %v806
    %v808 = vand.u32 %v807, 4294901760
    %809 = vmatpush1.msra.mxu0 %v808
    %810 = vmatprep.subr.mxu0 0.0
    %v811 = vand.u32 %v44, 4294901760
    %v812 = vsub.f32 %v44, %v811
    %v813 = vand.u32 %v812, 4294901760
    %814 = vmatpush1.msra.mxu0 %v813
    %815 = vmatprep.subr.mxu0 0.0
    %v816 = vand.u32 %v45, 4294901760
    %v817 = vsub.f32 %v45, %v816
    %v818 = vand.u32 %v817, 4294901760
    %819 = vmatpush1.msra.mxu0 %v818
    %820 = vmatprep.subr.mxu0 0.0
    %v821 = vand.u32 %v46, 4294901760
    %v822 = vsub.f32 %v46, %v821
    %v823 = vand.u32 %v822, 4294901760
    %824 = vmatpush1.msra.mxu0 %v823
    %825 = vmatprep.subr.mxu0 0.0
    %v826 = vand.u32 %v47, 4294901760
    %v827 = vsub.f32 %v47, %v826
    %v828 = vand.u32 %v827, 4294901760
    %829 = vmatpush1.msra.mxu0 %v828
    %830 = vmatprep.subr.mxu0 0.0
    %v831 = vand.u32 %v48, 4294901760
    %v832 = vsub.f32 %v48, %v831
    %v833 = vand.u32 %v832, 4294901760
    %834 = vmatpush1.msra.mxu0 %v833
    %835 = vmatprep.subr.mxu0 0.0
    %v836 = vand.u32 %v49, 4294901760
    %v837 = vsub.f32 %v49, %v836
    %v838 = vand.u32 %v837, 4294901760
    %839 = vmatpush1.msra.mxu0 %v838
    %840 = vmatprep.subr.mxu0 0.0
    %v841 = vand.u32 %v50, 4294901760
    %v842 = vsub.f32 %v50, %v841
    %v843 = vand.u32 %v842, 4294901760
    %844 = vmatpush1.msra.mxu0 %v843
    %845 = vmatprep.subr.mxu0 0.0
    %v846 = vand.u32 %v51, 4294901760
    %v847 = vsub.f32 %v51, %v846
    %v848 = vand.u32 %v847, 4294901760
    %849 = vmatpush1.msra.mxu0 %v848
    %850 = vmatprep.subr.mxu0 0.0
    %v851 = vand.u32 %v52, 4294901760
    %v852 = vsub.f32 %v52, %v851
    %v853 = vand.u32 %v852, 4294901760
    %854 = vmatpush1.msra.mxu0 %v853
    %855 = vmatprep.subr.mxu0 0.0
    %v856 = vand.u32 %v53, 4294901760
    %v857 = vsub.f32 %v53, %v856
    %v858 = vand.u32 %v857, 4294901760
    %859 = vmatpush1.msra.mxu0 %v858
    %860 = vmatprep.subr.mxu0 0.0
    %v861 = vand.u32 %v54, 4294901760
    %v862 = vsub.f32 %v54, %v861
    %v863 = vand.u32 %v862, 4294901760
    %864 = vmatpush1.msra.mxu0 %v863
    %865 = vmatprep.subr.mxu0 0.0
    %v866 = vand.u32 %v55, 4294901760
    %v867 = vsub.f32 %v55, %v866
    %v868 = vand.u32 %v867, 4294901760
    %869 = vmatpush1.msra.mxu0 %v868
    %870 = vmatprep.subr.mxu0 0.0
    %v871 = vand.u32 %v56, 4294901760
    %v872 = vsub.f32 %v56, %v871
    %v873 = vand.u32 %v872, 4294901760
    %874 = vmatpush1.msra.mxu0 %v873
    %875 = vmatprep.subr.mxu0 0.0
    %v876 = vand.u32 %v57, 4294901760
    %v877 = vsub.f32 %v57, %v876
    %v878 = vand.u32 %v877, 4294901760
    %879 = vmatpush1.msra.mxu0 %v878
    %880 = vmatprep.subr.mxu0 0.0
    %v881 = vand.u32 %v58, 4294901760
    %v882 = vsub.f32 %v58, %v881
    %v883 = vand.u32 %v882, 4294901760
    %884 = vmatpush1.msra.mxu0 %v883
    %885 = vmatprep.subr.mxu0 0.0
    %v886 = vand.u32 %v59, 4294901760
    %v887 = vsub.f32 %v59, %v886
    %v888 = vand.u32 %v887, 4294901760
    %889 = vmatpush1.msra.mxu0 %v888
    %890 = vmatprep.subr.mxu0 0.0
    %v891 = vand.u32 %v60, 4294901760
    %v892 = vsub.f32 %v60, %v891
    %v893 = vand.u32 %v892, 4294901760
    %894 = vmatpush1.msra.mxu0 %v893
    %895 = vmatprep.subr.mxu0 0.0
    %v896 = vand.u32 %v61, 4294901760
    %v897 = vsub.f32 %v61, %v896
    %v898 = vand.u32 %v897, 4294901760
    %899 = vmatpush1.msra.mxu0 %v898
    %900 = vmatprep.subr.mxu0 0.0
    %v901 = vand.u32 %v62, 4294901760
    %v902 = vsub.f32 %v62, %v901
    %v903 = vand.u32 %v902, 4294901760
    %904 = vmatpush1.msra.mxu0 %v903
    %905 = vmatprep.subr.mxu0 0.0
    %v906 = vand.u32 %v63, 4294901760
    %v907 = vsub.f32 %v63, %v906
    %v908 = vand.u32 %v907, 4294901760
    %909 = vmatpush1.msra.mxu0 %v908
    %910 = vmatprep.subr.mxu0 0.0
    %v911 = vand.u32 %v64, 4294901760
    %v912 = vsub.f32 %v64, %v911
    %v913 = vand.u32 %v912, 4294901760
    %914 = vmatpush1.msra.mxu0 %v913
    %915 = vmatprep.subr.mxu0 0.0
    %v916 = vand.u32 %v65, 4294901760
    %v917 = vsub.f32 %v65, %v916
    %v918 = vand.u32 %v917, 4294901760
    %919 = vmatpush1.msra.mxu0 %v918
    %920 = vmatprep.subr.mxu0 0.0
    %v921 = vand.u32 %v66, 4294901760
    %v922 = vsub.f32 %v66, %v921
    %v923 = vand.u32 %v922, 4294901760
    %924 = vmatpush1.msra.mxu0 %v923
    %925 = vmatprep.subr.mxu0 0.0
    %v926 = vand.u32 %v67, 4294901760
    %v927 = vsub.f32 %v67, %v926
    %v928 = vand.u32 %v927, 4294901760
    %929 = vmatpush1.msra.mxu0 %v928
    %930 = vmatprep.subr.mxu0 0.0
    %v931 = vand.u32 %v68, 4294901760
    %v932 = vsub.f32 %v68, %v931
    %v933 = vand.u32 %v932, 4294901760
    %934 = vmatpush1.msra.mxu0 %v933
    %935 = vmatprep.subr.mxu0 0.0
    %v936 = vand.u32 %v69, 4294901760
    %v937 = vsub.f32 %v69, %v936
    %v938 = vand.u32 %v937, 4294901760
    %939 = vmatpush1.msra.mxu0 %v938
    %940 = vmatprep.subr.mxu0 0.0
    %v941 = vand.u32 %v70, 4294901760
    %v942 = vsub.f32 %v70, %v941
    %v943 = vand.u32 %v942, 4294901760
    %944 = vmatpush1.msra.mxu0 %v943
    %945 = vmatprep.subr.mxu0 0.0
    %v946 = vand.u32 %v71, 4294901760
    %v947 = vsub.f32 %v71, %v946
    %v948 = vand.u32 %v947, 4294901760
    %949 = vmatpush1.msra.mxu0 %v948
    %950 = vmatprep.subr.mxu0 0.0
    %v951 = vand.u32 %v72, 4294901760
    %v952 = vsub.f32 %v72, %v951
    %v953 = vand.u32 %v952, 4294901760
    %954 = vmatpush1.msra.mxu0 %v953
    %955 = vmatprep.subr.mxu0 0.0
    %v956 = vand.u32 %v73, 4294901760
    %v957 = vsub.f32 %v73, %v956
    %v958 = vand.u32 %v957, 4294901760
    %959 = vmatpush1.msra.mxu0 %v958
    %960 = vmatprep.subr.mxu0 0.0
    %v961 = vand.u32 %v74, 4294901760
    %v962 = vsub.f32 %v74, %v961
    %v963 = vand.u32 %v962, 4294901760
    %964 = vmatpush1.msra.mxu0 %v963
    %v965 = vand.u32 %v188, 4294901760
    %966 = vmatprep.mubr.f32.mxu0 %v965
    %v967 = vand.u32 %v180, 4294901760
    %968 = vmatmul.mubr.f32.gmra.mrb[0].mxu0 %v967
    %v969 = vpop.f32.mrb[0].mxu0
    %v970 = vadd.f32 %v802, %v969
    %v971 = vpop.f32.mrb[0].mxu0
    %972 = vdwg.mxu0
    %973 = vmatprep.subr.mxu0 0.0
    %v974 = vand.u32 %v43, 4294901760
    %975 = vmatpush1.msra.mxu0 %v974
    %976 = vmatprep.subr.mxu0 0.0
    %v977 = vand.u32 %v44, 4294901760
    %978 = vmatpush1.msra.mxu0 %v977
    %979 = vmatprep.subr.mxu0 0.0
    %v980 = vand.u32 %v45, 4294901760
    %981 = vmatpush1.msra.mxu0 %v980
    %982 = vmatprep.subr.mxu0 0.0
    %v983 = vand.u32 %v46, 4294901760
    %984 = vmatpush1.msra.mxu0 %v983
    %985 = vmatprep.subr.mxu0 0.0
    %v986 = vand.u32 %v47, 4294901760
    %987 = vmatpush1.msra.mxu0 %v986
    %988 = vmatprep.subr.mxu0 0.0
    %v989 = vand.u32 %v48, 4294901760
    %990 = vmatpush1.msra.mxu0 %v989
    %991 = vmatprep.subr.mxu0 0.0
    %v992 = vand.u32 %v49, 4294901760
    %993 = vmatpush1.msra.mxu0 %v992
    %994 = vmatprep.subr.mxu0 0.0
    %v995 = vand.u32 %v50, 4294901760
    %996 = vmatpush1.msra.mxu0 %v995
    %997 = vmatprep.subr.mxu0 0.0
    %v998 = vand.u32 %v51, 4294901760
    %999 = vmatpush1.msra.mxu0 %v998
    %1000 = vmatprep.subr.mxu0 0.0
    %v1001 = vand.u32 %v52, 4294901760
    %1002 = vmatpush1.msra.mxu0 %v1001
    %1003 = vmatprep.subr.mxu0 0.0
    %v1004 = vand.u32 %v53, 4294901760
    %1005 = vmatpush1.msra.mxu0 %v1004
    %1006 = vmatprep.subr.mxu0 0.0
    %v1007 = vand.u32 %v54, 4294901760
    %1008 = vmatpush1.msra.mxu0 %v1007
    %1009 = vmatprep.subr.mxu0 0.0
    %v1010 = vand.u32 %v55, 4294901760
    %1011 = vmatpush1.msra.mxu0 %v1010
    %1012 = vmatprep.subr.mxu0 0.0
    %v1013 = vand.u32 %v56, 4294901760
    %1014 = vmatpush1.msra.mxu0 %v1013
    %1015 = vmatprep.subr.mxu0 0.0
    %v1016 = vand.u32 %v57, 4294901760
    %1017 = vmatpush1.msra.mxu0 %v1016
    %1018 = vmatprep.subr.mxu0 0.0
    %v1019 = vand.u32 %v58, 4294901760
    %1020 = vmatpush1.msra.mxu0 %v1019
    %1021 = vmatprep.subr.mxu0 0.0
    %v1022 = vand.u32 %v59, 4294901760
    %1023 = vmatpush1.msra.mxu0 %v1022
    %1024 = vmatprep.subr.mxu0 0.0
    %v1025 = vand.u32 %v60, 4294901760
    %1026 = vmatpush1.msra.mxu0 %v1025
    %1027 = vmatprep.subr.mxu0 0.0
    %v1028 = vand.u32 %v61, 4294901760
    %1029 = vmatpush1.msra.mxu0 %v1028
    %1030 = vmatprep.subr.mxu0 0.0
    %v1031 = vand.u32 %v62, 4294901760
    %1032 = vmatpush1.msra.mxu0 %v1031
    %1033 = vmatprep.subr.mxu0 0.0
    %v1034 = vand.u32 %v63, 4294901760
    %1035 = vmatpush1.msra.mxu0 %v1034
    %1036 = vmatprep.subr.mxu0 0.0
    %v1037 = vand.u32 %v64, 4294901760
    %1038 = vmatpush1.msra.mxu0 %v1037
    %1039 = vmatprep.subr.mxu0 0.0
    %v1040 = vand.u32 %v65, 4294901760
    %1041 = vmatpush1.msra.mxu0 %v1040
    %1042 = vmatprep.subr.mxu0 0.0
    %v1043 = vand.u32 %v66, 4294901760
    %1044 = vmatpush1.msra.mxu0 %v1043
    %1045 = vmatprep.subr.mxu0 0.0
    %v1046 = vand.u32 %v67, 4294901760
    %1047 = vmatpush1.msra.mxu0 %v1046
    %1048 = vmatprep.subr.mxu0 0.0
    %v1049 = vand.u32 %v68, 4294901760
    %1050 = vmatpush1.msra.mxu0 %v1049
    %1051 = vmatprep.subr.mxu0 0.0
    %v1052 = vand.u32 %v69, 4294901760
    %1053 = vmatpush1.msra.mxu0 %v1052
    %1054 = vmatprep.subr.mxu0 0.0
    %v1055 = vand.u32 %v70, 4294901760
    %1056 = vmatpush1.msra.mxu0 %v1055
    %1057 = vmatprep.subr.mxu0 0.0
    %v1058 = vand.u32 %v71, 4294901760
    %1059 = vmatpush1.msra.mxu0 %v1058
    %1060 = vmatprep.subr.mxu0 0.0
    %v1061 = vand.u32 %v72, 4294901760
    %1062 = vmatpush1.msra.mxu0 %v1061
    %1063 = vmatprep.subr.mxu0 0.0
    %v1064 = vand.u32 %v73, 4294901760
    %1065 = vmatpush1.msra.mxu0 %v1064
    %1066 = vmatprep.subr.mxu0 0.0
    %v1067 = vand.u32 %v74, 4294901760
    %1068 = vmatpush1.msra.mxu0 %v1067
    %v1069 = vand.u32 %v188, 4294901760
    %1070 = vmatprep.mubr.f32.mxu0 %v1069
    %v1071 = vand.u32 %v180, 4294901760
    %1072 = vmatmul.mubr.f32.gmra.mrb[0].mxu0 %v1071
    %v1073 = vpop.f32.mrb[0].mxu0
    %v1074 = vadd.f32 %v970, %v1073
    %v1075 = vpop.f32.mrb[0].mxu0
    %1076 = vdwg.mxu0
    %1077 = vmatprep.subr.mxu0 0.0
    %v1078 = vand.u32 %v75, 4294901760
    %1079 = vmatpush1.msra.mxu0 %v1078
    %1080 = vmatprep.subr.mxu0 0.0
    %v1081 = vand.u32 %v76, 4294901760
    %1082 = vmatpush1.msra.mxu0 %v1081
    %1083 = vmatprep.subr.mxu0 0.0
    %v1084 = vand.u32 %v77, 4294901760
    %1085 = vmatpush1.msra.mxu0 %v1084
    %1086 = vmatprep.subr.mxu0 0.0
    %v1087 = vand.u32 %v78, 4294901760
    %1088 = vmatpush1.msra.mxu0 %v1087
    %1089 = vmatprep.subr.mxu0 0.0
    %v1090 = vand.u32 %v79, 4294901760
    %1091 = vmatpush1.msra.mxu0 %v1090
    %1092 = vmatprep.subr.mxu0 0.0
    %v1093 = vand.u32 %v80, 4294901760
    %1094 = vmatpush1.msra.mxu0 %v1093
    %1095 = vmatprep.subr.mxu0 0.0
    %v1096 = vand.u32 %v81, 4294901760
    %1097 = vmatpush1.msra.mxu0 %v1096
    %1098 = vmatprep.subr.mxu0 0.0
    %v1099 = vand.u32 %v82, 4294901760
    %1100 = vmatpush1.msra.mxu0 %v1099
    %1101 = vmatprep.subr.mxu0 0.0
    %v1102 = vand.u32 %v83, 4294901760
    %1103 = vmatpush1.msra.mxu0 %v1102
    %1104 = vmatprep.subr.mxu0 0.0
    %v1105 = vand.u32 %v84, 4294901760
    %1106 = vmatpush1.msra.mxu0 %v1105
    %1107 = vmatprep.subr.mxu0 0.0
    %v1108 = vand.u32 %v85, 4294901760
    %1109 = vmatpush1.msra.mxu0 %v1108
    %1110 = vmatprep.subr.mxu0 0.0
    %v1111 = vand.u32 %v86, 4294901760
    %1112 = vmatpush1.msra.mxu0 %v1111
    %1113 = vmatprep.subr.mxu0 0.0
    %v1114 = vand.u32 %v87, 4294901760
    %1115 = vmatpush1.msra.mxu0 %v1114
    %1116 = vmatprep.subr.mxu0 0.0
    %v1117 = vand.u32 %v88, 4294901760
    %1118 = vmatpush1.msra.mxu0 %v1117
    %1119 = vmatprep.subr.mxu0 0.0
    %v1120 = vand.u32 %v89, 4294901760
    %1121 = vmatpush1.msra.mxu0 %v1120
    %1122 = vmatprep.subr.mxu0 0.0
    %v1123 = vand.u32 %v90, 4294901760
    %1124 = vmatpush1.msra.mxu0 %v1123
    %1125 = vmatprep.subr.mxu0 0.0
    %v1126 = vand.u32 %v91, 4294901760
    %1127 = vmatpush1.msra.mxu0 %v1126
    %1128 = vmatprep.subr.mxu0 0.0
    %v1129 = vand.u32 %v92, 4294901760
    %1130 = vmatpush1.msra.mxu0 %v1129
    %1131 = vmatprep.subr.mxu0 0.0
    %v1132 = vand.u32 %v93, 4294901760
    %1133 = vmatpush1.msra.mxu0 %v1132
    %1134 = vmatprep.subr.mxu0 0.0
    %v1135 = vand.u32 %v94, 4294901760
    %1136 = vmatpush1.msra.mxu0 %v1135
    %1137 = vmatprep.subr.mxu0 0.0
    %v1138 = vand.u32 %v95, 4294901760
    %1139 = vmatpush1.msra.mxu0 %v1138
    %1140 = vmatprep.subr.mxu0 0.0
    %v1141 = vand.u32 %v96, 4294901760
    %1142 = vmatpush1.msra.mxu0 %v1141
    %1143 = vmatprep.subr.mxu0 0.0
    %v1144 = vand.u32 %v97, 4294901760
    %1145 = vmatpush1.msra.mxu0 %v1144
    %1146 = vmatprep.subr.mxu0 0.0
    %v1147 = vand.u32 %v98, 4294901760
    %1148 = vmatpush1.msra.mxu0 %v1147
    %1149 = vmatprep.subr.mxu0 0.0
    %v1150 = vand.u32 %v99, 4294901760
    %1151 = vmatpush1.msra.mxu0 %v1150
    %1152 = vmatprep.subr.mxu0 0.0
    %v1153 = vand.u32 %v100, 4294901760
    %1154 = vmatpush1.msra.mxu0 %v1153
    %1155 = vmatprep.subr.mxu0 0.0
    %v1156 = vand.u32 %v101, 4294901760
    %1157 = vmatpush1.msra.mxu0 %v1156
    %1158 = vmatprep.subr.mxu0 0.0
    %v1159 = vand.u32 %v102, 4294901760
    %1160 = vmatpush1.msra.mxu0 %v1159
    %1161 = vmatprep.subr.mxu0 0.0
    %v1162 = vand.u32 %v103, 4294901760
    %1163 = vmatpush1.msra.mxu0 %v1162
    %1164 = vmatprep.subr.mxu0 0.0
    %v1165 = vand.u32 %v104, 4294901760
    %1166 = vmatpush1.msra.mxu0 %v1165
    %1167 = vmatprep.subr.mxu0 0.0
    %v1168 = vand.u32 %v105, 4294901760
    %1169 = vmatpush1.msra.mxu0 %v1168
    %1170 = vmatprep.subr.mxu0 0.0
    %v1171 = vand.u32 %v106, 4294901760
    %1172 = vmatpush1.msra.mxu0 %v1171
    %v1173 = vand.u32 %v189, 4294901760
    %v1174 = vsub.f32 %v189, %v1173
    %v1175 = vand.u32 %v1174, 4294901760
    %v1176 = vsub.f32 %v1174, %v1175
    %v1177 = vand.u32 %v1176, 4294901760
    %1178 = vmatprep.mubr.f32.mxu0 %v1177
    %v1179 = vand.u32 %v187, 4294901760
    %v1180 = vsub.f32 %v187, %v1179
    %v1181 = vand.u32 %v1180, 4294901760
    %v1182 = vsub.f32 %v1180, %v1181
    %v1183 = vand.u32 %v1182, 4294901760
    %1184 = vmatmul.mubr.f32.gmra.mrb[0].mxu0 %v1183
    %v1185 = vpop.f32.mrb[0].mxu0
    %v1186 = vadd.f32 %v1074, %v1185
    %v1187 = vpop.f32.mrb[0].mxu0
    %1188 = vdwg.mxu0
    %1189 = vmatprep.subr.mxu0 0.0
    %v1190 = vand.u32 %v75, 4294901760
    %v1191 = vsub.f32 %v75, %v1190
    %v1192 = vand.u32 %v1191, 4294901760
    %v1193 = vsub.f32 %v1191, %v1192
    %v1194 = vand.u32 %v1193, 4294901760
    %1195 = vmatpush1.msra.mxu0 %v1194
    %1196 = vmatprep.subr.mxu0 0.0
    %v1197 = vand.u32 %v76, 4294901760
    %v1198 = vsub.f32 %v76, %v1197
    %v1199 = vand.u32 %v1198, 4294901760
    %v1200 = vsub.f32 %v1198, %v1199
    %v1201 = vand.u32 %v1200, 4294901760
    %1202 = vmatpush1.msra.mxu0 %v1201
    %1203 = vmatprep.subr.mxu0 0.0
    %v1204 = vand.u32 %v77, 4294901760
    %v1205 = vsub.f32 %v77, %v1204
    %v1206 = vand.u32 %v1205, 4294901760
    %v1207 = vsub.f32 %v1205, %v1206
    %v1208 = vand.u32 %v1207, 4294901760
    %1209 = vmatpush1.msra.mxu0 %v1208
    %1210 = vmatprep.subr.mxu0 0.0
    %v1211 = vand.u32 %v78, 4294901760
    %v1212 = vsub.f32 %v78, %v1211
    %v1213 = vand.u32 %v1212, 4294901760
    %v1214 = vsub.f32 %v1212, %v1213
    %v1215 = vand.u32 %v1214, 4294901760
    %1216 = vmatpush1.msra.mxu0 %v1215
    %1217 = vmatprep.subr.mxu0 0.0
    %v1218 = vand.u32 %v79, 4294901760
    %v1219 = vsub.f32 %v79, %v1218
    %v1220 = vand.u32 %v1219, 4294901760
    %v1221 = vsub.f32 %v1219, %v1220
    %v1222 = vand.u32 %v1221, 4294901760
    %1223 = vmatpush1.msra.mxu0 %v1222
    %1224 = vmatprep.subr.mxu0 0.0
    %v1225 = vand.u32 %v80, 4294901760
    %v1226 = vsub.f32 %v80, %v1225
    %v1227 = vand.u32 %v1226, 4294901760
    %v1228 = vsub.f32 %v1226, %v1227
    %v1229 = vand.u32 %v1228, 4294901760
    %1230 = vmatpush1.msra.mxu0 %v1229
    %1231 = vmatprep.subr.mxu0 0.0
    %v1232 = vand.u32 %v81, 4294901760
    %v1233 = vsub.f32 %v81, %v1232
    %v1234 = vand.u32 %v1233, 4294901760
    %v1235 = vsub.f32 %v1233, %v1234
    %v1236 = vand.u32 %v1235, 4294901760
    %1237 = vmatpush1.msra.mxu0 %v1236
    %1238 = vmatprep.subr.mxu0 0.0
    %v1239 = vand.u32 %v82, 4294901760
    %v1240 = vsub.f32 %v82, %v1239
    %v1241 = vand.u32 %v1240, 4294901760
    %v1242 = vsub.f32 %v1240, %v1241
    %v1243 = vand.u32 %v1242, 4294901760
    %1244 = vmatpush1.msra.mxu0 %v1243
    %1245 = vmatprep.subr.mxu0 0.0
    %v1246 = vand.u32 %v83, 4294901760
    %v1247 = vsub.f32 %v83, %v1246
    %v1248 = vand.u32 %v1247, 4294901760
    %v1249 = vsub.f32 %v1247, %v1248
    %v1250 = vand.u32 %v1249, 4294901760
    %1251 = vmatpush1.msra.mxu0 %v1250
    %1252 = vmatprep.subr.mxu0 0.0
    %v1253 = vand.u32 %v84, 4294901760
    %v1254 = vsub.f32 %v84, %v1253
    %v1255 = vand.u32 %v1254, 4294901760
    %v1256 = vsub.f32 %v1254, %v1255
    %v1257 = vand.u32 %v1256, 4294901760
    %1258 = vmatpush1.msra.mxu0 %v1257
    %1259 = vmatprep.subr.mxu0 0.0
    %v1260 = vand.u32 %v85, 4294901760
    %v1261 = vsub.f32 %v85, %v1260
    %v1262 = vand.u32 %v1261, 4294901760
    %v1263 = vsub.f32 %v1261, %v1262
    %v1264 = vand.u32 %v1263, 4294901760
    %1265 = vmatpush1.msra.mxu0 %v1264
    %1266 = vmatprep.subr.mxu0 0.0
    %v1267 = vand.u32 %v86, 4294901760
    %v1268 = vsub.f32 %v86, %v1267
    %v1269 = vand.u32 %v1268, 4294901760
    %v1270 = vsub.f32 %v1268, %v1269
    %v1271 = vand.u32 %v1270, 4294901760
    %1272 = vmatpush1.msra.mxu0 %v1271
    %1273 = vmatprep.subr.mxu0 0.0
    %v1274 = vand.u32 %v87, 4294901760
    %v1275 = vsub.f32 %v87, %v1274
    %v1276 = vand.u32 %v1275, 4294901760
    %v1277 = vsub.f32 %v1275, %v1276
    %v1278 = vand.u32 %v1277, 4294901760
    %1279 = vmatpush1.msra.mxu0 %v1278
    %1280 = vmatprep.subr.mxu0 0.0
    %v1281 = vand.u32 %v88, 4294901760
    %v1282 = vsub.f32 %v88, %v1281
    %v1283 = vand.u32 %v1282, 4294901760
    %v1284 = vsub.f32 %v1282, %v1283
    %v1285 = vand.u32 %v1284, 4294901760
    %1286 = vmatpush1.msra.mxu0 %v1285
    %1287 = vmatprep.subr.mxu0 0.0
    %v1288 = vand.u32 %v89, 4294901760
    %v1289 = vsub.f32 %v89, %v1288
    %v1290 = vand.u32 %v1289, 4294901760
    %v1291 = vsub.f32 %v1289, %v1290
    %v1292 = vand.u32 %v1291, 4294901760
    %1293 = vmatpush1.msra.mxu0 %v1292
    %1294 = vmatprep.subr.mxu0 0.0
    %v1295 = vand.u32 %v90, 4294901760
    %v1296 = vsub.f32 %v90, %v1295
    %v1297 = vand.u32 %v1296, 4294901760
    %v1298 = vsub.f32 %v1296, %v1297
    %v1299 = vand.u32 %v1298, 4294901760
    %1300 = vmatpush1.msra.mxu0 %v1299
    %1301 = vmatprep.subr.mxu0 0.0
    %v1302 = vand.u32 %v91, 4294901760
    %v1303 = vsub.f32 %v91, %v1302
    %v1304 = vand.u32 %v1303, 4294901760
    %v1305 = vsub.f32 %v1303, %v1304
    %v1306 = vand.u32 %v1305, 4294901760
    %1307 = vmatpush1.msra.mxu0 %v1306
    %1308 = vmatprep.subr.mxu0 0.0
    %v1309 = vand.u32 %v92, 4294901760
    %v1310 = vsub.f32 %v92, %v1309
    %v1311 = vand.u32 %v1310, 4294901760
    %v1312 = vsub.f32 %v1310, %v1311
    %v1313 = vand.u32 %v1312, 4294901760
    %1314 = vmatpush1.msra.mxu0 %v1313
    %1315 = vmatprep.subr.mxu0 0.0
    %v1316 = vand.u32 %v93, 4294901760
    %v1317 = vsub.f32 %v93, %v1316
    %v1318 = vand.u32 %v1317, 4294901760
    %v1319 = vsub.f32 %v1317, %v1318
    %v1320 = vand.u32 %v1319, 4294901760
    %1321 = vmatpush1.msra.mxu0 %v1320
    %1322 = vmatprep.subr.mxu0 0.0
    %v1323 = vand.u32 %v94, 4294901760
    %v1324 = vsub.f32 %v94, %v1323
    %v1325 = vand.u32 %v1324, 4294901760
    %v1326 = vsub.f32 %v1324, %v1325
    %v1327 = vand.u32 %v1326, 4294901760
    %1328 = vmatpush1.msra.mxu0 %v1327
    %1329 = vmatprep.subr.mxu0 0.0
    %v1330 = vand.u32 %v95, 4294901760
    %v1331 = vsub.f32 %v95, %v1330
    %v1332 = vand.u32 %v1331, 4294901760
    %v1333 = vsub.f32 %v1331, %v1332
    %v1334 = vand.u32 %v1333, 4294901760
    %1335 = vmatpush1.msra.mxu0 %v1334
    %1336 = vmatprep.subr.mxu0 0.0
    %v1337 = vand.u32 %v96, 4294901760
    %v1338 = vsub.f32 %v96, %v1337
    %v1339 = vand.u32 %v1338, 4294901760
    %v1340 = vsub.f32 %v1338, %v1339
    %v1341 = vand.u32 %v1340, 4294901760
    %1342 = vmatpush1.msra.mxu0 %v1341
    %1343 = vmatprep.subr.mxu0 0.0
    %v1344 = vand.u32 %v97, 4294901760
    %v1345 = vsub.f32 %v97, %v1344
    %v1346 = vand.u32 %v1345, 4294901760
    %v1347 = vsub.f32 %v1345, %v1346
    %v1348 = vand.u32 %v1347, 4294901760
    %1349 = vmatpush1.msra.mxu0 %v1348
    %1350 = vmatprep.subr.mxu0 0.0
    %v1351 = vand.u32 %v98, 4294901760
    %v1352 = vsub.f32 %v98, %v1351
    %v1353 = vand.u32 %v1352, 4294901760
    %v1354 = vsub.f32 %v1352, %v1353
    %v1355 = vand.u32 %v1354, 4294901760
    %1356 = vmatpush1.msra.mxu0 %v1355
    %1357 = vmatprep.subr.mxu0 0.0
    %v1358 = vand.u32 %v99, 4294901760
    %v1359 = vsub.f32 %v99, %v1358
    %v1360 = vand.u32 %v1359, 4294901760
    %v1361 = vsub.f32 %v1359, %v1360
    %v1362 = vand.u32 %v1361, 4294901760
    %1363 = vmatpush1.msra.mxu0 %v1362
    %1364 = vmatprep.subr.mxu0 0.0
    %v1365 = vand.u32 %v100, 4294901760
    %v1366 = vsub.f32 %v100, %v1365
    %v1367 = vand.u32 %v1366, 4294901760
    %v1368 = vsub.f32 %v1366, %v1367
    %v1369 = vand.u32 %v1368, 4294901760
    %1370 = vmatpush1.msra.mxu0 %v1369
    %1371 = vmatprep.subr.mxu0 0.0
    %v1372 = vand.u32 %v101, 4294901760
    %v1373 = vsub.f32 %v101, %v1372
    %v1374 = vand.u32 %v1373, 4294901760
    %v1375 = vsub.f32 %v1373, %v1374
    %v1376 = vand.u32 %v1375, 4294901760
    %1377 = vmatpush1.msra.mxu0 %v1376
    %1378 = vmatprep.subr.mxu0 0.0
    %v1379 = vand.u32 %v102, 4294901760
    %v1380 = vsub.f32 %v102, %v1379
    %v1381 = vand.u32 %v1380, 4294901760
    %v1382 = vsub.f32 %v1380, %v1381
    %v1383 = vand.u32 %v1382, 4294901760
    %1384 = vmatpush1.msra.mxu0 %v1383
    %1385 = vmatprep.subr.mxu0 0.0
    %v1386 = vand.u32 %v103, 4294901760
    %v1387 = vsub.f32 %v103, %v1386
    %v1388 = vand.u32 %v1387, 4294901760
    %v1389 = vsub.f32 %v1387, %v1388
    %v1390 = vand.u32 %v1389, 4294901760
    %1391 = vmatpush1.msra.mxu0 %v1390
    %1392 = vmatprep.subr.mxu0 0.0
    %v1393 = vand.u32 %v104, 4294901760
    %v1394 = vsub.f32 %v104, %v1393
    %v1395 = vand.u32 %v1394, 4294901760
    %v1396 = vsub.f32 %v1394, %v1395
    %v1397 = vand.u32 %v1396, 4294901760
    %1398 = vmatpush1.msra.mxu0 %v1397
    %1399 = vmatprep.subr.mxu0 0.0
    %v1400 = vand.u32 %v105, 4294901760
    %v1401 = vsub.f32 %v105, %v1400
    %v1402 = vand.u32 %v1401, 4294901760
    %v1403 = vsub.f32 %v1401, %v1402
    %v1404 = vand.u32 %v1403, 4294901760
    %1405 = vmatpush1.msra.mxu0 %v1404
    %1406 = vmatprep.subr.mxu0 0.0
    %v1407 = vand.u32 %v106, 4294901760
    %v1408 = vsub.f32 %v106, %v1407
    %v1409 = vand.u32 %v1408, 4294901760
    %v1410 = vsub.f32 %v1408, %v1409
    %v1411 = vand.u32 %v1410, 4294901760
    %1412 = vmatpush1.msra.mxu0 %v1411
    %v1413 = vand.u32 %v189, 4294901760
    %1414 = vmatprep.mubr.f32.mxu0 %v1413
    %v1415 = vand.u32 %v187, 4294901760
    %1416 = vmatmul.mubr.f32.gmra.mrb[0].mxu0 %v1415
    %v1417 = vpop.f32.mrb[0].mxu0
    %v1418 = vadd.f32 %v1186, %v1417
    %v1419 = vpop.f32.mrb[0].mxu0
    %1420 = vdwg.mxu0
    %1421 = vmatprep.subr.mxu0 0.0
    %v1422 = vand.u32 %v75, 4294901760
    %v1423 = vsub.f32 %v75, %v1422
    %1424 = vmatpush1.msra.mxu0 %v1423
    %1425 = vmatprep.subr.mxu0 0.0
    %v1426 = vand.u32 %v76, 4294901760
    %v1427 = vsub.f32 %v76, %v1426
    %1428 = vmatpush1.msra.mxu0 %v1427
    %1429 = vmatprep.subr.mxu0 0.0
    %v1430 = vand.u32 %v77, 4294901760
    %v1431 = vsub.f32 %v77, %v1430
    %1432 = vmatpush1.msra.mxu0 %v1431
    %1433 = vmatprep.subr.mxu0 0.0
    %v1434 = vand.u32 %v78, 4294901760
    %v1435 = vsub.f32 %v78, %v1434
    %1436 = vmatpush1.msra.mxu0 %v1435
    %1437 = vmatprep.subr.mxu0 0.0
    %v1438 = vand.u32 %v79, 4294901760
    %v1439 = vsub.f32 %v79, %v1438
    %1440 = vmatpush1.msra.mxu0 %v1439
    %1441 = vmatprep.subr.mxu0 0.0
    %v1442 = vand.u32 %v80, 4294901760
    %v1443 = vsub.f32 %v80, %v1442
    %1444 = vmatpush1.msra.mxu0 %v1443
    %1445 = vmatprep.subr.mxu0 0.0
    %v1446 = vand.u32 %v81, 4294901760
    %v1447 = vsub.f32 %v81, %v1446
    %1448 = vmatpush1.msra.mxu0 %v1447
    %1449 = vmatprep.subr.mxu0 0.0
    %v1450 = vand.u32 %v82, 4294901760
    %v1451 = vsub.f32 %v82, %v1450
    %1452 = vmatpush1.msra.mxu0 %v1451
    %1453 = vmatprep.subr.mxu0 0.0
    %v1454 = vand.u32 %v83, 4294901760
    %v1455 = vsub.f32 %v83, %v1454
    %1456 = vmatpush1.msra.mxu0 %v1455
    %1457 = vmatprep.subr.mxu0 0.0
    %v1458 = vand.u32 %v84, 4294901760
    %v1459 = vsub.f32 %v84, %v1458
    %1460 = vmatpush1.msra.mxu0 %v1459
    %1461 = vmatprep.subr.mxu0 0.0
    %v1462 = vand.u32 %v85, 4294901760
    %v1463 = vsub.f32 %v85, %v1462
    %1464 = vmatpush1.msra.mxu0 %v1463
    %1465 = vmatprep.subr.mxu0 0.0
    %v1466 = vand.u32 %v86, 4294901760
    %v1467 = vsub.f32 %v86, %v1466
    %1468 = vmatpush1.msra.mxu0 %v1467
    %1469 = vmatprep.subr.mxu0 0.0
    %v1470 = vand.u32 %v87, 4294901760
    %v1471 = vsub.f32 %v87, %v1470
    %1472 = vmatpush1.msra.mxu0 %v1471
    %1473 = vmatprep.subr.mxu0 0.0
    %v1474 = vand.u32 %v88, 4294901760
    %v1475 = vsub.f32 %v88, %v1474
    %1476 = vmatpush1.msra.mxu0 %v1475
    %1477 = vmatprep.subr.mxu0 0.0
    %v1478 = vand.u32 %v89, 4294901760
    %v1479 = vsub.f32 %v89, %v1478
    %1480 = vmatpush1.msra.mxu0 %v1479
    %1481 = vmatprep.subr.mxu0 0.0
    %v1482 = vand.u32 %v90, 4294901760
    %v1483 = vsub.f32 %v90, %v1482
    %1484 = vmatpush1.msra.mxu0 %v1483
    %1485 = vmatprep.subr.mxu0 0.0
    %v1486 = vand.u32 %v91, 4294901760
    %v1487 = vsub.f32 %v91, %v1486
    %1488 = vmatpush1.msra.mxu0 %v1487
    %1489 = vmatprep.subr.mxu0 0.0
    %v1490 = vand.u32 %v92, 4294901760
    %v1491 = vsub.f32 %v92, %v1490
    %1492 = vmatpush1.msra.mxu0 %v1491
    %1493 = vmatprep.subr.mxu0 0.0
    %v1494 = vand.u32 %v93, 4294901760
    %v1495 = vsub.f32 %v93, %v1494
    %1496 = vmatpush1.msra.mxu0 %v1495
    %1497 = vmatprep.subr.mxu0 0.0
    %v1498 = vand.u32 %v94, 4294901760
    %v1499 = vsub.f32 %v94, %v1498
    %1500 = vmatpush1.msra.mxu0 %v1499
    %1501 = vmatprep.subr.mxu0 0.0
    %v1502 = vand.u32 %v95, 4294901760
    %v1503 = vsub.f32 %v95, %v1502
    %1504 = vmatpush1.msra.mxu0 %v1503
    %1505 = vmatprep.subr.mxu0 0.0
    %v1506 = vand.u32 %v96, 4294901760
    %v1507 = vsub.f32 %v96, %v1506
    %1508 = vmatpush1.msra.mxu0 %v1507
    %1509 = vmatprep.subr.mxu0 0.0
    %v1510 = vand.u32 %v97, 4294901760
    %v1511 = vsub.f32 %v97, %v1510
    %1512 = vmatpush1.msra.mxu0 %v1511
    %1513 = vmatprep.subr.mxu0 0.0
    %v1514 = vand.u32 %v98, 4294901760
    %v1515 = vsub.f32 %v98, %v1514
    %1516 = vmatpush1.msra.mxu0 %v1515
    %1517 = vmatprep.subr.mxu0 0.0
    %v1518 = vand.u32 %v99, 4294901760
    %v1519 = vsub.f32 %v99, %v1518
    %1520 = vmatpush1.msra.mxu0 %v1519
    %1521 = vmatprep.subr.mxu0 0.0
    %v1522 = vand.u32 %v100, 4294901760
    %v1523 = vsub.f32 %v100, %v1522
    %1524 = vmatpush1.msra.mxu0 %v1523
    %1525 = vmatprep.subr.mxu0 0.0
    %v1526 = vand.u32 %v101, 4294901760
    %v1527 = vsub.f32 %v101, %v1526
    %1528 = vmatpush1.msra.mxu0 %v1527
    %1529 = vmatprep.subr.mxu0 0.0
    %v1530 = vand.u32 %v102, 4294901760
    %v1531 = vsub.f32 %v102, %v1530
    %1532 = vmatpush1.msra.mxu0 %v1531
    %1533 = vmatprep.subr.mxu0 0.0
    %v1534 = vand.u32 %v103, 4294901760
    %v1535 = vsub.f32 %v103, %v1534
    %1536 = vmatpush1.msra.mxu0 %v1535
    %1537 = vmatprep.subr.mxu0 0.0
    %v1538 = vand.u32 %v104, 4294901760
    %v1539 = vsub.f32 %v104, %v1538
    %1540 = vmatpush1.msra.mxu0 %v1539
    %1541 = vmatprep.subr.mxu0 0.0
    %v1542 = vand.u32 %v105, 4294901760
    %v1543 = vsub.f32 %v105, %v1542
    %1544 = vmatpush1.msra.mxu0 %v1543
    %1545 = vmatprep.subr.mxu0 0.0
    %v1546 = vand.u32 %v106, 4294901760
    %v1547 = vsub.f32 %v106, %v1546
    %1548 = vmatpush1.msra.mxu0 %v1547
    %v1549 = vand.u32 %v189, 4294901760
    %v1550 = vsub.f32 %v189, %v1549
    %1551 = vmatprep.mubr.f32.mxu0 %v1550
    %v1552 = vand.u32 %v187, 4294901760
    %v1553 = vsub.f32 %v187, %v1552
    %1554 = vmatmul.mubr.f32.gmra.mrb[0].mxu0 %v1553
    %v1555 = vpop.f32.mrb[0].mxu0
    %v1556 = vadd.f32 %v1418, %v1555
    %v1557 = vpop.f32.mrb[0].mxu0
    %1558 = vdwg.mxu0
    %1559 = vmatprep.subr.mxu0 0.0
    %v1560 = vand.u32 %v75, 4294901760
    %1561 = vmatpush1.msra.mxu0 %v1560
    %1562 = vmatprep.subr.mxu0 0.0
    %v1563 = vand.u32 %v76, 4294901760
    %1564 = vmatpush1.msra.mxu0 %v1563
    %1565 = vmatprep.subr.mxu0 0.0
    %v1566 = vand.u32 %v77, 4294901760
    %1567 = vmatpush1.msra.mxu0 %v1566
    %1568 = vmatprep.subr.mxu0 0.0
    %v1569 = vand.u32 %v78, 4294901760
    %1570 = vmatpush1.msra.mxu0 %v1569
    %1571 = vmatprep.subr.mxu0 0.0
    %v1572 = vand.u32 %v79, 4294901760
    %1573 = vmatpush1.msra.mxu0 %v1572
    %1574 = vmatprep.subr.mxu0 0.0
    %v1575 = vand.u32 %v80, 4294901760
    %1576 = vmatpush1.msra.mxu0 %v1575
    %1577 = vmatprep.subr.mxu0 0.0
    %v1578 = vand.u32 %v81, 4294901760
    %1579 = vmatpush1.msra.mxu0 %v1578
    %1580 = vmatprep.subr.mxu0 0.0
    %v1581 = vand.u32 %v82, 4294901760
    %1582 = vmatpush1.msra.mxu0 %v1581
    %1583 = vmatprep.subr.mxu0 0.0
    %v1584 = vand.u32 %v83, 4294901760
    %1585 = vmatpush1.msra.mxu0 %v1584
    %1586 = vmatprep.subr.mxu0 0.0
    %v1587 = vand.u32 %v84, 4294901760
    %1588 = vmatpush1.msra.mxu0 %v1587
    %1589 = vmatprep.subr.mxu0 0.0
    %v1590 = vand.u32 %v85, 4294901760
    %1591 = vmatpush1.msra.mxu0 %v1590
    %1592 = vmatprep.subr.mxu0 0.0
    %v1593 = vand.u32 %v86, 4294901760
    %1594 = vmatpush1.msra.mxu0 %v1593
    %1595 = vmatprep.subr.mxu0 0.0
    %v1596 = vand.u32 %v87, 4294901760
    %1597 = vmatpush1.msra.mxu0 %v1596
    %1598 = vmatprep.subr.mxu0 0.0
    %v1599 = vand.u32 %v88, 4294901760
    %1600 = vmatpush1.msra.mxu0 %v1599
    %1601 = vmatprep.subr.mxu0 0.0
    %v1602 = vand.u32 %v89, 4294901760
    %1603 = vmatpush1.msra.mxu0 %v1602
    %1604 = vmatprep.subr.mxu0 0.0
    %v1605 = vand.u32 %v90, 4294901760
    %1606 = vmatpush1.msra.mxu0 %v1605
    %1607 = vmatprep.subr.mxu0 0.0
    %v1608 = vand.u32 %v91, 4294901760
    %1609 = vmatpush1.msra.mxu0 %v1608
    %1610 = vmatprep.subr.mxu0 0.0
    %v1611 = vand.u32 %v92, 4294901760
    %1612 = vmatpush1.msra.mxu0 %v1611
    %1613 = vmatprep.subr.mxu0 0.0
    %v1614 = vand.u32 %v93, 4294901760
    %1615 = vmatpush1.msra.mxu0 %v1614
    %1616 = vmatprep.subr.mxu0 0.0
    %v1617 = vand.u32 %v94, 4294901760
    %1618 = vmatpush1.msra.mxu0 %v1617
    %1619 = vmatprep.subr.mxu0 0.0
    %v1620 = vand.u32 %v95, 4294901760
    %1621 = vmatpush1.msra.mxu0 %v1620
    %1622 = vmatprep.subr.mxu0 0.0
    %v1623 = vand.u32 %v96, 4294901760
    %1624 = vmatpush1.msra.mxu0 %v1623
    %1625 = vmatprep.subr.mxu0 0.0
    %v1626 = vand.u32 %v97, 4294901760
    %1627 = vmatpush1.msra.mxu0 %v1626
    %1628 = vmatprep.subr.mxu0 0.0
    %v1629 = vand.u32 %v98, 4294901760
    %1630 = vmatpush1.msra.mxu0 %v1629
    %1631 = vmatprep.subr.mxu0 0.0
    %v1632 = vand.u32 %v99, 4294901760
    %1633 = vmatpush1.msra.mxu0 %v1632
    %1634 = vmatprep.subr.mxu0 0.0
    %v1635 = vand.u32 %v100, 4294901760
    %1636 = vmatpush1.msra.mxu0 %v1635
    %1637 = vmatprep.subr.mxu0 0.0
    %v1638 = vand.u32 %v101, 4294901760
    %1639 = vmatpush1.msra.mxu0 %v1638
    %1640 = vmatprep.subr.mxu0 0.0
    %v1641 = vand.u32 %v102, 4294901760
    %1642 = vmatpush1.msra.mxu0 %v1641
    %1643 = vmatprep.subr.mxu0 0.0
    %v1644 = vand.u32 %v103, 4294901760
    %1645 = vmatpush1.msra.mxu0 %v1644
    %1646 = vmatprep.subr.mxu0 0.0
    %v1647 = vand.u32 %v104, 4294901760
    %1648 = vmatpush1.msra.mxu0 %v1647
    %1649 = vmatprep.subr.mxu0 0.0
    %v1650 = vand.u32 %v105, 4294901760
    %1651 = vmatpush1.msra.mxu0 %v1650
    %1652 = vmatprep.subr.mxu0 0.0
    %v1653 = vand.u32 %v106, 4294901760
    %1654 = vmatpush1.msra.mxu0 %v1653
    %v1655 = vand.u32 %v189, 4294901760
    %v1656 = vsub.f32 %v189, %v1655
    %v1657 = vand.u32 %v1656, 4294901760
    %1658 = vmatprep.mubr.f32.mxu0 %v1657
    %v1659 = vand.u32 %v187, 4294901760
    %v1660 = vsub.f32 %v187, %v1659
    %v1661 = vand.u32 %v1660, 4294901760
    %1662 = vmatmul.mubr.f32.gmra.mrb[0].mxu0 %v1661
    %v1663 = vpop.f32.mrb[0].mxu0
    %v1664 = vadd.f32 %v1556, %v1663
    %v1665 = vpop.f32.mrb[0].mxu0
    %1666 = vdwg.mxu0
    %1667 = vmatprep.subr.mxu0 0.0
    %v1668 = vand.u32 %v75, 4294901760
    %v1669 = vsub.f32 %v75, %v1668
    %v1670 = vand.u32 %v1669, 4294901760
    %1671 = vmatpush1.msra.mxu0 %v1670
    %1672 = vmatprep.subr.mxu0 0.0
    %v1673 = vand.u32 %v76, 4294901760
    %v1674 = vsub.f32 %v76, %v1673
    %v1675 = vand.u32 %v1674, 4294901760
    %1676 = vmatpush1.msra.mxu0 %v1675
    %1677 = vmatprep.subr.mxu0 0.0
    %v1678 = vand.u32 %v77, 4294901760
    %v1679 = vsub.f32 %v77, %v1678
    %v1680 = vand.u32 %v1679, 4294901760
    %1681 = vmatpush1.msra.mxu0 %v1680
    %1682 = vmatprep.subr.mxu0 0.0
    %v1683 = vand.u32 %v78, 4294901760
    %v1684 = vsub.f32 %v78, %v1683
    %v1685 = vand.u32 %v1684, 4294901760
    %1686 = vmatpush1.msra.mxu0 %v1685
    %1687 = vmatprep.subr.mxu0 0.0
    %v1688 = vand.u32 %v79, 4294901760
    %v1689 = vsub.f32 %v79, %v1688
    %v1690 = vand.u32 %v1689, 4294901760
    %1691 = vmatpush1.msra.mxu0 %v1690
    %1692 = vmatprep.subr.mxu0 0.0
    %v1693 = vand.u32 %v80, 4294901760
    %v1694 = vsub.f32 %v80, %v1693
    %v1695 = vand.u32 %v1694, 4294901760
    %1696 = vmatpush1.msra.mxu0 %v1695
    %1697 = vmatprep.subr.mxu0 0.0
    %v1698 = vand.u32 %v81, 4294901760
    %v1699 = vsub.f32 %v81, %v1698
    %v1700 = vand.u32 %v1699, 4294901760
    %1701 = vmatpush1.msra.mxu0 %v1700
    %1702 = vmatprep.subr.mxu0 0.0
    %v1703 = vand.u32 %v82, 4294901760
    %v1704 = vsub.f32 %v82, %v1703
    %v1705 = vand.u32 %v1704, 4294901760
    %1706 = vmatpush1.msra.mxu0 %v1705
    %1707 = vmatprep.subr.mxu0 0.0
    %v1708 = vand.u32 %v83, 4294901760
    %v1709 = vsub.f32 %v83, %v1708
    %v1710 = vand.u32 %v1709, 4294901760
    %1711 = vmatpush1.msra.mxu0 %v1710
    %1712 = vmatprep.subr.mxu0 0.0
    %v1713 = vand.u32 %v84, 4294901760
    %v1714 = vsub.f32 %v84, %v1713
    %v1715 = vand.u32 %v1714, 4294901760
    %1716 = vmatpush1.msra.mxu0 %v1715
    %1717 = vmatprep.subr.mxu0 0.0
    %v1718 = vand.u32 %v85, 4294901760
    %v1719 = vsub.f32 %v85, %v1718
    %v1720 = vand.u32 %v1719, 4294901760
    %1721 = vmatpush1.msra.mxu0 %v1720
    %1722 = vmatprep.subr.mxu0 0.0
    %v1723 = vand.u32 %v86, 4294901760
    %v1724 = vsub.f32 %v86, %v1723
    %v1725 = vand.u32 %v1724, 4294901760
    %1726 = vmatpush1.msra.mxu0 %v1725
    %1727 = vmatprep.subr.mxu0 0.0
    %v1728 = vand.u32 %v87, 4294901760
    %v1729 = vsub.f32 %v87, %v1728
    %v1730 = vand.u32 %v1729, 4294901760
    %1731 = vmatpush1.msra.mxu0 %v1730
    %1732 = vmatprep.subr.mxu0 0.0
    %v1733 = vand.u32 %v88, 4294901760
    %v1734 = vsub.f32 %v88, %v1733
    %v1735 = vand.u32 %v1734, 4294901760
    %1736 = vmatpush1.msra.mxu0 %v1735
    %1737 = vmatprep.subr.mxu0 0.0
    %v1738 = vand.u32 %v89, 4294901760
    %v1739 = vsub.f32 %v89, %v1738
    %v1740 = vand.u32 %v1739, 4294901760
    %1741 = vmatpush1.msra.mxu0 %v1740
    %1742 = vmatprep.subr.mxu0 0.0
    %v1743 = vand.u32 %v90, 4294901760
    %v1744 = vsub.f32 %v90, %v1743
    %v1745 = vand.u32 %v1744, 4294901760
    %1746 = vmatpush1.msra.mxu0 %v1745
    %1747 = vmatprep.subr.mxu0 0.0
    %v1748 = vand.u32 %v91, 4294901760
    %v1749 = vsub.f32 %v91, %v1748
    %v1750 = vand.u32 %v1749, 4294901760
    %1751 = vmatpush1.msra.mxu0 %v1750
    %1752 = vmatprep.subr.mxu0 0.0
    %v1753 = vand.u32 %v92, 4294901760
    %v1754 = vsub.f32 %v92, %v1753
    %v1755 = vand.u32 %v1754, 4294901760
    %1756 = vmatpush1.msra.mxu0 %v1755
    %1757 = vmatprep.subr.mxu0 0.0
    %v1758 = vand.u32 %v93, 4294901760
    %v1759 = vsub.f32 %v93, %v1758
    %v1760 = vand.u32 %v1759, 4294901760
    %1761 = vmatpush1.msra.mxu0 %v1760
    %1762 = vmatprep.subr.mxu0 0.0
    %v1763 = vand.u32 %v94, 4294901760
    %v1764 = vsub.f32 %v94, %v1763
    %v1765 = vand.u32 %v1764, 4294901760
    %1766 = vmatpush1.msra.mxu0 %v1765
    %1767 = vmatprep.subr.mxu0 0.0
    %v1768 = vand.u32 %v95, 4294901760
    %v1769 = vsub.f32 %v95, %v1768
    %v1770 = vand.u32 %v1769, 4294901760
    %1771 = vmatpush1.msra.mxu0 %v1770
    %1772 = vmatprep.subr.mxu0 0.0
    %v1773 = vand.u32 %v96, 4294901760
    %v1774 = vsub.f32 %v96, %v1773
    %v1775 = vand.u32 %v1774, 4294901760
    %1776 = vmatpush1.msra.mxu0 %v1775
    %1777 = vmatprep.subr.mxu0 0.0
    %v1778 = vand.u32 %v97, 4294901760
    %v1779 = vsub.f32 %v97, %v1778
    %v1780 = vand.u32 %v1779, 4294901760
    %1781 = vmatpush1.msra.mxu0 %v1780
    %1782 = vmatprep.subr.mxu0 0.0
    %v1783 = vand.u32 %v98, 4294901760
    %v1784 = vsub.f32 %v98, %v1783
    %v1785 = vand.u32 %v1784, 4294901760
    %1786 = vmatpush1.msra.mxu0 %v1785
    %1787 = vmatprep.subr.mxu0 0.0
    %v1788 = vand.u32 %v99, 4294901760
    %v1789 = vsub.f32 %v99, %v1788
    %v1790 = vand.u32 %v1789, 4294901760
    %1791 = vmatpush1.msra.mxu0 %v1790
    %1792 = vmatprep.subr.mxu0 0.0
    %v1793 = vand.u32 %v100, 4294901760
    %v1794 = vsub.f32 %v100, %v1793
    %v1795 = vand.u32 %v1794, 4294901760
    %1796 = vmatpush1.msra.mxu0 %v1795
    %1797 = vmatprep.subr.mxu0 0.0
    %v1798 = vand.u32 %v101, 4294901760
    %v1799 = vsub.f32 %v101, %v1798
    %v1800 = vand.u32 %v1799, 4294901760
    %1801 = vmatpush1.msra.mxu0 %v1800
    %1802 = vmatprep.subr.mxu0 0.0
    %v1803 = vand.u32 %v102, 4294901760
    %v1804 = vsub.f32 %v102, %v1803
    %v1805 = vand.u32 %v1804, 4294901760
    %1806 = vmatpush1.msra.mxu0 %v1805
    %1807 = vmatprep.subr.mxu0 0.0
    %v1808 = vand.u32 %v103, 4294901760
    %v1809 = vsub.f32 %v103, %v1808
    %v1810 = vand.u32 %v1809, 4294901760
    %1811 = vmatpush1.msra.mxu0 %v1810
    %1812 = vmatprep.subr.mxu0 0.0
    %v1813 = vand.u32 %v104, 4294901760
    %v1814 = vsub.f32 %v104, %v1813
    %v1815 = vand.u32 %v1814, 4294901760
    %1816 = vmatpush1.msra.mxu0 %v1815
    %1817 = vmatprep.subr.mxu0 0.0
    %v1818 = vand.u32 %v105, 4294901760
    %v1819 = vsub.f32 %v105, %v1818
    %v1820 = vand.u32 %v1819, 4294901760
    %1821 = vmatpush1.msra.mxu0 %v1820
    %1822 = vmatprep.subr.mxu0 0.0
    %v1823 = vand.u32 %v106, 4294901760
    %v1824 = vsub.f32 %v106, %v1823
    %v1825 = vand.u32 %v1824, 4294901760
    %1826 = vmatpush1.msra.mxu0 %v1825
    %v1827 = vand.u32 %v189, 4294901760
    %1828 = vmatprep.mubr.f32.mxu0 %v1827
    %v1829 = vand.u32 %v187, 4294901760
    %1830 = vmatmul.mubr.f32.gmra.mrb[0].mxu0 %v1829
    %v1831 = vpop.f32.mrb[0].mxu0
    %v1832 = vadd.f32 %v1664, %v1831
    %v1833 = vpop.f32.mrb[0].mxu0
    %1834 = vdwg.mxu0
    %1835 = vmatprep.subr.mxu0 0.0
    %v1836 = vand.u32 %v75, 4294901760
    %1837 = vmatpush1.msra.mxu0 %v1836
    %1838 = vmatprep.subr.mxu0 0.0
    %v1839 = vand.u32 %v76, 4294901760
    %1840 = vmatpush1.msra.mxu0 %v1839
    %1841 = vmatprep.subr.mxu0 0.0
    %v1842 = vand.u32 %v77, 4294901760
    %1843 = vmatpush1.msra.mxu0 %v1842
    %1844 = vmatprep.subr.mxu0 0.0
    %v1845 = vand.u32 %v78, 4294901760
    %1846 = vmatpush1.msra.mxu0 %v1845
    %1847 = vmatprep.subr.mxu0 0.0
    %v1848 = vand.u32 %v79, 4294901760
    %1849 = vmatpush1.msra.mxu0 %v1848
    %1850 = vmatprep.subr.mxu0 0.0
    %v1851 = vand.u32 %v80, 4294901760
    %1852 = vmatpush1.msra.mxu0 %v1851
    %1853 = vmatprep.subr.mxu0 0.0
    %v1854 = vand.u32 %v81, 4294901760
    %1855 = vmatpush1.msra.mxu0 %v1854
    %1856 = vmatprep.subr.mxu0 0.0
    %v1857 = vand.u32 %v82, 4294901760
    %1858 = vmatpush1.msra.mxu0 %v1857
    %1859 = vmatprep.subr.mxu0 0.0
    %v1860 = vand.u32 %v83, 4294901760
    %1861 = vmatpush1.msra.mxu0 %v1860
    %1862 = vmatprep.subr.mxu0 0.0
    %v1863 = vand.u32 %v84, 4294901760
    %1864 = vmatpush1.msra.mxu0 %v1863
    %1865 = vmatprep.subr.mxu0 0.0
    %v1866 = vand.u32 %v85, 4294901760
    %1867 = vmatpush1.msra.mxu0 %v1866
    %1868 = vmatprep.subr.mxu0 0.0
    %v1869 = vand.u32 %v86, 4294901760
    %1870 = vmatpush1.msra.mxu0 %v1869
    %1871 = vmatprep.subr.mxu0 0.0
    %v1872 = vand.u32 %v87, 4294901760
    %1873 = vmatpush1.msra.mxu0 %v1872
    %1874 = vmatprep.subr.mxu0 0.0
    %v1875 = vand.u32 %v88, 4294901760
    %1876 = vmatpush1.msra.mxu0 %v1875
    %1877 = vmatprep.subr.mxu0 0.0
    %v1878 = vand.u32 %v89, 4294901760
    %1879 = vmatpush1.msra.mxu0 %v1878
    %1880 = vmatprep.subr.mxu0 0.0
    %v1881 = vand.u32 %v90, 4294901760
    %1882 = vmatpush1.msra.mxu0 %v1881
    %1883 = vmatprep.subr.mxu0 0.0
    %v1884 = vand.u32 %v91, 4294901760
    %1885 = vmatpush1.msra.mxu0 %v1884
    %1886 = vmatprep.subr.mxu0 0.0
    %v1887 = vand.u32 %v92, 4294901760
    %1888 = vmatpush1.msra.mxu0 %v1887
    %1889 = vmatprep.subr.mxu0 0.0
    %v1890 = vand.u32 %v93, 4294901760
    %1891 = vmatpush1.msra.mxu0 %v1890
    %1892 = vmatprep.subr.mxu0 0.0
    %v1893 = vand.u32 %v94, 4294901760
    %1894 = vmatpush1.msra.mxu0 %v1893
    %1895 = vmatprep.subr.mxu0 0.0
    %v1896 = vand.u32 %v95, 4294901760
    %1897 = vmatpush1.msra.mxu0 %v1896
    %1898 = vmatprep.subr.mxu0 0.0
    %v1899 = vand.u32 %v96, 4294901760
    %1900 = vmatpush1.msra.mxu0 %v1899
    %1901 = vmatprep.subr.mxu0 0.0
    %v1902 = vand.u32 %v97, 4294901760
    %1903 = vmatpush1.msra.mxu0 %v1902
    %1904 = vmatprep.subr.mxu0 0.0
    %v1905 = vand.u32 %v98, 4294901760
    %1906 = vmatpush1.msra.mxu0 %v1905
    %1907 = vmatprep.subr.mxu0 0.0
    %v1908 = vand.u32 %v99, 4294901760
    %1909 = vmatpush1.msra.mxu0 %v1908
    %1910 = vmatprep.subr.mxu0 0.0
    %v1911 = vand.u32 %v100, 4294901760
    %1912 = vmatpush1.msra.mxu0 %v1911
    %1913 = vmatprep.subr.mxu0 0.0
    %v1914 = vand.u32 %v101, 4294901760
    %1915 = vmatpush1.msra.mxu0 %v1914
    %1916 = vmatprep.subr.mxu0 0.0
    %v1917 = vand.u32 %v102, 4294901760
    %1918 = vmatpush1.msra.mxu0 %v1917
    %1919 = vmatprep.subr.mxu0 0.0
    %v1920 = vand.u32 %v103, 4294901760
    %1921 = vmatpush1.msra.mxu0 %v1920
    %1922 = vmatprep.subr.mxu0 0.0
    %v1923 = vand.u32 %v104, 4294901760
    %1924 = vmatpush1.msra.mxu0 %v1923
    %1925 = vmatprep.subr.mxu0 0.0
    %v1926 = vand.u32 %v105, 4294901760
    %1927 = vmatpush1.msra.mxu0 %v1926
    %1928 = vmatprep.subr.mxu0 0.0
    %v1929 = vand.u32 %v106, 4294901760
    %1930 = vmatpush1.msra.mxu0 %v1929
    %v1931 = vand.u32 %v189, 4294901760
    %1932 = vmatprep.mubr.f32.mxu0 %v1931
    %v1933 = vand.u32 %v187, 4294901760
    %1934 = vmatmul.mubr.f32.gmra.mrb[0].mxu0 %v1933
    %v1935 = vpop.f32.mrb[0].mxu0
    %v1936 = vadd.f32 %v1832, %v1935
    %v1937 = vpop.f32.mrb[0].mxu0
    %1938 = vdwg.mxu0
    %1939 = vmatprep.subr.mxu0 0.0
    %v1940 = vand.u32 %v107, 4294901760
    %1941 = vmatpush1.msra.mxu0 %v1940
    %1942 = vmatprep.subr.mxu0 0.0
    %v1943 = vand.u32 %v108, 4294901760
    %1944 = vmatpush1.msra.mxu0 %v1943
    %1945 = vmatprep.subr.mxu0 0.0
    %v1946 = vand.u32 %v109, 4294901760
    %1947 = vmatpush1.msra.mxu0 %v1946
    %1948 = vmatprep.subr.mxu0 0.0
    %v1949 = vand.u32 %v110, 4294901760
    %1950 = vmatpush1.msra.mxu0 %v1949
    %1951 = vmatprep.subr.mxu0 0.0
    %v1952 = vand.u32 %v111, 4294901760
    %1953 = vmatpush1.msra.mxu0 %v1952
    %1954 = vmatprep.subr.mxu0 0.0
    %v1955 = vand.u32 %v112, 4294901760
    %1956 = vmatpush1.msra.mxu0 %v1955
    %1957 = vmatprep.subr.mxu0 0.0
    %v1958 = vand.u32 %v113, 4294901760
    %1959 = vmatpush1.msra.mxu0 %v1958
    %1960 = vmatprep.subr.mxu0 0.0
    %v1961 = vand.u32 %v114, 4294901760
    %1962 = vmatpush1.msra.mxu0 %v1961
    %1963 = vmatprep.subr.mxu0 0.0
    %v1964 = vand.u32 %v115, 4294901760
    %1965 = vmatpush1.msra.mxu0 %v1964
    %1966 = vmatprep.subr.mxu0 0.0
    %v1967 = vand.u32 %v116, 4294901760
    %1968 = vmatpush1.msra.mxu0 %v1967
    %1969 = vmatprep.subr.mxu0 0.0
    %v1970 = vand.u32 %v117, 4294901760
    %1971 = vmatpush1.msra.mxu0 %v1970
    %1972 = vmatprep.subr.mxu0 0.0
    %v1973 = vand.u32 %v118, 4294901760
    %1974 = vmatpush1.msra.mxu0 %v1973
    %1975 = vmatprep.subr.mxu0 0.0
    %v1976 = vand.u32 %v119, 4294901760
    %1977 = vmatpush1.msra.mxu0 %v1976
    %1978 = vmatprep.subr.mxu0 0.0
    %v1979 = vand.u32 %v120, 4294901760
    %1980 = vmatpush1.msra.mxu0 %v1979
    %1981 = vmatprep.subr.mxu0 0.0
    %v1982 = vand.u32 %v121, 4294901760
    %1983 = vmatpush1.msra.mxu0 %v1982
    %1984 = vmatprep.subr.mxu0 0.0
    %v1985 = vand.u32 %v122, 4294901760
    %1986 = vmatpush1.msra.mxu0 %v1985
    %1987 = vmatprep.subr.mxu0 0.0
    %v1988 = vand.u32 %v123, 4294901760
    %1989 = vmatpush1.msra.mxu0 %v1988
    %1990 = vmatprep.subr.mxu0 0.0
    %v1991 = vand.u32 %v124, 4294901760
    %1992 = vmatpush1.msra.mxu0 %v1991
    %1993 = vmatprep.subr.mxu0 0.0
    %v1994 = vand.u32 %v125, 4294901760
    %1995 = vmatpush1.msra.mxu0 %v1994
    %1996 = vmatprep.subr.mxu0 0.0
    %v1997 = vand.u32 %v126, 4294901760
    %1998 = vmatpush1.msra.mxu0 %v1997
    %1999 = vmatprep.subr.mxu0 0.0
    %v2000 = vand.u32 %v127, 4294901760
    %2001 = vmatpush1.msra.mxu0 %v2000
    %2002 = vmatprep.subr.mxu0 0.0
    %v2003 = vand.u32 %v128, 4294901760
    %2004 = vmatpush1.msra.mxu0 %v2003
    %2005 = vmatprep.subr.mxu0 0.0
    %v2006 = vand.u32 %v129, 4294901760
    %2007 = vmatpush1.msra.mxu0 %v2006
    %2008 = vmatprep.subr.mxu0 0.0
    %v2009 = vand.u32 %v130, 4294901760
    %2010 = vmatpush1.msra.mxu0 %v2009
    %2011 = vmatprep.subr.mxu0 0.0
    %v2012 = vand.u32 %v131, 4294901760
    %2013 = vmatpush1.msra.mxu0 %v2012
    %2014 = vmatprep.subr.mxu0 0.0
    %v2015 = vand.u32 %v132, 4294901760
    %2016 = vmatpush1.msra.mxu0 %v2015
    %2017 = vmatprep.subr.mxu0 0.0
    %v2018 = vand.u32 %v133, 4294901760
    %2019 = vmatpush1.msra.mxu0 %v2018
    %2020 = vmatprep.subr.mxu0 0.0
    %v2021 = vand.u32 %v134, 4294901760
    %2022 = vmatpush1.msra.mxu0 %v2021
    %2023 = vmatprep.subr.mxu0 0.0
    %v2024 = vand.u32 %v135, 4294901760
    %2025 = vmatpush1.msra.mxu0 %v2024
    %2026 = vmatprep.subr.mxu0 0.0
    %v2027 = vand.u32 %v136, 4294901760
    %2028 = vmatpush1.msra.mxu0 %v2027
    %2029 = vmatprep.subr.mxu0 0.0
    %v2030 = vand.u32 %v137, 4294901760
    %2031 = vmatpush1.msra.mxu0 %v2030
    %2032 = vmatprep.subr.mxu0 0.0
    %v2033 = vand.u32 %v138, 4294901760
    %2034 = vmatpush1.msra.mxu0 %v2033
    %v2035 = vand.u32 %v205, 4294901760
    %v2036 = vsub.f32 %v205, %v2035
    %v2037 = vand.u32 %v2036, 4294901760
    %v2038 = vsub.f32 %v2036, %v2037
    %v2039 = vand.u32 %v2038, 4294901760
    %2040 = vmatprep.mubr.f32.mxu0 %v2039
    %v2041 = vand.u32 %v197, 4294901760
    %v2042 = vsub.f32 %v197, %v2041
    %v2043 = vand.u32 %v2042, 4294901760
    %v2044 = vsub.f32 %v2042, %v2043
    %v2045 = vand.u32 %v2044, 4294901760
    %2046 = vmatmul.mubr.f32.gmra.mrb[0].mxu0 %v2045
    %v2047 = vpop.f32.mrb[0].mxu0
    %v2048 = vadd.f32 %v1936, %v2047
    %v2049 = vpop.f32.mrb[0].mxu0
    %2050 = vdwg.mxu0
    %2051 = vmatprep.subr.mxu0 0.0
    %v2052 = vand.u32 %v107, 4294901760
    %v2053 = vsub.f32 %v107, %v2052
    %v2054 = vand.u32 %v2053, 4294901760
    %v2055 = vsub.f32 %v2053, %v2054
    %v2056 = vand.u32 %v2055, 4294901760
    %2057 = vmatpush1.msra.mxu0 %v2056
    %2058 = vmatprep.subr.mxu0 0.0
    %v2059 = vand.u32 %v108, 4294901760
    %v2060 = vsub.f32 %v108, %v2059
    %v2061 = vand.u32 %v2060, 4294901760
    %v2062 = vsub.f32 %v2060, %v2061
    %v2063 = vand.u32 %v2062, 4294901760
    %2064 = vmatpush1.msra.mxu0 %v2063
    %2065 = vmatprep.subr.mxu0 0.0
    %v2066 = vand.u32 %v109, 4294901760
    %v2067 = vsub.f32 %v109, %v2066
    %v2068 = vand.u32 %v2067, 4294901760
    %v2069 = vsub.f32 %v2067, %v2068
    %v2070 = vand.u32 %v2069, 4294901760
    %2071 = vmatpush1.msra.mxu0 %v2070
    %2072 = vmatprep.subr.mxu0 0.0
    %v2073 = vand.u32 %v110, 4294901760
    %v2074 = vsub.f32 %v110, %v2073
    %v2075 = vand.u32 %v2074, 4294901760
    %v2076 = vsub.f32 %v2074, %v2075
    %v2077 = vand.u32 %v2076, 4294901760
    %2078 = vmatpush1.msra.mxu0 %v2077
    %2079 = vmatprep.subr.mxu0 0.0
    %v2080 = vand.u32 %v111, 4294901760
    %v2081 = vsub.f32 %v111, %v2080
    %v2082 = vand.u32 %v2081, 4294901760
    %v2083 = vsub.f32 %v2081, %v2082
    %v2084 = vand.u32 %v2083, 4294901760
    %2085 = vmatpush1.msra.mxu0 %v2084
    %2086 = vmatprep.subr.mxu0 0.0
    %v2087 = vand.u32 %v112, 4294901760
    %v2088 = vsub.f32 %v112, %v2087
    %v2089 = vand.u32 %v2088, 4294901760
    %v2090 = vsub.f32 %v2088, %v2089
    %v2091 = vand.u32 %v2090, 4294901760
    %2092 = vmatpush1.msra.mxu0 %v2091
    %2093 = vmatprep.subr.mxu0 0.0
    %v2094 = vand.u32 %v113, 4294901760
    %v2095 = vsub.f32 %v113, %v2094
    %v2096 = vand.u32 %v2095, 4294901760
    %v2097 = vsub.f32 %v2095, %v2096
    %v2098 = vand.u32 %v2097, 4294901760
    %2099 = vmatpush1.msra.mxu0 %v2098
    %2100 = vmatprep.subr.mxu0 0.0
    %v2101 = vand.u32 %v114, 4294901760
    %v2102 = vsub.f32 %v114, %v2101
    %v2103 = vand.u32 %v2102, 4294901760
    %v2104 = vsub.f32 %v2102, %v2103
    %v2105 = vand.u32 %v2104, 4294901760
    %2106 = vmatpush1.msra.mxu0 %v2105
    %2107 = vmatprep.subr.mxu0 0.0
    %v2108 = vand.u32 %v115, 4294901760
    %v2109 = vsub.f32 %v115, %v2108
    %v2110 = vand.u32 %v2109, 4294901760
    %v2111 = vsub.f32 %v2109, %v2110
    %v2112 = vand.u32 %v2111, 4294901760
    %2113 = vmatpush1.msra.mxu0 %v2112
    %2114 = vmatprep.subr.mxu0 0.0
    %v2115 = vand.u32 %v116, 4294901760
    %v2116 = vsub.f32 %v116, %v2115
    %v2117 = vand.u32 %v2116, 4294901760
    %v2118 = vsub.f32 %v2116, %v2117
    %v2119 = vand.u32 %v2118, 4294901760
    %2120 = vmatpush1.msra.mxu0 %v2119
    %2121 = vmatprep.subr.mxu0 0.0
    %v2122 = vand.u32 %v117, 4294901760
    %v2123 = vsub.f32 %v117, %v2122
    %v2124 = vand.u32 %v2123, 4294901760
    %v2125 = vsub.f32 %v2123, %v2124
    %v2126 = vand.u32 %v2125, 4294901760
    %2127 = vmatpush1.msra.mxu0 %v2126
    %2128 = vmatprep.subr.mxu0 0.0
    %v2129 = vand.u32 %v118, 4294901760
    %v2130 = vsub.f32 %v118, %v2129
    %v2131 = vand.u32 %v2130, 4294901760
    %v2132 = vsub.f32 %v2130, %v2131
    %v2133 = vand.u32 %v2132, 4294901760
    %2134 = vmatpush1.msra.mxu0 %v2133
    %2135 = vmatprep.subr.mxu0 0.0
    %v2136 = vand.u32 %v119, 4294901760
    %v2137 = vsub.f32 %v119, %v2136
    %v2138 = vand.u32 %v2137, 4294901760
    %v2139 = vsub.f32 %v2137, %v2138
    %v2140 = vand.u32 %v2139, 4294901760
    %2141 = vmatpush1.msra.mxu0 %v2140
    %2142 = vmatprep.subr.mxu0 0.0
    %v2143 = vand.u32 %v120, 4294901760
    %v2144 = vsub.f32 %v120, %v2143
    %v2145 = vand.u32 %v2144, 4294901760
    %v2146 = vsub.f32 %v2144, %v2145
    %v2147 = vand.u32 %v2146, 4294901760
    %2148 = vmatpush1.msra.mxu0 %v2147
    %2149 = vmatprep.subr.mxu0 0.0
    %v2150 = vand.u32 %v121, 4294901760
    %v2151 = vsub.f32 %v121, %v2150
    %v2152 = vand.u32 %v2151, 4294901760
    %v2153 = vsub.f32 %v2151, %v2152
    %v2154 = vand.u32 %v2153, 4294901760
    %2155 = vmatpush1.msra.mxu0 %v2154
    %2156 = vmatprep.subr.mxu0 0.0
    %v2157 = vand.u32 %v122, 4294901760
    %v2158 = vsub.f32 %v122, %v2157
    %v2159 = vand.u32 %v2158, 4294901760
    %v2160 = vsub.f32 %v2158, %v2159
    %v2161 = vand.u32 %v2160, 4294901760
    %2162 = vmatpush1.msra.mxu0 %v2161
    %2163 = vmatprep.subr.mxu0 0.0
    %v2164 = vand.u32 %v123, 4294901760
    %v2165 = vsub.f32 %v123, %v2164
    %v2166 = vand.u32 %v2165, 4294901760
    %v2167 = vsub.f32 %v2165, %v2166
    %v2168 = vand.u32 %v2167, 4294901760
    %2169 = vmatpush1.msra.mxu0 %v2168
    %2170 = vmatprep.subr.mxu0 0.0
    %v2171 = vand.u32 %v124, 4294901760
    %v2172 = vsub.f32 %v124, %v2171
    %v2173 = vand.u32 %v2172, 4294901760
    %v2174 = vsub.f32 %v2172, %v2173
    %v2175 = vand.u32 %v2174, 4294901760
    %2176 = vmatpush1.msra.mxu0 %v2175
    %2177 = vmatprep.subr.mxu0 0.0
    %v2178 = vand.u32 %v125, 4294901760
    %v2179 = vsub.f32 %v125, %v2178
    %v2180 = vand.u32 %v2179, 4294901760
    %v2181 = vsub.f32 %v2179, %v2180
    %v2182 = vand.u32 %v2181, 4294901760
    %2183 = vmatpush1.msra.mxu0 %v2182
    %2184 = vmatprep.subr.mxu0 0.0
    %v2185 = vand.u32 %v126, 4294901760
    %v2186 = vsub.f32 %v126, %v2185
    %v2187 = vand.u32 %v2186, 4294901760
    %v2188 = vsub.f32 %v2186, %v2187
    %v2189 = vand.u32 %v2188, 4294901760
    %2190 = vmatpush1.msra.mxu0 %v2189
    %2191 = vmatprep.subr.mxu0 0.0
    %v2192 = vand.u32 %v127, 4294901760
    %v2193 = vsub.f32 %v127, %v2192
    %v2194 = vand.u32 %v2193, 4294901760
    %v2195 = vsub.f32 %v2193, %v2194
    %v2196 = vand.u32 %v2195, 4294901760
    %2197 = vmatpush1.msra.mxu0 %v2196
    %2198 = vmatprep.subr.mxu0 0.0
    %v2199 = vand.u32 %v128, 4294901760
    %v2200 = vsub.f32 %v128, %v2199
    %v2201 = vand.u32 %v2200, 4294901760
    %v2202 = vsub.f32 %v2200, %v2201
    %v2203 = vand.u32 %v2202, 4294901760
    %2204 = vmatpush1.msra.mxu0 %v2203
    %2205 = vmatprep.subr.mxu0 0.0
    %v2206 = vand.u32 %v129, 4294901760
    %v2207 = vsub.f32 %v129, %v2206
    %v2208 = vand.u32 %v2207, 4294901760
    %v2209 = vsub.f32 %v2207, %v2208
    %v2210 = vand.u32 %v2209, 4294901760
    %2211 = vmatpush1.msra.mxu0 %v2210
    %2212 = vmatprep.subr.mxu0 0.0
    %v2213 = vand.u32 %v130, 4294901760
    %v2214 = vsub.f32 %v130, %v2213
    %v2215 = vand.u32 %v2214, 4294901760
    %v2216 = vsub.f32 %v2214, %v2215
    %v2217 = vand.u32 %v2216, 4294901760
    %2218 = vmatpush1.msra.mxu0 %v2217
    %2219 = vmatprep.subr.mxu0 0.0
    %v2220 = vand.u32 %v131, 4294901760
    %v2221 = vsub.f32 %v131, %v2220
    %v2222 = vand.u32 %v2221, 4294901760
    %v2223 = vsub.f32 %v2221, %v2222
    %v2224 = vand.u32 %v2223, 4294901760
    %2225 = vmatpush1.msra.mxu0 %v2224
    %2226 = vmatprep.subr.mxu0 0.0
    %v2227 = vand.u32 %v132, 4294901760
    %v2228 = vsub.f32 %v132, %v2227
    %v2229 = vand.u32 %v2228, 4294901760
    %v2230 = vsub.f32 %v2228, %v2229
    %v2231 = vand.u32 %v2230, 4294901760
    %2232 = vmatpush1.msra.mxu0 %v2231
    %2233 = vmatprep.subr.mxu0 0.0
    %v2234 = vand.u32 %v133, 4294901760
    %v2235 = vsub.f32 %v133, %v2234
    %v2236 = vand.u32 %v2235, 4294901760
    %v2237 = vsub.f32 %v2235, %v2236
    %v2238 = vand.u32 %v2237, 4294901760
    %2239 = vmatpush1.msra.mxu0 %v2238
    %2240 = vmatprep.subr.mxu0 0.0
    %v2241 = vand.u32 %v134, 4294901760
    %v2242 = vsub.f32 %v134, %v2241
    %v2243 = vand.u32 %v2242, 4294901760
    %v2244 = vsub.f32 %v2242, %v2243
    %v2245 = vand.u32 %v2244, 4294901760
    %2246 = vmatpush1.msra.mxu0 %v2245
    %2247 = vmatprep.subr.mxu0 0.0
    %v2248 = vand.u32 %v135, 4294901760
    %v2249 = vsub.f32 %v135, %v2248
    %v2250 = vand.u32 %v2249, 4294901760
    %v2251 = vsub.f32 %v2249, %v2250
    %v2252 = vand.u32 %v2251, 4294901760
    %2253 = vmatpush1.msra.mxu0 %v2252
    %2254 = vmatprep.subr.mxu0 0.0
    %v2255 = vand.u32 %v136, 4294901760
    %v2256 = vsub.f32 %v136, %v2255
    %v2257 = vand.u32 %v2256, 4294901760
    %v2258 = vsub.f32 %v2256, %v2257
    %v2259 = vand.u32 %v2258, 4294901760
    %2260 = vmatpush1.msra.mxu0 %v2259
    %2261 = vmatprep.subr.mxu0 0.0
    %v2262 = vand.u32 %v137, 4294901760
    %v2263 = vsub.f32 %v137, %v2262
    %v2264 = vand.u32 %v2263, 4294901760
    %v2265 = vsub.f32 %v2263, %v2264
    %v2266 = vand.u32 %v2265, 4294901760
    %2267 = vmatpush1.msra.mxu0 %v2266
    %2268 = vmatprep.subr.mxu0 0.0
    %v2269 = vand.u32 %v138, 4294901760
    %v2270 = vsub.f32 %v138, %v2269
    %v2271 = vand.u32 %v2270, 4294901760
    %v2272 = vsub.f32 %v2270, %v2271
    %v2273 = vand.u32 %v2272, 4294901760
    %2274 = vmatpush1.msra.mxu0 %v2273
    %v2275 = vand.u32 %v205, 4294901760
    %2276 = vmatprep.mubr.f32.mxu0 %v2275
    %v2277 = vand.u32 %v197, 4294901760
    %2278 = vmatmul.mubr.f32.gmra.mrb[0].mxu0 %v2277
    %v2279 = vpop.f32.mrb[0].mxu0
    %v2280 = vadd.f32 %v2048, %v2279
    %v2281 = vpop.f32.mrb[0].mxu0
    %2282 = vdwg.mxu0
    %2283 = vmatprep.subr.mxu0 0.0
    %v2284 = vand.u32 %v107, 4294901760
    %v2285 = vsub.f32 %v107, %v2284
    %2286 = vmatpush1.msra.mxu0 %v2285
    %2287 = vmatprep.subr.mxu0 0.0
    %v2288 = vand.u32 %v108, 4294901760
    %v2289 = vsub.f32 %v108, %v2288
    %2290 = vmatpush1.msra.mxu0 %v2289
    %2291 = vmatprep.subr.mxu0 0.0
    %v2292 = vand.u32 %v109, 4294901760
    %v2293 = vsub.f32 %v109, %v2292
    %2294 = vmatpush1.msra.mxu0 %v2293
    %2295 = vmatprep.subr.mxu0 0.0
    %v2296 = vand.u32 %v110, 4294901760
    %v2297 = vsub.f32 %v110, %v2296
    %2298 = vmatpush1.msra.mxu0 %v2297
    %2299 = vmatprep.subr.mxu0 0.0
    %v2300 = vand.u32 %v111, 4294901760
    %v2301 = vsub.f32 %v111, %v2300
    %2302 = vmatpush1.msra.mxu0 %v2301
    %2303 = vmatprep.subr.mxu0 0.0
    %v2304 = vand.u32 %v112, 4294901760
    %v2305 = vsub.f32 %v112, %v2304
    %2306 = vmatpush1.msra.mxu0 %v2305
    %2307 = vmatprep.subr.mxu0 0.0
    %v2308 = vand.u32 %v113, 4294901760
    %v2309 = vsub.f32 %v113, %v2308
    %2310 = vmatpush1.msra.mxu0 %v2309
    %2311 = vmatprep.subr.mxu0 0.0
    %v2312 = vand.u32 %v114, 4294901760
    %v2313 = vsub.f32 %v114, %v2312
    %2314 = vmatpush1.msra.mxu0 %v2313
    %2315 = vmatprep.subr.mxu0 0.0
    %v2316 = vand.u32 %v115, 4294901760
    %v2317 = vsub.f32 %v115, %v2316
    %2318 = vmatpush1.msra.mxu0 %v2317
    %2319 = vmatprep.subr.mxu0 0.0
    %v2320 = vand.u32 %v116, 4294901760
    %v2321 = vsub.f32 %v116, %v2320
    %2322 = vmatpush1.msra.mxu0 %v2321
    %2323 = vmatprep.subr.mxu0 0.0
    %v2324 = vand.u32 %v117, 4294901760
    %v2325 = vsub.f32 %v117, %v2324
    %2326 = vmatpush1.msra.mxu0 %v2325
    %2327 = vmatprep.subr.mxu0 0.0
    %v2328 = vand.u32 %v118, 4294901760
    %v2329 = vsub.f32 %v118, %v2328
    %2330 = vmatpush1.msra.mxu0 %v2329
    %2331 = vmatprep.subr.mxu0 0.0
    %v2332 = vand.u32 %v119, 4294901760
    %v2333 = vsub.f32 %v119, %v2332
    %2334 = vmatpush1.msra.mxu0 %v2333
    %2335 = vmatprep.subr.mxu0 0.0
    %v2336 = vand.u32 %v120, 4294901760
    %v2337 = vsub.f32 %v120, %v2336
    %2338 = vmatpush1.msra.mxu0 %v2337
    %2339 = vmatprep.subr.mxu0 0.0
    %v2340 = vand.u32 %v121, 4294901760
    %v2341 = vsub.f32 %v121, %v2340
    %2342 = vmatpush1.msra.mxu0 %v2341
    %2343 = vmatprep.subr.mxu0 0.0
    %v2344 = vand.u32 %v122, 4294901760
    %v2345 = vsub.f32 %v122, %v2344
    %2346 = vmatpush1.msra.mxu0 %v2345
    %2347 = vmatprep.subr.mxu0 0.0
    %v2348 = vand.u32 %v123, 4294901760
    %v2349 = vsub.f32 %v123, %v2348
    %2350 = vmatpush1.msra.mxu0 %v2349
    %2351 = vmatprep.subr.mxu0 0.0
    %v2352 = vand.u32 %v124, 4294901760
    %v2353 = vsub.f32 %v124, %v2352
    %2354 = vmatpush1.msra.mxu0 %v2353
    %2355 = vmatprep.subr.mxu0 0.0
    %v2356 = vand.u32 %v125, 4294901760
    %v2357 = vsub.f32 %v125, %v2356
    %2358 = vmatpush1.msra.mxu0 %v2357
    %2359 = vmatprep.subr.mxu0 0.0
    %v2360 = vand.u32 %v126, 4294901760
    %v2361 = vsub.f32 %v126, %v2360
    %2362 = vmatpush1.msra.mxu0 %v2361
    %2363 = vmatprep.subr.mxu0 0.0
    %v2364 = vand.u32 %v127, 4294901760
    %v2365 = vsub.f32 %v127, %v2364
    %2366 = vmatpush1.msra.mxu0 %v2365
    %2367 = vmatprep.subr.mxu0 0.0
    %v2368 = vand.u32 %v128, 4294901760
    %v2369 = vsub.f32 %v128, %v2368
    %2370 = vmatpush1.msra.mxu0 %v2369
    %2371 = vmatprep.subr.mxu0 0.0
    %v2372 = vand.u32 %v129, 4294901760
    %v2373 = vsub.f32 %v129, %v2372
    %2374 = vmatpush1.msra.mxu0 %v2373
    %2375 = vmatprep.subr.mxu0 0.0
    %v2376 = vand.u32 %v130, 4294901760
    %v2377 = vsub.f32 %v130, %v2376
    %2378 = vmatpush1.msra.mxu0 %v2377
    %2379 = vmatprep.subr.mxu0 0.0
    %v2380 = vand.u32 %v131, 4294901760
    %v2381 = vsub.f32 %v131, %v2380
    %2382 = vmatpush1.msra.mxu0 %v2381
    %2383 = vmatprep.subr.mxu0 0.0
    %v2384 = vand.u32 %v132, 4294901760
    %v2385 = vsub.f32 %v132, %v2384
    %2386 = vmatpush1.msra.mxu0 %v2385
    %2387 = vmatprep.subr.mxu0 0.0
    %v2388 = vand.u32 %v133, 4294901760
    %v2389 = vsub.f32 %v133, %v2388
    %2390 = vmatpush1.msra.mxu0 %v2389
    %2391 = vmatprep.subr.mxu0 0.0
    %v2392 = vand.u32 %v134, 4294901760
    %v2393 = vsub.f32 %v134, %v2392
    %2394 = vmatpush1.msra.mxu0 %v2393
    %2395 = vmatprep.subr.mxu0 0.0
    %v2396 = vand.u32 %v135, 4294901760
    %v2397 = vsub.f32 %v135, %v2396
    %2398 = vmatpush1.msra.mxu0 %v2397
    %2399 = vmatprep.subr.mxu0 0.0
    %v2400 = vand.u32 %v136, 4294901760
    %v2401 = vsub.f32 %v136, %v2400
    %2402 = vmatpush1.msra.mxu0 %v2401
    %2403 = vmatprep.subr.mxu0 0.0
    %v2404 = vand.u32 %v137, 4294901760
    %v2405 = vsub.f32 %v137, %v2404
    %2406 = vmatpush1.msra.mxu0 %v2405
    %2407 = vmatprep.subr.mxu0 0.0
    %v2408 = vand.u32 %v138, 4294901760
    %v2409 = vsub.f32 %v138, %v2408
    %2410 = vmatpush1.msra.mxu0 %v2409
    %v2411 = vand.u32 %v205, 4294901760
    %v2412 = vsub.f32 %v205, %v2411
    %2413 = vmatprep.mubr.f32.mxu0 %v2412
    %v2414 = vand.u32 %v197, 4294901760
    %v2415 = vsub.f32 %v197, %v2414
    %2416 = vmatmul.mubr.f32.gmra.mrb[0].mxu0 %v2415
    %v2417 = vpop.f32.mrb[0].mxu0
    %v2418 = vadd.f32 %v2280, %v2417
    %v2419 = vpop.f32.mrb[0].mxu0
    %2420 = vdwg.mxu0
    %2421 = vmatprep.subr.mxu0 0.0
    %v2422 = vand.u32 %v107, 4294901760
    %2423 = vmatpush1.msra.mxu0 %v2422
    %2424 = vmatprep.subr.mxu0 0.0
    %v2425 = vand.u32 %v108, 4294901760
    %2426 = vmatpush1.msra.mxu0 %v2425
    %2427 = vmatprep.subr.mxu0 0.0
    %v2428 = vand.u32 %v109, 4294901760
    %2429 = vmatpush1.msra.mxu0 %v2428
    %2430 = vmatprep.subr.mxu0 0.0
    %v2431 = vand.u32 %v110, 4294901760
    %2432 = vmatpush1.msra.mxu0 %v2431
    %2433 = vmatprep.subr.mxu0 0.0
    %v2434 = vand.u32 %v111, 4294901760
    %2435 = vmatpush1.msra.mxu0 %v2434
    %2436 = vmatprep.subr.mxu0 0.0
    %v2437 = vand.u32 %v112, 4294901760
    %2438 = vmatpush1.msra.mxu0 %v2437
    %2439 = vmatprep.subr.mxu0 0.0
    %v2440 = vand.u32 %v113, 4294901760
    %2441 = vmatpush1.msra.mxu0 %v2440
    %2442 = vmatprep.subr.mxu0 0.0
    %v2443 = vand.u32 %v114, 4294901760
    %2444 = vmatpush1.msra.mxu0 %v2443
    %2445 = vmatprep.subr.mxu0 0.0
    %v2446 = vand.u32 %v115, 4294901760
    %2447 = vmatpush1.msra.mxu0 %v2446
    %2448 = vmatprep.subr.mxu0 0.0
    %v2449 = vand.u32 %v116, 4294901760
    %2450 = vmatpush1.msra.mxu0 %v2449
    %2451 = vmatprep.subr.mxu0 0.0
    %v2452 = vand.u32 %v117, 4294901760
    %2453 = vmatpush1.msra.mxu0 %v2452
    %2454 = vmatprep.subr.mxu0 0.0
    %v2455 = vand.u32 %v118, 4294901760
    %2456 = vmatpush1.msra.mxu0 %v2455
    %2457 = vmatprep.subr.mxu0 0.0
    %v2458 = vand.u32 %v119, 4294901760
    %2459 = vmatpush1.msra.mxu0 %v2458
    %2460 = vmatprep.subr.mxu0 0.0
    %v2461 = vand.u32 %v120, 4294901760
    %2462 = vmatpush1.msra.mxu0 %v2461
    %2463 = vmatprep.subr.mxu0 0.0
    %v2464 = vand.u32 %v121, 4294901760
    %2465 = vmatpush1.msra.mxu0 %v2464
    %2466 = vmatprep.subr.mxu0 0.0
    %v2467 = vand.u32 %v122, 4294901760
    %2468 = vmatpush1.msra.mxu0 %v2467
    %2469 = vmatprep.subr.mxu0 0.0
    %v2470 = vand.u32 %v123, 4294901760
    %2471 = vmatpush1.msra.mxu0 %v2470
    %2472 = vmatprep.subr.mxu0 0.0
    %v2473 = vand.u32 %v124, 4294901760
    %2474 = vmatpush1.msra.mxu0 %v2473
    %2475 = vmatprep.subr.mxu0 0.0
    %v2476 = vand.u32 %v125, 4294901760
    %2477 = vmatpush1.msra.mxu0 %v2476
    %2478 = vmatprep.subr.mxu0 0.0
    %v2479 = vand.u32 %v126, 4294901760
    %2480 = vmatpush1.msra.mxu0 %v2479
    %2481 = vmatprep.subr.mxu0 0.0
    %v2482 = vand.u32 %v127, 4294901760
    %2483 = vmatpush1.msra.mxu0 %v2482
    %2484 = vmatprep.subr.mxu0 0.0
    %v2485 = vand.u32 %v128, 4294901760
    %2486 = vmatpush1.msra.mxu0 %v2485
    %2487 = vmatprep.subr.mxu0 0.0
    %v2488 = vand.u32 %v129, 4294901760
    %2489 = vmatpush1.msra.mxu0 %v2488
    %2490 = vmatprep.subr.mxu0 0.0
    %v2491 = vand.u32 %v130, 4294901760
    %2492 = vmatpush1.msra.mxu0 %v2491
    %2493 = vmatprep.subr.mxu0 0.0
    %v2494 = vand.u32 %v131, 4294901760
    %2495 = vmatpush1.msra.mxu0 %v2494
    %2496 = vmatprep.subr.mxu0 0.0
    %v2497 = vand.u32 %v132, 4294901760
    %2498 = vmatpush1.msra.mxu0 %v2497
    %2499 = vmatprep.subr.mxu0 0.0
    %v2500 = vand.u32 %v133, 4294901760
    %2501 = vmatpush1.msra.mxu0 %v2500
    %2502 = vmatprep.subr.mxu0 0.0
    %v2503 = vand.u32 %v134, 4294901760
    %2504 = vmatpush1.msra.mxu0 %v2503
    %2505 = vmatprep.subr.mxu0 0.0
    %v2506 = vand.u32 %v135, 4294901760
    %2507 = vmatpush1.msra.mxu0 %v2506
    %2508 = vmatprep.subr.mxu0 0.0
    %v2509 = vand.u32 %v136, 4294901760
    %2510 = vmatpush1.msra.mxu0 %v2509
    %2511 = vmatprep.subr.mxu0 0.0
    %v2512 = vand.u32 %v137, 4294901760
    %2513 = vmatpush1.msra.mxu0 %v2512
    %2514 = vmatprep.subr.mxu0 0.0
    %v2515 = vand.u32 %v138, 4294901760
    %2516 = vmatpush1.msra.mxu0 %v2515
    %v2517 = vand.u32 %v205, 4294901760
    %v2518 = vsub.f32 %v205, %v2517
    %v2519 = vand.u32 %v2518, 4294901760
    %2520 = vmatprep.mubr.f32.mxu0 %v2519
    %v2521 = vand.u32 %v197, 4294901760
    %v2522 = vsub.f32 %v197, %v2521
    %v2523 = vand.u32 %v2522, 4294901760
    %2524 = vmatmul.mubr.f32.gmra.mrb[0].mxu0 %v2523
    %v2525 = vpop.f32.mrb[0].mxu0
    %v2526 = vadd.f32 %v2418, %v2525
    %v2527 = vpop.f32.mrb[0].mxu0
    %2528 = vdwg.mxu0
    %2529 = vmatprep.subr.mxu0 0.0
    %v2530 = vand.u32 %v107, 4294901760
    %v2531 = vsub.f32 %v107, %v2530
    %v2532 = vand.u32 %v2531, 4294901760
    %2533 = vmatpush1.msra.mxu0 %v2532
    %2534 = vmatprep.subr.mxu0 0.0
    %v2535 = vand.u32 %v108, 4294901760
    %v2536 = vsub.f32 %v108, %v2535
    %v2537 = vand.u32 %v2536, 4294901760
    %2538 = vmatpush1.msra.mxu0 %v2537
    %2539 = vmatprep.subr.mxu0 0.0
    %v2540 = vand.u32 %v109, 4294901760
    %v2541 = vsub.f32 %v109, %v2540
    %v2542 = vand.u32 %v2541, 4294901760
    %2543 = vmatpush1.msra.mxu0 %v2542
    %2544 = vmatprep.subr.mxu0 0.0
    %v2545 = vand.u32 %v110, 4294901760
    %v2546 = vsub.f32 %v110, %v2545
    %v2547 = vand.u32 %v2546, 4294901760
    %2548 = vmatpush1.msra.mxu0 %v2547
    %2549 = vmatprep.subr.mxu0 0.0
    %v2550 = vand.u32 %v111, 4294901760
    %v2551 = vsub.f32 %v111, %v2550
    %v2552 = vand.u32 %v2551, 4294901760
    %2553 = vmatpush1.msra.mxu0 %v2552
    %2554 = vmatprep.subr.mxu0 0.0
    %v2555 = vand.u32 %v112, 4294901760
    %v2556 = vsub.f32 %v112, %v2555
    %v2557 = vand.u32 %v2556, 4294901760
    %2558 = vmatpush1.msra.mxu0 %v2557
    %2559 = vmatprep.subr.mxu0 0.0
    %v2560 = vand.u32 %v113, 4294901760
    %v2561 = vsub.f32 %v113, %v2560
    %v2562 = vand.u32 %v2561, 4294901760
    %2563 = vmatpush1.msra.mxu0 %v2562
    %2564 = vmatprep.subr.mxu0 0.0
    %v2565 = vand.u32 %v114, 4294901760
    %v2566 = vsub.f32 %v114, %v2565
    %v2567 = vand.u32 %v2566, 4294901760
    %2568 = vmatpush1.msra.mxu0 %v2567
    %2569 = vmatprep.subr.mxu0 0.0
    %v2570 = vand.u32 %v115, 4294901760
    %v2571 = vsub.f32 %v115, %v2570
    %v2572 = vand.u32 %v2571, 4294901760
    %2573 = vmatpush1.msra.mxu0 %v2572
    %2574 = vmatprep.subr.mxu0 0.0
    %v2575 = vand.u32 %v116, 4294901760
    %v2576 = vsub.f32 %v116, %v2575
    %v2577 = vand.u32 %v2576, 4294901760
    %2578 = vmatpush1.msra.mxu0 %v2577
    %2579 = vmatprep.subr.mxu0 0.0
    %v2580 = vand.u32 %v117, 4294901760
    %v2581 = vsub.f32 %v117, %v2580
    %v2582 = vand.u32 %v2581, 4294901760
    %2583 = vmatpush1.msra.mxu0 %v2582
    %2584 = vmatprep.subr.mxu0 0.0
    %v2585 = vand.u32 %v118, 4294901760
    %v2586 = vsub.f32 %v118, %v2585
    %v2587 = vand.u32 %v2586, 4294901760
    %2588 = vmatpush1.msra.mxu0 %v2587
    %2589 = vmatprep.subr.mxu0 0.0
    %v2590 = vand.u32 %v119, 4294901760
    %v2591 = vsub.f32 %v119, %v2590
    %v2592 = vand.u32 %v2591, 4294901760
    %2593 = vmatpush1.msra.mxu0 %v2592
    %2594 = vmatprep.subr.mxu0 0.0
    %v2595 = vand.u32 %v120, 4294901760
    %v2596 = vsub.f32 %v120, %v2595
    %v2597 = vand.u32 %v2596, 4294901760
    %2598 = vmatpush1.msra.mxu0 %v2597
    %2599 = vmatprep.subr.mxu0 0.0
    %v2600 = vand.u32 %v121, 4294901760
    %v2601 = vsub.f32 %v121, %v2600
    %v2602 = vand.u32 %v2601, 4294901760
    %2603 = vmatpush1.msra.mxu0 %v2602
    %2604 = vmatprep.subr.mxu0 0.0
    %v2605 = vand.u32 %v122, 4294901760
    %v2606 = vsub.f32 %v122, %v2605
    %v2607 = vand.u32 %v2606, 4294901760
    %2608 = vmatpush1.msra.mxu0 %v2607
    %2609 = vmatprep.subr.mxu0 0.0
    %v2610 = vand.u32 %v123, 4294901760
    %v2611 = vsub.f32 %v123, %v2610
    %v2612 = vand.u32 %v2611, 4294901760
    %2613 = vmatpush1.msra.mxu0 %v2612
    %2614 = vmatprep.subr.mxu0 0.0
    %v2615 = vand.u32 %v124, 4294901760
    %v2616 = vsub.f32 %v124, %v2615
    %v2617 = vand.u32 %v2616, 4294901760
    %2618 = vmatpush1.msra.mxu0 %v2617
    %2619 = vmatprep.subr.mxu0 0.0
    %v2620 = vand.u32 %v125, 4294901760
    %v2621 = vsub.f32 %v125, %v2620
    %v2622 = vand.u32 %v2621, 4294901760
    %2623 = vmatpush1.msra.mxu0 %v2622
    %2624 = vmatprep.subr.mxu0 0.0
    %v2625 = vand.u32 %v126, 4294901760
    %v2626 = vsub.f32 %v126, %v2625
    %v2627 = vand.u32 %v2626, 4294901760
    %2628 = vmatpush1.msra.mxu0 %v2627
    %2629 = vmatprep.subr.mxu0 0.0
    %v2630 = vand.u32 %v127, 4294901760
    %v2631 = vsub.f32 %v127, %v2630
    %v2632 = vand.u32 %v2631, 4294901760
    %2633 = vmatpush1.msra.mxu0 %v2632
    %2634 = vmatprep.subr.mxu0 0.0
    %v2635 = vand.u32 %v128, 4294901760
    %v2636 = vsub.f32 %v128, %v2635
    %v2637 = vand.u32 %v2636, 4294901760
    %2638 = vmatpush1.msra.mxu0 %v2637
    %2639 = vmatprep.subr.mxu0 0.0
    %v2640 = vand.u32 %v129, 4294901760
    %v2641 = vsub.f32 %v129, %v2640
    %v2642 = vand.u32 %v2641, 4294901760
    %2643 = vmatpush1.msra.mxu0 %v2642
    %2644 = vmatprep.subr.mxu0 0.0
    %v2645 = vand.u32 %v130, 4294901760
    %v2646 = vsub.f32 %v130, %v2645
    %v2647 = vand.u32 %v2646, 4294901760
    %2648 = vmatpush1.msra.mxu0 %v2647
    %2649 = vmatprep.subr.mxu0 0.0
    %v2650 = vand.u32 %v131, 4294901760
    %v2651 = vsub.f32 %v131, %v2650
    %v2652 = vand.u32 %v2651, 4294901760
    %2653 = vmatpush1.msra.mxu0 %v2652
    %2654 = vmatprep.subr.mxu0 0.0
    %v2655 = vand.u32 %v132, 4294901760
    %v2656 = vsub.f32 %v132, %v2655
    %v2657 = vand.u32 %v2656, 4294901760
    %2658 = vmatpush1.msra.mxu0 %v2657
    %2659 = vmatprep.subr.mxu0 0.0
    %v2660 = vand.u32 %v133, 4294901760
    %v2661 = vsub.f32 %v133, %v2660
    %v2662 = vand.u32 %v2661, 4294901760
    %2663 = vmatpush1.msra.mxu0 %v2662
    %2664 = vmatprep.subr.mxu0 0.0
    %v2665 = vand.u32 %v134, 4294901760
    %v2666 = vsub.f32 %v134, %v2665
    %v2667 = vand.u32 %v2666, 4294901760
    %2668 = vmatpush1.msra.mxu0 %v2667
    %2669 = vmatprep.subr.mxu0 0.0
    %v2670 = vand.u32 %v135, 4294901760
    %v2671 = vsub.f32 %v135, %v2670
    %v2672 = vand.u32 %v2671, 4294901760
    %2673 = vmatpush1.msra.mxu0 %v2672
    %2674 = vmatprep.subr.mxu0 0.0
    %v2675 = vand.u32 %v136, 4294901760
    %v2676 = vsub.f32 %v136, %v2675
    %v2677 = vand.u32 %v2676, 4294901760
    %2678 = vmatpush1.msra.mxu0 %v2677
    %2679 = vmatprep.subr.mxu0 0.0
    %v2680 = vand.u32 %v137, 4294901760
    %v2681 = vsub.f32 %v137, %v2680
    %v2682 = vand.u32 %v2681, 4294901760
    %2683 = vmatpush1.msra.mxu0 %v2682
    %2684 = vmatprep.subr.mxu0 0.0
    %v2685 = vand.u32 %v138, 4294901760
    %v2686 = vsub.f32 %v138, %v2685
    %v2687 = vand.u32 %v2686, 4294901760
    %2688 = vmatpush1.msra.mxu0 %v2687
    %v2689 = vand.u32 %v205, 4294901760
    %2690 = vmatprep.mubr.f32.mxu0 %v2689
    %v2691 = vand.u32 %v197, 4294901760
    %2692 = vmatmul.mubr.f32.gmra.mrb[0].mxu0 %v2691
    %v2693 = vpop.f32.mrb[0].mxu0
    %v2694 = vadd.f32 %v2526, %v2693
    %v2695 = vpop.f32.mrb[0].mxu0
    %2696 = vdwg.mxu0
    %2697 = vmatprep.subr.mxu0 0.0
    %v2698 = vand.u32 %v107, 4294901760
    %2699 = vmatpush1.msra.mxu0 %v2698
    %2700 = vmatprep.subr.mxu0 0.0
    %v2701 = vand.u32 %v108, 4294901760
    %2702 = vmatpush1.msra.mxu0 %v2701
    %2703 = vmatprep.subr.mxu0 0.0
    %v2704 = vand.u32 %v109, 4294901760
    %2705 = vmatpush1.msra.mxu0 %v2704
    %2706 = vmatprep.subr.mxu0 0.0
    %v2707 = vand.u32 %v110, 4294901760
    %2708 = vmatpush1.msra.mxu0 %v2707
    %2709 = vmatprep.subr.mxu0 0.0
    %v2710 = vand.u32 %v111, 4294901760
    %2711 = vmatpush1.msra.mxu0 %v2710
    %2712 = vmatprep.subr.mxu0 0.0
    %v2713 = vand.u32 %v112, 4294901760
    %2714 = vmatpush1.msra.mxu0 %v2713
    %2715 = vmatprep.subr.mxu0 0.0
    %v2716 = vand.u32 %v113, 4294901760
    %2717 = vmatpush1.msra.mxu0 %v2716
    %2718 = vmatprep.subr.mxu0 0.0
    %v2719 = vand.u32 %v114, 4294901760
    %2720 = vmatpush1.msra.mxu0 %v2719
    %2721 = vmatprep.subr.mxu0 0.0
    %v2722 = vand.u32 %v115, 4294901760
    %2723 = vmatpush1.msra.mxu0 %v2722
    %2724 = vmatprep.subr.mxu0 0.0
    %v2725 = vand.u32 %v116, 4294901760
    %2726 = vmatpush1.msra.mxu0 %v2725
    %2727 = vmatprep.subr.mxu0 0.0
    %v2728 = vand.u32 %v117, 4294901760
    %2729 = vmatpush1.msra.mxu0 %v2728
    %2730 = vmatprep.subr.mxu0 0.0
    %v2731 = vand.u32 %v118, 4294901760
    %2732 = vmatpush1.msra.mxu0 %v2731
    %2733 = vmatprep.subr.mxu0 0.0
    %v2734 = vand.u32 %v119, 4294901760
    %2735 = vmatpush1.msra.mxu0 %v2734
    %2736 = vmatprep.subr.mxu0 0.0
    %v2737 = vand.u32 %v120, 4294901760
    %2738 = vmatpush1.msra.mxu0 %v2737
    %2739 = vmatprep.subr.mxu0 0.0
    %v2740 = vand.u32 %v121, 4294901760
    %2741 = vmatpush1.msra.mxu0 %v2740
    %2742 = vmatprep.subr.mxu0 0.0
    %v2743 = vand.u32 %v122, 4294901760
    %2744 = vmatpush1.msra.mxu0 %v2743
    %2745 = vmatprep.subr.mxu0 0.0
    %v2746 = vand.u32 %v123, 4294901760
    %2747 = vmatpush1.msra.mxu0 %v2746
    %2748 = vmatprep.subr.mxu0 0.0
    %v2749 = vand.u32 %v124, 4294901760
    %2750 = vmatpush1.msra.mxu0 %v2749
    %2751 = vmatprep.subr.mxu0 0.0
    %v2752 = vand.u32 %v125, 4294901760
    %2753 = vmatpush1.msra.mxu0 %v2752
    %2754 = vmatprep.subr.mxu0 0.0
    %v2755 = vand.u32 %v126, 4294901760
    %2756 = vmatpush1.msra.mxu0 %v2755
    %2757 = vmatprep.subr.mxu0 0.0
    %v2758 = vand.u32 %v127, 4294901760
    %2759 = vmatpush1.msra.mxu0 %v2758
    %2760 = vmatprep.subr.mxu0 0.0
    %v2761 = vand.u32 %v128, 4294901760
    %2762 = vmatpush1.msra.mxu0 %v2761
    %2763 = vmatprep.subr.mxu0 0.0
    %v2764 = vand.u32 %v129, 4294901760
    %2765 = vmatpush1.msra.mxu0 %v2764
    %2766 = vmatprep.subr.mxu0 0.0
    %v2767 = vand.u32 %v130, 4294901760
    %2768 = vmatpush1.msra.mxu0 %v2767
    %2769 = vmatprep.subr.mxu0 0.0
    %v2770 = vand.u32 %v131, 4294901760
    %2771 = vmatpush1.msra.mxu0 %v2770
    %2772 = vmatprep.subr.mxu0 0.0
    %v2773 = vand.u32 %v132, 4294901760
    %2774 = vmatpush1.msra.mxu0 %v2773
    %2775 = vmatprep.subr.mxu0 0.0
    %v2776 = vand.u32 %v133, 4294901760
    %2777 = vmatpush1.msra.mxu0 %v2776
    %2778 = vmatprep.subr.mxu0 0.0
    %v2779 = vand.u32 %v134, 4294901760
    %2780 = vmatpush1.msra.mxu0 %v2779
    %2781 = vmatprep.subr.mxu0 0.0
    %v2782 = vand.u32 %v135, 4294901760
    %2783 = vmatpush1.msra.mxu0 %v2782
    %2784 = vmatprep.subr.mxu0 0.0
    %v2785 = vand.u32 %v136, 4294901760
    %2786 = vmatpush1.msra.mxu0 %v2785
    %2787 = vmatprep.subr.mxu0 0.0
    %v2788 = vand.u32 %v137, 4294901760
    %2789 = vmatpush1.msra.mxu0 %v2788
    %2790 = vmatprep.subr.mxu0 0.0
    %v2791 = vand.u32 %v138, 4294901760
    %2792 = vmatpush1.msra.mxu0 %v2791
    %v2793 = vand.u32 %v205, 4294901760
    %2794 = vmatprep.mubr.f32.mxu0 %v2793
    %v2795 = vand.u32 %v197, 4294901760
    %2796 = vmatmul.mubr.f32.gmra.mrb[0].mxu0 %v2795
    %v2797 = vpop.f32.mrb[0].mxu0
    %v2798 = vadd.f32 %v2694, %v2797
    %v2799 = vpop.f32.mrb[0].mxu0
    %2800 = vdwg.mxu0
    %2801 = vmatprep.subr.mxu0 0.0
    %v2802 = vand.u32 %v139, 4294901760
    %2803 = vmatpush1.msra.mxu0 %v2802
    %2804 = vmatprep.subr.mxu0 0.0
    %v2805 = vand.u32 %v140, 4294901760
    %2806 = vmatpush1.msra.mxu0 %v2805
    %2807 = vmatprep.subr.mxu0 0.0
    %v2808 = vand.u32 %v141, 4294901760
    %2809 = vmatpush1.msra.mxu0 %v2808
    %2810 = vmatprep.subr.mxu0 0.0
    %v2811 = vand.u32 %v142, 4294901760
    %2812 = vmatpush1.msra.mxu0 %v2811
    %2813 = vmatprep.subr.mxu0 0.0
    %v2814 = vand.u32 %v143, 4294901760
    %2815 = vmatpush1.msra.mxu0 %v2814
    %2816 = vmatprep.subr.mxu0 0.0
    %v2817 = vand.u32 %v144, 4294901760
    %2818 = vmatpush1.msra.mxu0 %v2817
    %2819 = vmatprep.subr.mxu0 0.0
    %v2820 = vand.u32 %v145, 4294901760
    %2821 = vmatpush1.msra.mxu0 %v2820
    %2822 = vmatprep.subr.mxu0 0.0
    %v2823 = vand.u32 %v146, 4294901760
    %2824 = vmatpush1.msra.mxu0 %v2823
    %2825 = vmatprep.subr.mxu0 0.0
    %v2826 = vand.u32 %v147, 4294901760
    %2827 = vmatpush1.msra.mxu0 %v2826
    %2828 = vmatprep.subr.mxu0 0.0
    %v2829 = vand.u32 %v148, 4294901760
    %2830 = vmatpush1.msra.mxu0 %v2829
    %2831 = vmatprep.subr.mxu0 0.0
    %v2832 = vand.u32 %v149, 4294901760
    %2833 = vmatpush1.msra.mxu0 %v2832
    %2834 = vmatprep.subr.mxu0 0.0
    %v2835 = vand.u32 %v150, 4294901760
    %2836 = vmatpush1.msra.mxu0 %v2835
    %2837 = vmatprep.subr.mxu0 0.0
    %v2838 = vand.u32 %v151, 4294901760
    %2839 = vmatpush1.msra.mxu0 %v2838
    %2840 = vmatprep.subr.mxu0 0.0
    %v2841 = vand.u32 %v152, 4294901760
    %2842 = vmatpush1.msra.mxu0 %v2841
    %2843 = vmatprep.subr.mxu0 0.0
    %v2844 = vand.u32 %v153, 4294901760
    %2845 = vmatpush1.msra.mxu0 %v2844
    %2846 = vmatprep.subr.mxu0 0.0
    %v2847 = vand.u32 %v154, 4294901760
    %2848 = vmatpush1.msra.mxu0 %v2847
    %2849 = vmatprep.subr.mxu0 0.0
    %v2850 = vand.u32 %v155, 4294901760
    %2851 = vmatpush1.msra.mxu0 %v2850
    %2852 = vmatprep.subr.mxu0 0.0
    %v2853 = vand.u32 %v156, 4294901760
    %2854 = vmatpush1.msra.mxu0 %v2853
    %2855 = vmatprep.subr.mxu0 0.0
    %v2856 = vand.u32 %v157, 4294901760
    %2857 = vmatpush1.msra.mxu0 %v2856
    %2858 = vmatprep.subr.mxu0 0.0
    %v2859 = vand.u32 %v158, 4294901760
    %2860 = vmatpush1.msra.mxu0 %v2859
    %2861 = vmatprep.subr.mxu0 0.0
    %v2862 = vand.u32 %v159, 4294901760
    %2863 = vmatpush1.msra.mxu0 %v2862
    %2864 = vmatprep.subr.mxu0 0.0
    %v2865 = vand.u32 %v160, 4294901760
    %2866 = vmatpush1.msra.mxu0 %v2865
    %2867 = vmatprep.subr.mxu0 0.0
    %v2868 = vand.u32 %v161, 4294901760
    %2869 = vmatpush1.msra.mxu0 %v2868
    %2870 = vmatprep.subr.mxu0 0.0
    %v2871 = vand.u32 %v162, 4294901760
    %2872 = vmatpush1.msra.mxu0 %v2871
    %2873 = vmatprep.subr.mxu0 0.0
    %v2874 = vand.u32 %v163, 4294901760
    %2875 = vmatpush1.msra.mxu0 %v2874
    %2876 = vmatprep.subr.mxu0 0.0
    %v2877 = vand.u32 %v164, 4294901760
    %2878 = vmatpush1.msra.mxu0 %v2877
    %2879 = vmatprep.subr.mxu0 0.0
    %v2880 = vand.u32 %v165, 4294901760
    %2881 = vmatpush1.msra.mxu0 %v2880
    %2882 = vmatprep.subr.mxu0 0.0
    %v2883 = vand.u32 %v166, 4294901760
    %2884 = vmatpush1.msra.mxu0 %v2883
    %2885 = vmatprep.subr.mxu0 0.0
    %v2886 = vand.u32 %v167, 4294901760
    %2887 = vmatpush1.msra.mxu0 %v2886
    %2888 = vmatprep.subr.mxu0 0.0
    %v2889 = vand.u32 %v168, 4294901760
    %2890 = vmatpush1.msra.mxu0 %v2889
    %2891 = vmatprep.subr.mxu0 0.0
    %v2892 = vand.u32 %v169, 4294901760
    %2893 = vmatpush1.msra.mxu0 %v2892
    %2894 = vmatprep.subr.mxu0 0.0
    %v2895 = vand.u32 %v170, 4294901760
    %2896 = vmatpush1.msra.mxu0 %v2895
    %v2897 = vand.u32 %v206, 4294901760
    %v2898 = vsub.f32 %v206, %v2897
    %v2899 = vand.u32 %v2898, 4294901760
    %v2900 = vsub.f32 %v2898, %v2899
    %v2901 = vand.u32 %v2900, 4294901760
    %2902 = vmatprep.mubr.f32.mxu0 %v2901
    %v2903 = vand.u32 %v204, 4294901760
    %v2904 = vsub.f32 %v204, %v2903
    %v2905 = vand.u32 %v2904, 4294901760
    %v2906 = vsub.f32 %v2904, %v2905
    %v2907 = vand.u32 %v2906, 4294901760
    %2908 = vmatmul.mubr.f32.gmra.mrb[0].mxu0 %v2907
    %v2909 = vpop.f32.mrb[0].mxu0
    %v2910 = vadd.f32 %v2798, %v2909
    %v2911 = vpop.f32.mrb[0].mxu0
    %2912 = vdwg.mxu0
    %2913 = vmatprep.subr.mxu0 0.0
    %v2914 = vand.u32 %v139, 4294901760
    %v2915 = vsub.f32 %v139, %v2914
    %v2916 = vand.u32 %v2915, 4294901760
    %v2917 = vsub.f32 %v2915, %v2916
    %v2918 = vand.u32 %v2917, 4294901760
    %2919 = vmatpush1.msra.mxu0 %v2918
    %2920 = vmatprep.subr.mxu0 0.0
    %v2921 = vand.u32 %v140, 4294901760
    %v2922 = vsub.f32 %v140, %v2921
    %v2923 = vand.u32 %v2922, 4294901760
    %v2924 = vsub.f32 %v2922, %v2923
    %v2925 = vand.u32 %v2924, 4294901760
    %2926 = vmatpush1.msra.mxu0 %v2925
    %2927 = vmatprep.subr.mxu0 0.0
    %v2928 = vand.u32 %v141, 4294901760
    %v2929 = vsub.f32 %v141, %v2928
    %v2930 = vand.u32 %v2929, 4294901760
    %v2931 = vsub.f32 %v2929, %v2930
    %v2932 = vand.u32 %v2931, 4294901760
    %2933 = vmatpush1.msra.mxu0 %v2932
    %2934 = vmatprep.subr.mxu0 0.0
    %v2935 = vand.u32 %v142, 4294901760
    %v2936 = vsub.f32 %v142, %v2935
    %v2937 = vand.u32 %v2936, 4294901760
    %v2938 = vsub.f32 %v2936, %v2937
    %v2939 = vand.u32 %v2938, 4294901760
    %2940 = vmatpush1.msra.mxu0 %v2939
    %2941 = vmatprep.subr.mxu0 0.0
    %v2942 = vand.u32 %v143, 4294901760
    %v2943 = vsub.f32 %v143, %v2942
    %v2944 = vand.u32 %v2943, 4294901760
    %v2945 = vsub.f32 %v2943, %v2944
    %v2946 = vand.u32 %v2945, 4294901760
    %2947 = vmatpush1.msra.mxu0 %v2946
    %2948 = vmatprep.subr.mxu0 0.0
    %v2949 = vand.u32 %v144, 4294901760
    %v2950 = vsub.f32 %v144, %v2949
    %v2951 = vand.u32 %v2950, 4294901760
    %v2952 = vsub.f32 %v2950, %v2951
    %v2953 = vand.u32 %v2952, 4294901760
    %2954 = vmatpush1.msra.mxu0 %v2953
    %2955 = vmatprep.subr.mxu0 0.0
    %v2956 = vand.u32 %v145, 4294901760
    %v2957 = vsub.f32 %v145, %v2956
    %v2958 = vand.u32 %v2957, 4294901760
    %v2959 = vsub.f32 %v2957, %v2958
    %v2960 = vand.u32 %v2959, 4294901760
    %2961 = vmatpush1.msra.mxu0 %v2960
    %2962 = vmatprep.subr.mxu0 0.0
    %v2963 = vand.u32 %v146, 4294901760
    %v2964 = vsub.f32 %v146, %v2963
    %v2965 = vand.u32 %v2964, 4294901760
    %v2966 = vsub.f32 %v2964, %v2965
    %v2967 = vand.u32 %v2966, 4294901760
    %2968 = vmatpush1.msra.mxu0 %v2967
    %2969 = vmatprep.subr.mxu0 0.0
    %v2970 = vand.u32 %v147, 4294901760
    %v2971 = vsub.f32 %v147, %v2970
    %v2972 = vand.u32 %v2971, 4294901760
    %v2973 = vsub.f32 %v2971, %v2972
    %v2974 = vand.u32 %v2973, 4294901760
    %2975 = vmatpush1.msra.mxu0 %v2974
    %2976 = vmatprep.subr.mxu0 0.0
    %v2977 = vand.u32 %v148, 4294901760
    %v2978 = vsub.f32 %v148, %v2977
    %v2979 = vand.u32 %v2978, 4294901760
    %v2980 = vsub.f32 %v2978, %v2979
    %v2981 = vand.u32 %v2980, 4294901760
    %2982 = vmatpush1.msra.mxu0 %v2981
    %2983 = vmatprep.subr.mxu0 0.0
    %v2984 = vand.u32 %v149, 4294901760
    %v2985 = vsub.f32 %v149, %v2984
    %v2986 = vand.u32 %v2985, 4294901760
    %v2987 = vsub.f32 %v2985, %v2986
    %v2988 = vand.u32 %v2987, 4294901760
    %2989 = vmatpush1.msra.mxu0 %v2988
    %2990 = vmatprep.subr.mxu0 0.0
    %v2991 = vand.u32 %v150, 4294901760
    %v2992 = vsub.f32 %v150, %v2991
    %v2993 = vand.u32 %v2992, 4294901760
    %v2994 = vsub.f32 %v2992, %v2993
    %v2995 = vand.u32 %v2994, 4294901760
    %2996 = vmatpush1.msra.mxu0 %v2995
    %2997 = vmatprep.subr.mxu0 0.0
    %v2998 = vand.u32 %v151, 4294901760
    %v2999 = vsub.f32 %v151, %v2998
    %v3000 = vand.u32 %v2999, 4294901760
    %v3001 = vsub.f32 %v2999, %v3000
    %v3002 = vand.u32 %v3001, 4294901760
    %3003 = vmatpush1.msra.mxu0 %v3002
    %3004 = vmatprep.subr.mxu0 0.0
    %v3005 = vand.u32 %v152, 4294901760
    %v3006 = vsub.f32 %v152, %v3005
    %v3007 = vand.u32 %v3006, 4294901760
    %v3008 = vsub.f32 %v3006, %v3007
    %v3009 = vand.u32 %v3008, 4294901760
    %3010 = vmatpush1.msra.mxu0 %v3009
    %3011 = vmatprep.subr.mxu0 0.0
    %v3012 = vand.u32 %v153, 4294901760
    %v3013 = vsub.f32 %v153, %v3012
    %v3014 = vand.u32 %v3013, 4294901760
    %v3015 = vsub.f32 %v3013, %v3014
    %v3016 = vand.u32 %v3015, 4294901760
    %3017 = vmatpush1.msra.mxu0 %v3016
    %3018 = vmatprep.subr.mxu0 0.0
    %v3019 = vand.u32 %v154, 4294901760
    %v3020 = vsub.f32 %v154, %v3019
    %v3021 = vand.u32 %v3020, 4294901760
    %v3022 = vsub.f32 %v3020, %v3021
    %v3023 = vand.u32 %v3022, 4294901760
    %3024 = vmatpush1.msra.mxu0 %v3023
    %3025 = vmatprep.subr.mxu0 0.0
    %v3026 = vand.u32 %v155, 4294901760
    %v3027 = vsub.f32 %v155, %v3026
    %v3028 = vand.u32 %v3027, 4294901760
    %v3029 = vsub.f32 %v3027, %v3028
    %v3030 = vand.u32 %v3029, 4294901760
    %3031 = vmatpush1.msra.mxu0 %v3030
    %3032 = vmatprep.subr.mxu0 0.0
    %v3033 = vand.u32 %v156, 4294901760
    %v3034 = vsub.f32 %v156, %v3033
    %v3035 = vand.u32 %v3034, 4294901760
    %v3036 = vsub.f32 %v3034, %v3035
    %v3037 = vand.u32 %v3036, 4294901760
    %3038 = vmatpush1.msra.mxu0 %v3037
    %3039 = vmatprep.subr.mxu0 0.0
    %v3040 = vand.u32 %v157, 4294901760
    %v3041 = vsub.f32 %v157, %v3040
    %v3042 = vand.u32 %v3041, 4294901760
    %v3043 = vsub.f32 %v3041, %v3042
    %v3044 = vand.u32 %v3043, 4294901760
    %3045 = vmatpush1.msra.mxu0 %v3044
    %3046 = vmatprep.subr.mxu0 0.0
    %v3047 = vand.u32 %v158, 4294901760
    %v3048 = vsub.f32 %v158, %v3047
    %v3049 = vand.u32 %v3048, 4294901760
    %v3050 = vsub.f32 %v3048, %v3049
    %v3051 = vand.u32 %v3050, 4294901760
    %3052 = vmatpush1.msra.mxu0 %v3051
    %3053 = vmatprep.subr.mxu0 0.0
    %v3054 = vand.u32 %v159, 4294901760
    %v3055 = vsub.f32 %v159, %v3054
    %v3056 = vand.u32 %v3055, 4294901760
    %v3057 = vsub.f32 %v3055, %v3056
    %v3058 = vand.u32 %v3057, 4294901760
    %3059 = vmatpush1.msra.mxu0 %v3058
    %3060 = vmatprep.subr.mxu0 0.0
    %v3061 = vand.u32 %v160, 4294901760
    %v3062 = vsub.f32 %v160, %v3061
    %v3063 = vand.u32 %v3062, 4294901760
    %v3064 = vsub.f32 %v3062, %v3063
    %v3065 = vand.u32 %v3064, 4294901760
    %3066 = vmatpush1.msra.mxu0 %v3065
    %3067 = vmatprep.subr.mxu0 0.0
    %v3068 = vand.u32 %v161, 4294901760
    %v3069 = vsub.f32 %v161, %v3068
    %v3070 = vand.u32 %v3069, 4294901760
    %v3071 = vsub.f32 %v3069, %v3070
    %v3072 = vand.u32 %v3071, 4294901760
    %3073 = vmatpush1.msra.mxu0 %v3072
    %3074 = vmatprep.subr.mxu0 0.0
    %v3075 = vand.u32 %v162, 4294901760
    %v3076 = vsub.f32 %v162, %v3075
    %v3077 = vand.u32 %v3076, 4294901760
    %v3078 = vsub.f32 %v3076, %v3077
    %v3079 = vand.u32 %v3078, 4294901760
    %3080 = vmatpush1.msra.mxu0 %v3079
    %3081 = vmatprep.subr.mxu0 0.0
    %v3082 = vand.u32 %v163, 4294901760
    %v3083 = vsub.f32 %v163, %v3082
    %v3084 = vand.u32 %v3083, 4294901760
    %v3085 = vsub.f32 %v3083, %v3084
    %v3086 = vand.u32 %v3085, 4294901760
    %3087 = vmatpush1.msra.mxu0 %v3086
    %3088 = vmatprep.subr.mxu0 0.0
    %v3089 = vand.u32 %v164, 4294901760
    %v3090 = vsub.f32 %v164, %v3089
    %v3091 = vand.u32 %v3090, 4294901760
    %v3092 = vsub.f32 %v3090, %v3091
    %v3093 = vand.u32 %v3092, 4294901760
    %3094 = vmatpush1.msra.mxu0 %v3093
    %3095 = vmatprep.subr.mxu0 0.0
    %v3096 = vand.u32 %v165, 4294901760
    %v3097 = vsub.f32 %v165, %v3096
    %v3098 = vand.u32 %v3097, 4294901760
    %v3099 = vsub.f32 %v3097, %v3098
    %v3100 = vand.u32 %v3099, 4294901760
    %3101 = vmatpush1.msra.mxu0 %v3100
    %3102 = vmatprep.subr.mxu0 0.0
    %v3103 = vand.u32 %v166, 4294901760
    %v3104 = vsub.f32 %v166, %v3103
    %v3105 = vand.u32 %v3104, 4294901760
    %v3106 = vsub.f32 %v3104, %v3105
    %v3107 = vand.u32 %v3106, 4294901760
    %3108 = vmatpush1.msra.mxu0 %v3107
    %3109 = vmatprep.subr.mxu0 0.0
    %v3110 = vand.u32 %v167, 4294901760
    %v3111 = vsub.f32 %v167, %v3110
    %v3112 = vand.u32 %v3111, 4294901760
    %v3113 = vsub.f32 %v3111, %v3112
    %v3114 = vand.u32 %v3113, 4294901760
    %3115 = vmatpush1.msra.mxu0 %v3114
    %3116 = vmatprep.subr.mxu0 0.0
    %v3117 = vand.u32 %v168, 4294901760
    %v3118 = vsub.f32 %v168, %v3117
    %v3119 = vand.u32 %v3118, 4294901760
    %v3120 = vsub.f32 %v3118, %v3119
    %v3121 = vand.u32 %v3120, 4294901760
    %3122 = vmatpush1.msra.mxu0 %v3121
    %3123 = vmatprep.subr.mxu0 0.0
    %v3124 = vand.u32 %v169, 4294901760
    %v3125 = vsub.f32 %v169, %v3124
    %v3126 = vand.u32 %v3125, 4294901760
    %v3127 = vsub.f32 %v3125, %v3126
    %v3128 = vand.u32 %v3127, 4294901760
    %3129 = vmatpush1.msra.mxu0 %v3128
    %3130 = vmatprep.subr.mxu0 0.0
    %v3131 = vand.u32 %v170, 4294901760
    %v3132 = vsub.f32 %v170, %v3131
    %v3133 = vand.u32 %v3132, 4294901760
    %v3134 = vsub.f32 %v3132, %v3133
    %v3135 = vand.u32 %v3134, 4294901760
    %3136 = vmatpush1.msra.mxu0 %v3135
    %v3137 = vand.u32 %v206, 4294901760
    %3138 = vmatprep.mubr.f32.mxu0 %v3137
    %v3139 = vand.u32 %v204, 4294901760
    %3140 = vmatmul.mubr.f32.gmra.mrb[0].mxu0 %v3139
    %v3141 = vpop.f32.mrb[0].mxu0
    %v3142 = vadd.f32 %v2910, %v3141
    %v3143 = vpop.f32.mrb[0].mxu0
    %3144 = vdwg.mxu0
    %3145 = vmatprep.subr.mxu0 0.0
    %v3146 = vand.u32 %v139, 4294901760
    %v3147 = vsub.f32 %v139, %v3146
    %3148 = vmatpush1.msra.mxu0 %v3147
    %3149 = vmatprep.subr.mxu0 0.0
    %v3150 = vand.u32 %v140, 4294901760
    %v3151 = vsub.f32 %v140, %v3150
    %3152 = vmatpush1.msra.mxu0 %v3151
    %3153 = vmatprep.subr.mxu0 0.0
    %v3154 = vand.u32 %v141, 4294901760
    %v3155 = vsub.f32 %v141, %v3154
    %3156 = vmatpush1.msra.mxu0 %v3155
    %3157 = vmatprep.subr.mxu0 0.0
    %v3158 = vand.u32 %v142, 4294901760
    %v3159 = vsub.f32 %v142, %v3158
    %3160 = vmatpush1.msra.mxu0 %v3159
    %3161 = vmatprep.subr.mxu0 0.0
    %v3162 = vand.u32 %v143, 4294901760
    %v3163 = vsub.f32 %v143, %v3162
    %3164 = vmatpush1.msra.mxu0 %v3163
    %3165 = vmatprep.subr.mxu0 0.0
    %v3166 = vand.u32 %v144, 4294901760
    %v3167 = vsub.f32 %v144, %v3166
    %3168 = vmatpush1.msra.mxu0 %v3167
    %3169 = vmatprep.subr.mxu0 0.0
    %v3170 = vand.u32 %v145, 4294901760
    %v3171 = vsub.f32 %v145, %v3170
    %3172 = vmatpush1.msra.mxu0 %v3171
    %3173 = vmatprep.subr.mxu0 0.0
    %v3174 = vand.u32 %v146, 4294901760
    %v3175 = vsub.f32 %v146, %v3174
    %3176 = vmatpush1.msra.mxu0 %v3175
    %3177 = vmatprep.subr.mxu0 0.0
    %v3178 = vand.u32 %v147, 4294901760
    %v3179 = vsub.f32 %v147, %v3178
    %3180 = vmatpush1.msra.mxu0 %v3179
    %3181 = vmatprep.subr.mxu0 0.0
    %v3182 = vand.u32 %v148, 4294901760
    %v3183 = vsub.f32 %v148, %v3182
    %3184 = vmatpush1.msra.mxu0 %v3183
    %3185 = vmatprep.subr.mxu0 0.0
    %v3186 = vand.u32 %v149, 4294901760
    %v3187 = vsub.f32 %v149, %v3186
    %3188 = vmatpush1.msra.mxu0 %v3187
    %3189 = vmatprep.subr.mxu0 0.0
    %v3190 = vand.u32 %v150, 4294901760
    %v3191 = vsub.f32 %v150, %v3190
    %3192 = vmatpush1.msra.mxu0 %v3191
    %3193 = vmatprep.subr.mxu0 0.0
    %v3194 = vand.u32 %v151, 4294901760
    %v3195 = vsub.f32 %v151, %v3194
    %3196 = vmatpush1.msra.mxu0 %v3195
    %3197 = vmatprep.subr.mxu0 0.0
    %v3198 = vand.u32 %v152, 4294901760
    %v3199 = vsub.f32 %v152, %v3198
    %3200 = vmatpush1.msra.mxu0 %v3199
    %3201 = vmatprep.subr.mxu0 0.0
    %v3202 = vand.u32 %v153, 4294901760
    %v3203 = vsub.f32 %v153, %v3202
    %3204 = vmatpush1.msra.mxu0 %v3203
    %3205 = vmatprep.subr.mxu0 0.0
    %v3206 = vand.u32 %v154, 4294901760
    %v3207 = vsub.f32 %v154, %v3206
    %3208 = vmatpush1.msra.mxu0 %v3207
    %3209 = vmatprep.subr.mxu0 0.0
    %v3210 = vand.u32 %v155, 4294901760
    %v3211 = vsub.f32 %v155, %v3210
    %3212 = vmatpush1.msra.mxu0 %v3211
    %3213 = vmatprep.subr.mxu0 0.0
    %v3214 = vand.u32 %v156, 4294901760
    %v3215 = vsub.f32 %v156, %v3214
    %3216 = vmatpush1.msra.mxu0 %v3215
    %3217 = vmatprep.subr.mxu0 0.0
    %v3218 = vand.u32 %v157, 4294901760
    %v3219 = vsub.f32 %v157, %v3218
    %3220 = vmatpush1.msra.mxu0 %v3219
    %3221 = vmatprep.subr.mxu0 0.0
    %v3222 = vand.u32 %v158, 4294901760
    %v3223 = vsub.f32 %v158, %v3222
    %3224 = vmatpush1.msra.mxu0 %v3223
    %3225 = vmatprep.subr.mxu0 0.0
    %v3226 = vand.u32 %v159, 4294901760
    %v3227 = vsub.f32 %v159, %v3226
    %3228 = vmatpush1.msra.mxu0 %v3227
    %3229 = vmatprep.subr.mxu0 0.0
    %v3230 = vand.u32 %v160, 4294901760
    %v3231 = vsub.f32 %v160, %v3230
    %3232 = vmatpush1.msra.mxu0 %v3231
    %3233 = vmatprep.subr.mxu0 0.0
    %v3234 = vand.u32 %v161, 4294901760
    %v3235 = vsub.f32 %v161, %v3234
    %3236 = vmatpush1.msra.mxu0 %v3235
    %3237 = vmatprep.subr.mxu0 0.0
    %v3238 = vand.u32 %v162, 4294901760
    %v3239 = vsub.f32 %v162, %v3238
    %3240 = vmatpush1.msra.mxu0 %v3239
    %3241 = vmatprep.subr.mxu0 0.0
    %v3242 = vand.u32 %v163, 4294901760
    %v3243 = vsub.f32 %v163, %v3242
    %3244 = vmatpush1.msra.mxu0 %v3243
    %3245 = vmatprep.subr.mxu0 0.0
    %v3246 = vand.u32 %v164, 4294901760
    %v3247 = vsub.f32 %v164, %v3246
    %3248 = vmatpush1.msra.mxu0 %v3247
    %3249 = vmatprep.subr.mxu0 0.0
    %v3250 = vand.u32 %v165, 4294901760
    %v3251 = vsub.f32 %v165, %v3250
    %3252 = vmatpush1.msra.mxu0 %v3251
    %3253 = vmatprep.subr.mxu0 0.0
    %v3254 = vand.u32 %v166, 4294901760
    %v3255 = vsub.f32 %v166, %v3254
    %3256 = vmatpush1.msra.mxu0 %v3255
    %3257 = vmatprep.subr.mxu0 0.0
    %v3258 = vand.u32 %v167, 4294901760
    %v3259 = vsub.f32 %v167, %v3258
    %3260 = vmatpush1.msra.mxu0 %v3259
    %3261 = vmatprep.subr.mxu0 0.0
    %v3262 = vand.u32 %v168, 4294901760
    %v3263 = vsub.f32 %v168, %v3262
    %3264 = vmatpush1.msra.mxu0 %v3263
    %3265 = vmatprep.subr.mxu0 0.0
    %v3266 = vand.u32 %v169, 4294901760
    %v3267 = vsub.f32 %v169, %v3266
    %3268 = vmatpush1.msra.mxu0 %v3267
    %3269 = vmatprep.subr.mxu0 0.0
    %v3270 = vand.u32 %v170, 4294901760
    %v3271 = vsub.f32 %v170, %v3270
    %3272 = vmatpush1.msra.mxu0 %v3271
    %v3273 = vand.u32 %v206, 4294901760
    %v3274 = vsub.f32 %v206, %v3273
    %3275 = vmatprep.mubr.f32.mxu0 %v3274
    %v3276 = vand.u32 %v204, 4294901760
    %v3277 = vsub.f32 %v204, %v3276
    %3278 = vmatmul.mubr.f32.gmra.mrb[0].mxu0 %v3277
    %v3279 = vpop.f32.mrb[0].mxu0
    %v3280 = vadd.f32 %v3142, %v3279
    %v3281 = vpop.f32.mrb[0].mxu0
    %3282 = vdwg.mxu0
    %3283 = vmatprep.subr.mxu0 0.0
    %v3284 = vand.u32 %v139, 4294901760
    %3285 = vmatpush1.msra.mxu0 %v3284
    %3286 = vmatprep.subr.mxu0 0.0
    %v3287 = vand.u32 %v140, 4294901760
    %3288 = vmatpush1.msra.mxu0 %v3287
    %3289 = vmatprep.subr.mxu0 0.0
    %v3290 = vand.u32 %v141, 4294901760
    %3291 = vmatpush1.msra.mxu0 %v3290
    %3292 = vmatprep.subr.mxu0 0.0
    %v3293 = vand.u32 %v142, 4294901760
    %3294 = vmatpush1.msra.mxu0 %v3293
    %3295 = vmatprep.subr.mxu0 0.0
    %v3296 = vand.u32 %v143, 4294901760
    %3297 = vmatpush1.msra.mxu0 %v3296
    %3298 = vmatprep.subr.mxu0 0.0
    %v3299 = vand.u32 %v144, 4294901760
    %3300 = vmatpush1.msra.mxu0 %v3299
    %3301 = vmatprep.subr.mxu0 0.0
    %v3302 = vand.u32 %v145, 4294901760
    %3303 = vmatpush1.msra.mxu0 %v3302
    %3304 = vmatprep.subr.mxu0 0.0
    %v3305 = vand.u32 %v146, 4294901760
    %3306 = vmatpush1.msra.mxu0 %v3305
    %3307 = vmatprep.subr.mxu0 0.0
    %v3308 = vand.u32 %v147, 4294901760
    %3309 = vmatpush1.msra.mxu0 %v3308
    %3310 = vmatprep.subr.mxu0 0.0
    %v3311 = vand.u32 %v148, 4294901760
    %3312 = vmatpush1.msra.mxu0 %v3311
    %3313 = vmatprep.subr.mxu0 0.0
    %v3314 = vand.u32 %v149, 4294901760
    %3315 = vmatpush1.msra.mxu0 %v3314
    %3316 = vmatprep.subr.mxu0 0.0
    %v3317 = vand.u32 %v150, 4294901760
    %3318 = vmatpush1.msra.mxu0 %v3317
    %3319 = vmatprep.subr.mxu0 0.0
    %v3320 = vand.u32 %v151, 4294901760
    %3321 = vmatpush1.msra.mxu0 %v3320
    %3322 = vmatprep.subr.mxu0 0.0
    %v3323 = vand.u32 %v152, 4294901760
    %3324 = vmatpush1.msra.mxu0 %v3323
    %3325 = vmatprep.subr.mxu0 0.0
    %v3326 = vand.u32 %v153, 4294901760
    %3327 = vmatpush1.msra.mxu0 %v3326
    %3328 = vmatprep.subr.mxu0 0.0
    %v3329 = vand.u32 %v154, 4294901760
    %3330 = vmatpush1.msra.mxu0 %v3329
    %3331 = vmatprep.subr.mxu0 0.0
    %v3332 = vand.u32 %v155, 4294901760
    %3333 = vmatpush1.msra.mxu0 %v3332
    %3334 = vmatprep.subr.mxu0 0.0
    %v3335 = vand.u32 %v156, 4294901760
    %3336 = vmatpush1.msra.mxu0 %v3335
    %3337 = vmatprep.subr.mxu0 0.0
    %v3338 = vand.u32 %v157, 4294901760
    %3339 = vmatpush1.msra.mxu0 %v3338
    %3340 = vmatprep.subr.mxu0 0.0
    %v3341 = vand.u32 %v158, 4294901760
    %3342 = vmatpush1.msra.mxu0 %v3341
    %3343 = vmatprep.subr.mxu0 0.0
    %v3344 = vand.u32 %v159, 4294901760
    %3345 = vmatpush1.msra.mxu0 %v3344
    %3346 = vmatprep.subr.mxu0 0.0
    %v3347 = vand.u32 %v160, 4294901760
    %3348 = vmatpush1.msra.mxu0 %v3347
    %3349 = vmatprep.subr.mxu0 0.0
    %v3350 = vand.u32 %v161, 4294901760
    %3351 = vmatpush1.msra.mxu0 %v3350
    %3352 = vmatprep.subr.mxu0 0.0
    %v3353 = vand.u32 %v162, 4294901760
    %3354 = vmatpush1.msra.mxu0 %v3353
    %3355 = vmatprep.subr.mxu0 0.0
    %v3356 = vand.u32 %v163, 4294901760
    %3357 = vmatpush1.msra.mxu0 %v3356
    %3358 = vmatprep.subr.mxu0 0.0
    %v3359 = vand.u32 %v164, 4294901760
    %3360 = vmatpush1.msra.mxu0 %v3359
    %3361 = vmatprep.subr.mxu0 0.0
    %v3362 = vand.u32 %v165, 4294901760
    %3363 = vmatpush1.msra.mxu0 %v3362
    %3364 = vmatprep.subr.mxu0 0.0
    %v3365 = vand.u32 %v166, 4294901760
    %3366 = vmatpush1.msra.mxu0 %v3365
    %3367 = vmatprep.subr.mxu0 0.0
    %v3368 = vand.u32 %v167, 4294901760
    %3369 = vmatpush1.msra.mxu0 %v3368
    %3370 = vmatprep.subr.mxu0 0.0
    %v3371 = vand.u32 %v168, 4294901760
    %3372 = vmatpush1.msra.mxu0 %v3371
    %3373 = vmatprep.subr.mxu0 0.0
    %v3374 = vand.u32 %v169, 4294901760
    %3375 = vmatpush1.msra.mxu0 %v3374
    %3376 = vmatprep.subr.mxu0 0.0
    %v3377 = vand.u32 %v170, 4294901760
    %3378 = vmatpush1.msra.mxu0 %v3377
    %v3379 = vand.u32 %v206, 4294901760
    %v3380 = vsub.f32 %v206, %v3379
    %v3381 = vand.u32 %v3380, 4294901760
    %3382 = vmatprep.mubr.f32.mxu0 %v3381
    %v3383 = vand.u32 %v204, 4294901760
    %v3384 = vsub.f32 %v204, %v3383
    %v3385 = vand.u32 %v3384, 4294901760
    %3386 = vmatmul.mubr.f32.gmra.mrb[0].mxu0 %v3385
    %v3387 = vpop.f32.mrb[0].mxu0
    %v3388 = vadd.f32 %v3280, %v3387
    %v3389 = vpop.f32.mrb[0].mxu0
    %3390 = vdwg.mxu0
    %3391 = vmatprep.subr.mxu0 0.0
    %v3392 = vand.u32 %v139, 4294901760
    %v3393 = vsub.f32 %v139, %v3392
    %v3394 = vand.u32 %v3393, 4294901760
    %3395 = vmatpush1.msra.mxu0 %v3394
    %3396 = vmatprep.subr.mxu0 0.0
    %v3397 = vand.u32 %v140, 4294901760
    %v3398 = vsub.f32 %v140, %v3397
    %v3399 = vand.u32 %v3398, 4294901760
    %3400 = vmatpush1.msra.mxu0 %v3399
    %3401 = vmatprep.subr.mxu0 0.0
    %v3402 = vand.u32 %v141, 4294901760
    %v3403 = vsub.f32 %v141, %v3402
    %v3404 = vand.u32 %v3403, 4294901760
    %3405 = vmatpush1.msra.mxu0 %v3404
    %3406 = vmatprep.subr.mxu0 0.0
    %v3407 = vand.u32 %v142, 4294901760
    %v3408 = vsub.f32 %v142, %v3407
    %v3409 = vand.u32 %v3408, 4294901760
    %3410 = vmatpush1.msra.mxu0 %v3409
    %3411 = vmatprep.subr.mxu0 0.0
    %v3412 = vand.u32 %v143, 4294901760
    %v3413 = vsub.f32 %v143, %v3412
    %v3414 = vand.u32 %v3413, 4294901760
    %3415 = vmatpush1.msra.mxu0 %v3414
    %3416 = vmatprep.subr.mxu0 0.0
    %v3417 = vand.u32 %v144, 4294901760
    %v3418 = vsub.f32 %v144, %v3417
    %v3419 = vand.u32 %v3418, 4294901760
    %3420 = vmatpush1.msra.mxu0 %v3419
    %3421 = vmatprep.subr.mxu0 0.0
    %v3422 = vand.u32 %v145, 4294901760
    %v3423 = vsub.f32 %v145, %v3422
    %v3424 = vand.u32 %v3423, 4294901760
    %3425 = vmatpush1.msra.mxu0 %v3424
    %3426 = vmatprep.subr.mxu0 0.0
    %v3427 = vand.u32 %v146, 4294901760
    %v3428 = vsub.f32 %v146, %v3427
    %v3429 = vand.u32 %v3428, 4294901760
    %3430 = vmatpush1.msra.mxu0 %v3429
    %3431 = vmatprep.subr.mxu0 0.0
    %v3432 = vand.u32 %v147, 4294901760
    %v3433 = vsub.f32 %v147, %v3432
    %v3434 = vand.u32 %v3433, 4294901760
    %3435 = vmatpush1.msra.mxu0 %v3434
    %3436 = vmatprep.subr.mxu0 0.0
    %v3437 = vand.u32 %v148, 4294901760
    %v3438 = vsub.f32 %v148, %v3437
    %v3439 = vand.u32 %v3438, 4294901760
    %3440 = vmatpush1.msra.mxu0 %v3439
    %3441 = vmatprep.subr.mxu0 0.0
    %v3442 = vand.u32 %v149, 4294901760
    %v3443 = vsub.f32 %v149, %v3442
    %v3444 = vand.u32 %v3443, 4294901760
    %3445 = vmatpush1.msra.mxu0 %v3444
    %3446 = vmatprep.subr.mxu0 0.0
    %v3447 = vand.u32 %v150, 4294901760
    %v3448 = vsub.f32 %v150, %v3447
    %v3449 = vand.u32 %v3448, 4294901760
    %3450 = vmatpush1.msra.mxu0 %v3449
    %3451 = vmatprep.subr.mxu0 0.0
    %v3452 = vand.u32 %v151, 4294901760
    %v3453 = vsub.f32 %v151, %v3452
    %v3454 = vand.u32 %v3453, 4294901760
    %3455 = vmatpush1.msra.mxu0 %v3454
    %3456 = vmatprep.subr.mxu0 0.0
    %v3457 = vand.u32 %v152, 4294901760
    %v3458 = vsub.f32 %v152, %v3457
    %v3459 = vand.u32 %v3458, 4294901760
    %3460 = vmatpush1.msra.mxu0 %v3459
    %3461 = vmatprep.subr.mxu0 0.0
    %v3462 = vand.u32 %v153, 4294901760
    %v3463 = vsub.f32 %v153, %v3462
    %v3464 = vand.u32 %v3463, 4294901760
    %3465 = vmatpush1.msra.mxu0 %v3464
    %3466 = vmatprep.subr.mxu0 0.0
    %v3467 = vand.u32 %v154, 4294901760
    %v3468 = vsub.f32 %v154, %v3467
    %v3469 = vand.u32 %v3468, 4294901760
    %3470 = vmatpush1.msra.mxu0 %v3469
    %3471 = vmatprep.subr.mxu0 0.0
    %v3472 = vand.u32 %v155, 4294901760
    %v3473 = vsub.f32 %v155, %v3472
    %v3474 = vand.u32 %v3473, 4294901760
    %3475 = vmatpush1.msra.mxu0 %v3474
    %3476 = vmatprep.subr.mxu0 0.0
    %v3477 = vand.u32 %v156, 4294901760
    %v3478 = vsub.f32 %v156, %v3477
    %v3479 = vand.u32 %v3478, 4294901760
    %3480 = vmatpush1.msra.mxu0 %v3479
    %3481 = vmatprep.subr.mxu0 0.0
    %v3482 = vand.u32 %v157, 4294901760
    %v3483 = vsub.f32 %v157, %v3482
    %v3484 = vand.u32 %v3483, 4294901760
    %3485 = vmatpush1.msra.mxu0 %v3484
    %3486 = vmatprep.subr.mxu0 0.0
    %v3487 = vand.u32 %v158, 4294901760
    %v3488 = vsub.f32 %v158, %v3487
    %v3489 = vand.u32 %v3488, 4294901760
    %3490 = vmatpush1.msra.mxu0 %v3489
    %3491 = vmatprep.subr.mxu0 0.0
    %v3492 = vand.u32 %v159, 4294901760
    %v3493 = vsub.f32 %v159, %v3492
    %v3494 = vand.u32 %v3493, 4294901760
    %3495 = vmatpush1.msra.mxu0 %v3494
    %3496 = vmatprep.subr.mxu0 0.0
    %v3497 = vand.u32 %v160, 4294901760
    %v3498 = vsub.f32 %v160, %v3497
    %v3499 = vand.u32 %v3498, 4294901760
    %3500 = vmatpush1.msra.mxu0 %v3499
    %3501 = vmatprep.subr.mxu0 0.0
    %v3502 = vand.u32 %v161, 4294901760
    %v3503 = vsub.f32 %v161, %v3502
    %v3504 = vand.u32 %v3503, 4294901760
    %3505 = vmatpush1.msra.mxu0 %v3504
    %3506 = vmatprep.subr.mxu0 0.0
    %v3507 = vand.u32 %v162, 4294901760
    %v3508 = vsub.f32 %v162, %v3507
    %v3509 = vand.u32 %v3508, 4294901760
    %3510 = vmatpush1.msra.mxu0 %v3509
    %3511 = vmatprep.subr.mxu0 0.0
    %v3512 = vand.u32 %v163, 4294901760
    %v3513 = vsub.f32 %v163, %v3512
    %v3514 = vand.u32 %v3513, 4294901760
    %3515 = vmatpush1.msra.mxu0 %v3514
    %3516 = vmatprep.subr.mxu0 0.0
    %v3517 = vand.u32 %v164, 4294901760
    %v3518 = vsub.f32 %v164, %v3517
    %v3519 = vand.u32 %v3518, 4294901760
    %3520 = vmatpush1.msra.mxu0 %v3519
    %3521 = vmatprep.subr.mxu0 0.0
    %v3522 = vand.u32 %v165, 4294901760
    %v3523 = vsub.f32 %v165, %v3522
    %v3524 = vand.u32 %v3523, 4294901760
    %3525 = vmatpush1.msra.mxu0 %v3524
    %3526 = vmatprep.subr.mxu0 0.0
    %v3527 = vand.u32 %v166, 4294901760
    %v3528 = vsub.f32 %v166, %v3527
    %v3529 = vand.u32 %v3528, 4294901760
    %3530 = vmatpush1.msra.mxu0 %v3529
    %3531 = vmatprep.subr.mxu0 0.0
    %v3532 = vand.u32 %v167, 4294901760
    %v3533 = vsub.f32 %v167, %v3532
    %v3534 = vand.u32 %v3533, 4294901760
    %3535 = vmatpush1.msra.mxu0 %v3534
    %3536 = vmatprep.subr.mxu0 0.0
    %v3537 = vand.u32 %v168, 4294901760
    %v3538 = vsub.f32 %v168, %v3537
    %v3539 = vand.u32 %v3538, 4294901760
    %3540 = vmatpush1.msra.mxu0 %v3539
    %3541 = vmatprep.subr.mxu0 0.0
    %v3542 = vand.u32 %v169, 4294901760
    %v3543 = vsub.f32 %v169, %v3542
    %v3544 = vand.u32 %v3543, 4294901760
    %3545 = vmatpush1.msra.mxu0 %v3544
    %3546 = vmatprep.subr.mxu0 0.0
    %v3547 = vand.u32 %v170, 4294901760
    %v3548 = vsub.f32 %v170, %v3547
    %v3549 = vand.u32 %v3548, 4294901760
    %3550 = vmatpush1.msra.mxu0 %v3549
    %v3551 = vand.u32 %v206, 4294901760
    %3552 = vmatprep.mubr.f32.mxu0 %v3551
    %v3553 = vand.u32 %v204, 4294901760
    %3554 = vmatmul.mubr.f32.gmra.mrb[0].mxu0 %v3553
    %v3555 = vpop.f32.mrb[0].mxu0
    %v3556 = vadd.f32 %v3388, %v3555
    %v3557 = vpop.f32.mrb[0].mxu0
    %3558 = vdwg.mxu0
    %3559 = vmatprep.subr.mxu0 0.0
    %v3560 = vand.u32 %v139, 4294901760
    %3561 = vmatpush1.msra.mxu0 %v3560
    %3562 = vmatprep.subr.mxu0 0.0
    %v3563 = vand.u32 %v140, 4294901760
    %3564 = vmatpush1.msra.mxu0 %v3563
    %3565 = vmatprep.subr.mxu0 0.0
    %v3566 = vand.u32 %v141, 4294901760
    %3567 = vmatpush1.msra.mxu0 %v3566
    %3568 = vmatprep.subr.mxu0 0.0
    %v3569 = vand.u32 %v142, 4294901760
    %3570 = vmatpush1.msra.mxu0 %v3569
    %3571 = vmatprep.subr.mxu0 0.0
    %v3572 = vand.u32 %v143, 4294901760
    %3573 = vmatpush1.msra.mxu0 %v3572
    %3574 = vmatprep.subr.mxu0 0.0
    %v3575 = vand.u32 %v144, 4294901760
    %3576 = vmatpush1.msra.mxu0 %v3575
    %3577 = vmatprep.subr.mxu0 0.0
    %v3578 = vand.u32 %v145, 4294901760
    %3579 = vmatpush1.msra.mxu0 %v3578
    %3580 = vmatprep.subr.mxu0 0.0
    %v3581 = vand.u32 %v146, 4294901760
    %3582 = vmatpush1.msra.mxu0 %v3581
    %3583 = vmatprep.subr.mxu0 0.0
    %v3584 = vand.u32 %v147, 4294901760
    %3585 = vmatpush1.msra.mxu0 %v3584
    %3586 = vmatprep.subr.mxu0 0.0
    %v3587 = vand.u32 %v148, 4294901760
    %3588 = vmatpush1.msra.mxu0 %v3587
    %3589 = vmatprep.subr.mxu0 0.0
    %v3590 = vand.u32 %v149, 4294901760
    %3591 = vmatpush1.msra.mxu0 %v3590
    %3592 = vmatprep.subr.mxu0 0.0
    %v3593 = vand.u32 %v150, 4294901760
    %3594 = vmatpush1.msra.mxu0 %v3593
    %3595 = vmatprep.subr.mxu0 0.0
    %v3596 = vand.u32 %v151, 4294901760
    %3597 = vmatpush1.msra.mxu0 %v3596
    %3598 = vmatprep.subr.mxu0 0.0
    %v3599 = vand.u32 %v152, 4294901760
    %3600 = vmatpush1.msra.mxu0 %v3599
    %3601 = vmatprep.subr.mxu0 0.0
    %v3602 = vand.u32 %v153, 4294901760
    %3603 = vmatpush1.msra.mxu0 %v3602
    %3604 = vmatprep.subr.mxu0 0.0
    %v3605 = vand.u32 %v154, 4294901760
    %3606 = vmatpush1.msra.mxu0 %v3605
    %3607 = vmatprep.subr.mxu0 0.0
    %v3608 = vand.u32 %v155, 4294901760
    %3609 = vmatpush1.msra.mxu0 %v3608
    %3610 = vmatprep.subr.mxu0 0.0
    %v3611 = vand.u32 %v156, 4294901760
    %3612 = vmatpush1.msra.mxu0 %v3611
    %3613 = vmatprep.subr.mxu0 0.0
    %v3614 = vand.u32 %v157, 4294901760
    %3615 = vmatpush1.msra.mxu0 %v3614
    %3616 = vmatprep.subr.mxu0 0.0
    %v3617 = vand.u32 %v158, 4294901760
    %3618 = vmatpush1.msra.mxu0 %v3617
    %3619 = vmatprep.subr.mxu0 0.0
    %v3620 = vand.u32 %v159, 4294901760
    %3621 = vmatpush1.msra.mxu0 %v3620
    %3622 = vmatprep.subr.mxu0 0.0
    %v3623 = vand.u32 %v160, 4294901760
    %3624 = vmatpush1.msra.mxu0 %v3623
    %3625 = vmatprep.subr.mxu0 0.0
    %v3626 = vand.u32 %v161, 4294901760
    %3627 = vmatpush1.msra.mxu0 %v3626
    %3628 = vmatprep.subr.mxu0 0.0
    %v3629 = vand.u32 %v162, 4294901760
    %3630 = vmatpush1.msra.mxu0 %v3629
    %3631 = vmatprep.subr.mxu0 0.0
    %v3632 = vand.u32 %v163, 4294901760
    %3633 = vmatpush1.msra.mxu0 %v3632
    %3634 = vmatprep.subr.mxu0 0.0
    %v3635 = vand.u32 %v164, 4294901760
    %3636 = vmatpush1.msra.mxu0 %v3635
    %3637 = vmatprep.subr.mxu0 0.0
    %v3638 = vand.u32 %v165, 4294901760
    %3639 = vmatpush1.msra.mxu0 %v3638
    %3640 = vmatprep.subr.mxu0 0.0
    %v3641 = vand.u32 %v166, 4294901760
    %3642 = vmatpush1.msra.mxu0 %v3641
    %3643 = vmatprep.subr.mxu0 0.0
    %v3644 = vand.u32 %v167, 4294901760
    %3645 = vmatpush1.msra.mxu0 %v3644
    %3646 = vmatprep.subr.mxu0 0.0
    %v3647 = vand.u32 %v168, 4294901760
    %3648 = vmatpush1.msra.mxu0 %v3647
    %3649 = vmatprep.subr.mxu0 0.0
    %v3650 = vand.u32 %v169, 4294901760
    %3651 = vmatpush1.msra.mxu0 %v3650
    %3652 = vmatprep.subr.mxu0 0.0
    %v3653 = vand.u32 %v170, 4294901760
    %3654 = vmatpush1.msra.mxu0 %v3653
    %v3655 = vand.u32 %v206, 4294901760
    %3656 = vmatprep.mubr.f32.mxu0 %v3655
    %v3657 = vand.u32 %v204, 4294901760
    %3658 = vmatmul.mubr.f32.gmra.mrb[0].mxu0 %v3657
    %v3659 = vpop.f32.mrb[0].mxu0
    %v3660 = vadd.f32 %v3556, %v3659
    %v3661 = vpop.f32.mrb[0].mxu0
    %3662 = vdwg.mxu0
    %v3663 = vld [vmem:[%s1] sm:$0x3]
    %v3664 = vmul.f32 %v3660, %v3663
    %3665 = vst [vmem:[#allocation7] sm:$0x3] %v3664
    // Predicated region
    $region22: #{tpu_custom_call.1} parent=1 // pred_check
      _
    $region23: #{tpu_custom_call.1} parent=1 // pred_check_branch
      %3667 = sbr.rel (0) target = $region25
    $region24: #{tpu_custom_call.1} parent=1 // pred_region
      %s3669 = ssub.s32 32, 32
      %3670 = vsyncadd [#allocation4], %s3669
      %s3672 = sshll.u32 [#allocation7], 4
      %s3673 = int_to_ptr.vmem [resolvable:$true] %s3672
      %3675 = dma.vmem_to_hbm [thread:$0]  %s3673, 32, %s3, [#allocation4]
    $region25: #{tpu_custom_call.1} parent=1 // pred_fallthru
      _
    // Predicated region
    $region26: #{tpu_custom_call.1} parent=1 // pred_check
      _
    $region27: #{tpu_custom_call.1} parent=1 // pred_check_branch
      %3677 = sbr.rel (0) target = $region29
    $region28: #{tpu_custom_call.1} parent=1 // pred_region
      %3678 = dma.done [#allocation4], 32
    $region29: #{tpu_custom_call.1} parent=1 // pred_fallthru
      _
    %3679 = vsyncpa [#allocation3], 1
    %3680 = vsyncpa [#allocation6], 1
    %3681 = vsyncpa [#allocation4], 1

</llo_original>
